<compile_context>
chip_gen: v7x
topology: tpu7x:2x2x1
jax: 0.10.0
libtpu: 0.0.40
codegen_flags: <defaults>
</compile_context>

<pallas_src>
import functools

import jax
import jax.numpy as jnp
from jax import lax
from jax.experimental import pallas as pl
from jax.experimental.pallas import tpu as pltpu

NUM_GROUPS = 32
GN_EPS = 1.0                      # nn.GroupNorm(32, C, 1) -> eps = 1.0


@functools.lru_cache(maxsize=None)
def _vmem_capacity_bytes():
    """Physical VMEM per TensorCore; conservative (64-MiB-class) fallback."""
    try:
        return int(pltpu.get_tpu_info().vmem_capacity_bytes)
    except Exception:
        return 64 * 1024 * 1024


def _pick_tile(total, target):
    """Largest 128-multiple <= target that divides `total`, else the full
    extent (full extents always satisfy the (8, 128) BlockSpec rule)."""
    if total <= target:
        return total
    cand = target
    while cand >= 128:
        if total % cand == 0:
            return cand
        cand //= 2
    return total


def _tiling_config(B, C, HW_pad):
    """Generation-gated tile sizes + scoped-VMEM limit."""
    small_vmem = _vmem_capacity_bytes() <= 96 * 1024 * 1024   # v7x-class (64 MiB/TC)
    if small_vmem:
        vmem_limit = 48 * 1024 * 1024
        ts_t = 1024
        tq_t = tkv_t = 1024 if C <= 768 else 512
    else:                                                     # v5e / v6e (128 MiB)
        vmem_limit = 96 * 1024 * 1024
        ts_t = 2048 if C <= 768 else 1024
        tq_t = tkv_t = 1024
    TS = _pick_tile(HW_pad, ts_t)
    TQ = _pick_tile(HW_pad, tq_t)
    TKV = _pick_tile(HW_pad, tkv_t)
    # 2-TensorCore parts shard the "parallel" grid axes; keep >= 2 work items.
    if small_vmem and B * (HW_pad // TQ) < 2:
        TQ = _pick_tile(HW_pad, max(128, TQ // 2))
    return TS, TQ, TKV, vmem_limit


# ---------------------------------------------------------------------------
# Pass 0: per-channel lane-wise partial sum / sum-of-squares (GroupNorm stats).
# ---------------------------------------------------------------------------
def _gn_stats_kernel(x_ref, sum_ref, sq_ref):
    x = x_ref[0]                                   # (C, TS) f32
    TS = x.shape[1]
    L = sum_ref.shape[-1]                          # lane width of partials

    @pl.when(pl.program_id(1) == 0)
    def _():
        sum_ref[...] = jnp.zeros_like(sum_ref)
        sq_ref[...] = jnp.zeros_like(sq_ref)

    # Lane-wise accumulation: plain VPU adds on 128-lane-aligned static slices
    # (no cross-lane XLU reduce, no narrow (C,1) masked stores per tile).  The
    # final 128-lane reduce happens in plain JAX on a tiny (B, C, 128) array.
    acc_s = x[:, 0:L]
    acc_q = acc_s * acc_s
    for j in range(1, TS // L):
        blk = x[:, j * L:(j + 1) * L]
        acc_s = acc_s + blk
        acc_q = acc_q + blk * blk
    sum_ref[0] = sum_ref[0] + acc_s
    sq_ref[0] = sq_ref[0] + acc_q


# ---------------------------------------------------------------------------
# Pass 1: GroupNorm-apply + Q/K/V projection (three (C,C)@(C,TS) matmuls).
# ---------------------------------------------------------------------------
def _proj_kernel(x_ref, mean_ref, inv_ref, gamma_ref, beta_ref,
                 wq_ref, wk_ref, wv_ref, bq_ref, bk_ref, bv_ref,
                 qT_ref, k_ref, vT_ref):
    x = x_ref[0]                                   # (C, TS) f32
    C = x.shape[0]
    scale = 1.0 / (C ** 0.5)                       # SDPA scale, folded into qT

    h = ((x - mean_ref[0]) * inv_ref[0] * gamma_ref[...] + beta_ref[...]
         ).astype(jnp.bfloat16)

    # Each projection is stored before the next one starts, so only one
    # (C, TS) f32 intermediate is live at a time (VMEM/vreg pressure bound).
    q = jnp.dot(wq_ref[...], h, preferred_element_type=jnp.float32) + bq_ref[...]
    qT_ref[0] = (q * scale).astype(jnp.bfloat16)                      # (C, TS)

    k = jnp.dot(wk_ref[...], h, preferred_element_type=jnp.float32) + bk_ref[...]
    # K is emitted token-major so the flash pass never transposes in its loop.
    k_ref[0] = jnp.transpose(k).astype(jnp.bfloat16)                  # (TS, C)

    v = jnp.dot(wv_ref[...], h, preferred_element_type=jnp.float32) + bv_ref[...]
    vT_ref[0] = v.astype(jnp.bfloat16)                                # (C, TS)


# ---------------------------------------------------------------------------
# Pass 2: flash attention (online softmax) + output projection + residual.
# Channels on sublanes, tokens on lanes: all matmuls are plain A @ B and the
# output is written directly in (B, C, HW) layout.
# ---------------------------------------------------------------------------
def _flash_attn_kernel(x_ref, qT_ref, k_ref, vT_ref, wp_ref, bp_ref, o_ref,
                       m_ref, l_ref, acc_ref, *, tkv, hw_valid, padded):
    kv = pl.program_id(2)

    @pl.when(kv == 0)
    def _():
        m_ref[...] = jnp.full_like(m_ref, -jnp.inf)
        l_ref[...] = jnp.zeros_like(l_ref)
        acc_ref[...] = jnp.zeros_like(acc_ref)

    qT = qT_ref[0]                                 # (C, TQ)  bf16, pre-scaled
    k = k_ref[0]                                   # (TKV, C) bf16
    vT = vT_ref[0]                                 # (C, TKV) bf16

    # scoresT[s, t] = <k_s, q_t>   (1/sqrt(C) already folded into q in pass 1)
    s = jnp.dot(k, qT, preferred_element_type=jnp.float32)           # (TKV, TQ)
    if padded:  # static branch: only traced when the token axis was padded
        kv_pos = kv * tkv + lax.broadcasted_iota(jnp.int32, (s.shape[0], 1), 0)
        s = jnp.where(kv_pos < hw_valid, s, -jnp.inf)

    m_prev = m_ref[...]                                               # (1, TQ)
    m_new = jnp.maximum(m_prev, jnp.max(s, axis=0, keepdims=True))
    alpha = jnp.exp(m_prev - m_new)                                   # (1, TQ)
    p = jnp.exp(s - m_new)                                            # (TKV, TQ)
    l_ref[...] = alpha * l_ref[...] + jnp.sum(p, axis=0, keepdims=True)
    acc_ref[...] = alpha * acc_ref[...] + jnp.dot(
        vT, p.astype(jnp.bfloat16), preferred_element_type=jnp.float32)
    m_ref[...] = m_new

    @pl.when(kv == pl.num_programs(2) - 1)
    def _():
        attn_T = acc_ref[...] * pl.reciprocal(l_ref[...], approx=False)  # (C, TQ)
        proj = jnp.dot(wp_ref[...], attn_T.astype(jnp.bfloat16),
                       preferred_element_type=jnp.float32)               # (C, TQ)
        o_ref[0] = x_ref[0] + proj + bp_ref[...]


@jax.jit
def attn_block_pallas(x_nchw, params):
    """x_nchw: (B, C, H, W) float32.  Returns (B, C, H, W) float32."""
    B, C, H, W = x_nchw.shape
    assert C % NUM_GROUPS == 0, "GroupNorm(32, C) requires C % 32 == 0"
    HW = H * W
    Cg = C // NUM_GROUPS

    # Channel-major token layout is just a reshape of NCHW (no HBM transpose).
    x_cs = x_nchw.reshape(B, C, HW)

    # Pad the token axis to a multiple of 256 when HW has awkward factors so
    # every pass gets aligned >=128 tiles instead of one full-extent tile.
    if HW % 128 != 0 and HW > 128:
        HW_pad = ((HW + 255) // 256) * 256
    else:
        HW_pad = HW
    padded = HW_pad != HW
    if padded:
        x_cs = jnp.pad(x_cs, ((0, 0), (0, 0), (0, HW_pad - HW)))

    TS, TQ, TKV, vmem_limit = _tiling_config(B, C, HW_pad)

    # 1x1-conv weights stay in their native (C_out, C_in) layout.
    wq = params["wq"].astype(jnp.bfloat16)
    wk = params["wk"].astype(jnp.bfloat16)
    wv = params["wv"].astype(jnp.bfloat16)
    wp = params["wp"].astype(jnp.bfloat16)
    bq = params["bq"].reshape(C, 1)
    bk = params["bk"].reshape(C, 1)
    bv = params["bv"].reshape(C, 1)
    bp = params["bp"].reshape(C, 1)
    gamma = params["gamma"].reshape(C, 1)
    beta = params["beta"].reshape(C, 1)

    # ---- pass 0: GroupNorm statistics --------------------------------------
    # TODO(synk): on 2-TensorCore parts with B==1 this pass could also split
    # the HW reduction across cores (a few % end-to-end); not done here.
    L = 128 if TS % 128 == 0 else TS
    sums, sqsums = pl.pallas_call(
        _gn_stats_kernel,
        out_shape=(jax.ShapeDtypeStruct((B, C, L), jnp.float32),
                   jax.ShapeDtypeStruct((B, C, L), jnp.float32)),
        grid=(B, HW_pad // TS),
        in_specs=[pl.BlockSpec((1, C, TS), lambda b, t: (b, 0, t))],
        out_specs=(pl.BlockSpec((1, C, L), lambda b, t: (b, 0, 0)),
                   pl.BlockSpec((1, C, L), lambda b, t: (b, 0, 0))),
        compiler_params=pltpu.CompilerParams(
            dimension_semantics=("parallel", "arbitrary"),
            vmem_limit_bytes=vmem_limit),
    )(x_cs)

    # Group aggregation of the tiny stats in plain JAX.  Padded tokens are
    # zero-filled so they contribute nothing; divide by the TRUE token count.
    s_g = sums.sum(axis=-1).reshape(B, NUM_GROUPS, Cg).sum(axis=-1)
    ss_g = sqsums.sum(axis=-1).reshape(B, NUM_GROUPS, Cg).sum(axis=-1)
    n = float(HW * Cg)
    mean_g = s_g / n
    var_g = ss_g / n - mean_g * mean_g      # biased variance (PyTorch GN);
                                            # eps = 1.0 masks f32 cancellation
    inv_g = lax.rsqrt(var_g + GN_EPS)
    mean_c = jnp.repeat(mean_g, Cg, axis=1).reshape(B, C, 1)
    inv_c = jnp.repeat(inv_g, Cg, axis=1).reshape(B, C, 1)

    # ---- pass 1: normalize + Q/K/V projection -------------------------------
    qT, k_tok, vT = pl.pallas_call(
        _proj_kernel,
        out_shape=(jax.ShapeDtypeStruct((B, C, HW_pad), jnp.bfloat16),   # qT
                   jax.ShapeDtypeStruct((B, HW_pad, C), jnp.bfloat16),   # k
                   jax.ShapeDtypeStruct((B, C, HW_pad), jnp.bfloat16)),  # vT
        grid=(B, HW_pad // TS),
        in_specs=[pl.BlockSpec((1, C, TS), lambda b, t: (b, 0, t)),   # x
                  pl.BlockSpec((1, C, 1), lambda b, t: (b, 0, 0)),    # mean
                  pl.BlockSpec((1, C, 1), lambda b, t: (b, 0, 0)),    # inv std
                  pl.BlockSpec((C, 1), lambda b, t: (0, 0)),          # gamma
                  pl.BlockSpec((C, 1), lambda b, t: (0, 0)),          # beta
                  pl.BlockSpec((C, C), lambda b, t: (0, 0)),          # wq
                  pl.BlockSpec((C, C), lambda b, t: (0, 0)),          # wk
                  pl.BlockSpec((C, C), lambda b, t: (0, 0)),          # wv
                  pl.BlockSpec((C, 1), lambda b, t: (0, 0)),          # bq
                  pl.BlockSpec((C, 1), lambda b, t: (0, 0)),          # bk
                  pl.BlockSpec((C, 1), lambda b, t: (0, 0))],         # bv
        out_specs=(pl.BlockSpec((1, C, TS), lambda b, t: (b, 0, t)),
                   pl.BlockSpec((1, TS, C), lambda b, t: (b, t, 0)),
                   pl.BlockSpec((1, C, TS), lambda b, t: (b, 0, t))),
        compiler_params=pltpu.CompilerParams(
            dimension_semantics=("parallel", "parallel"),
            vmem_limit_bytes=vmem_limit),
    )(x_cs, mean_c, inv_c, gamma, beta, wq, wk, wv, bq, bk, bv)

    # ---- pass 2: flash attention + proj_out + residual ---------------------
    flash = functools.partial(_flash_attn_kernel,
                              tkv=TKV, hw_valid=HW, padded=padded)
    o_cs = pl.pallas_call(
        flash,
        out_shape=jax.ShapeDtypeStruct((B, C, HW_pad), jnp.float32),
        grid=(B, HW_pad // TQ, HW_pad // TKV),
        in_specs=[pl.BlockSpec((1, C, TQ), lambda b, q, kv: (b, 0, q)),    # x (residual)
                  pl.BlockSpec((1, C, TQ), lambda b, q, kv: (b, 0, q)),    # qT
                  pl.BlockSpec((1, TKV, C), lambda b, q, kv: (b, kv, 0)),  # k
                  pl.BlockSpec((1, C, TKV), lambda b, q, kv: (b, 0, kv)),  # vT
                  pl.BlockSpec((C, C), lambda b, q, kv: (0, 0)),           # wp
                  pl.BlockSpec((C, 1), lambda b, q, kv: (0, 0))],          # bp
        out_specs=pl.BlockSpec((1, C, TQ), lambda b, q, kv: (b, 0, q)),
        scratch_shapes=[pltpu.VMEM((1, TQ), jnp.float32),    # running max
                        pltpu.VMEM((1, TQ), jnp.float32),    # running denom
                        pltpu.VMEM((C, TQ), jnp.float32)],   # accumulator
        compiler_params=pltpu.CompilerParams(
            dimension_semantics=("parallel", "parallel", "arbitrary"),
            vmem_limit_bytes=vmem_limit),
    )(x_cs, qT, k_tok, vT, wp, bp)

    if padded:
        o_cs = o_cs[:, :, :HW]
    return o_cs.reshape(B, C, H, W)


def attn_block_reference(x, params):
    """Pure-JAX f32 reference matching the PyTorch forward exactly."""
    B, C, H, W = x.shape
    xg = x.reshape(B, NUM_GROUPS, -1)
    mean = xg.mean(axis=-1, keepdims=True)
    var = xg.var(axis=-1, keepdims=True)
    hn = ((xg - mean) / jnp.sqrt(var + GN_EPS)).reshape(B, C, H, W)
    hn = hn * params["gamma"][None, :, None, None] + params["beta"][None, :, None, None]

    def conv1x1(t, w, b):
        return jnp.einsum("bchw,oc->bohw", t, w) + b[None, :, None, None]

    q = conv1x1(hn, params["wq"], params["bq"])
    k = conv1x1(hn, params["wk"], params["bk"])
    v = conv1x1(hn, params["wv"], params["bv"])
    q, k, v = [t.reshape(B, C, H * W).transpose(0, 2, 1) for t in (q, k, v)]
    s = jnp.einsum("bqc,bkc->bqk", q, k) / jnp.sqrt(jnp.float32(C))
    p = jax.nn.softmax(s, axis=-1)
    a = jnp.einsum("bqk,bkc->bqc", p, v).transpose(0, 2, 1).reshape(B, C, H, W)
    return x + conv1x1(a, params["wp"], params["bp"])


def make_params(key, C):
    keys = jax.random.split(key, 10)
    scale = 0.1
    return {
        "gamma": 1.0 + scale * jax.random.normal(keys[0], (C,), jnp.float32),
        "beta": scale * jax.random.normal(keys[1], (C,), jnp.float32),
        "wq": scale * jax.random.normal(keys[2], (C, C), jnp.float32),
        "bq": scale * jax.random.normal(keys[3], (C,), jnp.float32),
        "wk": scale * jax.random.normal(keys[4], (C, C), jnp.float32),
        "bk": scale * jax.random.normal(keys[5], (C,), jnp.float32),
        "wv": scale * jax.random.normal(keys[6], (C, C), jnp.float32),
        "bv": scale * jax.random.normal(keys[7], (C,), jnp.float32),
        "wp": scale * jax.random.normal(keys[8], (C, C), jnp.float32),
        "bp": scale * jax.random.normal(keys[9], (C,), jnp.float32),
    }


if __name__ == "__main__":
    key = jax.random.PRNGKey(0)

    # GroupNorm(32, C) requires C % 32 == 0 -> smallest interesting C is 64.
    test_shapes = [
        (2, 64, 8, 8),     # single-tile path (HW = 64, all blocks full-extent)
        (1, 64, 64, 32),   # multi-tile path: HW = 2048 -> exercises the online
                           # softmax across several q / kv tiles
        (1, 64, 12, 12),   # HW = 144 -> exercises the pad-to-256 + mask path
    ]
    for (B, C, H, W) in test_shapes:
        kx, kp, key = jax.random.split(key, 3)
        x = jax.random.normal(kx, (B, C, H, W), jnp.float32)
        params = make_params(kp, C)

        out = jax.block_until_ready(attn_block_pallas(x, params))
        ref = jax.block_until_ready(attn_block_reference(x, params))

        assert out.shape == (B, C, H, W)
        # q/k/v/p and the weights go through bf16 on the MXU (f32 accumulate),
        # so compare against the f32 reference with bf16-appropriate slack.
        max_err = float(jnp.max(jnp.abs(out - ref)))
        rel_l2 = float(jnp.linalg.norm(out - ref) / jnp.linalg.norm(ref))
        assert rel_l2 < 2e-2, (max_err, rel_l2)
        assert jnp.allclose(out, ref, rtol=1e-1, atol=1e-1), (max_err, rel_l2)

    print("KERNEL_OK")
</pallas_src>

<mosaic_0001>
module attributes {stable_mosaic.version = 11 : i64} {
  func.func @_gn_stats_kernel(%arg0: i32, %arg1: i32, %arg2: memref<1x64x64xf32, #tpu.memory_space<vmem>>, %arg3: memref<1x64x64xf32, #tpu.memory_space<vmem>>, %arg4: memref<1x64x64xf32, #tpu.memory_space<vmem>>) attributes {dimension_semantics = [#tpu.dimension_semantics<parallel>, #tpu.dimension_semantics<arbitrary>], iteration_bounds = array<i64: 2, 1>, scalar_prefetch = 0 : i64, scratch_operands = 0 : i64, tpu.core_type = #tpu.core_type<tc>, window_params = [{transform_indices = @transform_0, window_bounds = array<i64: 1, 64, 64>}, {transform_indices = @transform_1, window_bounds = array<i64: 1, 64, 64>}, {transform_indices = @transform_2, window_bounds = array<i64: 1, 64, 64>}]} {
    %c0 = arith.constant 0 : index
    %c0_0 = arith.constant 0 : index
    %c0_1 = arith.constant 0 : index
    %0 = vector.load %arg2[%c0, %c0_0, %c0_1] : memref<1x64x64xf32, #tpu.memory_space<vmem>>, vector<1x64x64xf32>
    %1 = vector.shape_cast %0 : vector<1x64x64xf32> to vector<64x64xf32>
    %c0_i32 = arith.constant 0 : i32
    %2 = arith.cmpi eq, %arg1, %c0_i32 : i32
    %3 = arith.extui %2 : i1 to i32
    %c0_i32_2 = arith.constant 0 : i32
    %4 = arith.cmpi ne, %3, %c0_i32_2 : i32
    scf.if %4 {
      %cst = arith.constant 0.000000e+00 : f32
      %18 = vector.broadcast %cst : f32 to vector<1x64x64xf32>
      %c0_15 = arith.constant 0 : index
      %c0_16 = arith.constant 0 : index
      %c0_17 = arith.constant 0 : index
      %19 = vector.load %arg3[%c0_15, %c0_16, %c0_17] : memref<1x64x64xf32, #tpu.memory_space<vmem>>, vector<1x64x64xf32>
      tpu.vector_store %arg3[%c0_15, %c0_16, %c0_17], %18 {strides = array<i32>} : memref<1x64x64xf32, #tpu.memory_space<vmem>>, vector<1x64x64xf32>,
      %cst_18 = arith.constant 0.000000e+00 : f32
      %20 = vector.broadcast %cst_18 : f32 to vector<1x64x64xf32>
      %c0_19 = arith.constant 0 : index
      %c0_20 = arith.constant 0 : index
      %c0_21 = arith.constant 0 : index
      %21 = vector.load %arg4[%c0_19, %c0_20, %c0_21] : memref<1x64x64xf32, #tpu.memory_space<vmem>>, vector<1x64x64xf32>
      tpu.vector_store %arg4[%c0_19, %c0_20, %c0_21], %20 {strides = array<i32>} : memref<1x64x64xf32, #tpu.memory_space<vmem>>, vector<1x64x64xf32>,
    } else {
    }
    %5 = arith.mulf %1, %1 : vector<64x64xf32>
    %c0_3 = arith.constant 0 : index
    %c0_4 = arith.constant 0 : index
    %c0_5 = arith.constant 0 : index
    %6 = vector.load %arg3[%c0_3, %c0_4, %c0_5] : memref<1x64x64xf32, #tpu.memory_space<vmem>>, vector<1x64x64xf32>
    %7 = vector.shape_cast %6 : vector<1x64x64xf32> to vector<64x64xf32>
    %8 = arith.addf %7, %1 : vector<64x64xf32>
    %c0_6 = arith.constant 0 : index
    %c0_7 = arith.constant 0 : index
    %c0_8 = arith.constant 0 : index
    %9 = vector.load %arg3[%c0_6, %c0_7, %c0_8] : memref<1x64x64xf32, #tpu.memory_space<vmem>>, vector<1x64x64xf32>
    %10 = vector.shape_cast %9 : vector<1x64x64xf32> to vector<64x64xf32>
    %11 = vector.shape_cast %8 : vector<64x64xf32> to vector<1x64x64xf32>
    tpu.vector_store %arg3[%c0_6, %c0_7, %c0_8], %11 {strides = array<i32>} : memref<1x64x64xf32, #tpu.memory_space<vmem>>, vector<1x64x64xf32>,
    %c0_9 = arith.constant 0 : index
    %c0_10 = arith.constant 0 : index
    %c0_11 = arith.constant 0 : index
    %12 = vector.load %arg4[%c0_9, %c0_10, %c0_11] : memref<1x64x64xf32, #tpu.memory_space<vmem>>, vector<1x64x64xf32>
    %13 = vector.shape_cast %12 : vector<1x64x64xf32> to vector<64x64xf32>
    %14 = arith.addf %13, %5 : vector<64x64xf32>
    %c0_12 = arith.constant 0 : index
    %c0_13 = arith.constant 0 : index
    %c0_14 = arith.constant 0 : index
    %15 = vector.load %arg4[%c0_12, %c0_13, %c0_14] : memref<1x64x64xf32, #tpu.memory_space<vmem>>, vector<1x64x64xf32>
    %16 = vector.shape_cast %15 : vector<1x64x64xf32> to vector<64x64xf32>
    %17 = vector.shape_cast %14 : vector<64x64xf32> to vector<1x64x64xf32>
    tpu.vector_store %arg4[%c0_12, %c0_13, %c0_14], %17 {strides = array<i32>} : memref<1x64x64xf32, #tpu.memory_space<vmem>>, vector<1x64x64xf32>,
    return
  }
  func.func @transform_0(%arg0: i32, %arg1: i32) -> (i32, i32, i32) {
    %c0_i32 = arith.constant 0 : i32
    %c0_i32_0 = arith.constant 0 : i32
    return %arg0, %c0_i32, %arg1 : i32, i32, i32
  }
  func.func @transform_1(%arg0: i32, %arg1: i32) -> (i32, i32, i32) {
    %c0_i32 = arith.constant 0 : i32
    %c0_i32_0 = arith.constant 0 : i32
    %c0_i32_1 = arith.constant 0 : i32
    return %arg0, %c0_i32, %c0_i32_0 : i32, i32, i32
  }
  func.func @transform_2(%arg0: i32, %arg1: i32) -> (i32, i32, i32) {
    %c0_i32 = arith.constant 0 : i32
    %c0_i32_0 = arith.constant 0 : i32
    %c0_i32_1 = arith.constant 0 : i32
    return %arg0, %c0_i32, %c0_i32_0 : i32, i32, i32
  }
}

module attributes {stable_mosaic.version = 11 : i64} {
  func.func @_flash_attn_kernel(%arg0: i32, %arg1: i32, %arg2: i32, %arg3: memref<1x64x64xf32, #tpu.memory_space<vmem>>, %arg4: memref<1x64x64xbf16, #tpu.memory_space<vmem>>, %arg5: memref<1x64x64xbf16, #tpu.memory_space<vmem>>, %arg6: memref<1x64x64xbf16, #tpu.memory_space<vmem>>, %arg7: memref<64x64xbf16, #tpu.memory_space<vmem>>, %arg8: memref<64x1xf32, #tpu.memory_space<vmem>>, %arg9: memref<1x64x64xf32, #tpu.memory_space<vmem>>, %arg10: memref<1x64xf32, #tpu.memory_space<vmem>>, %arg11: memref<1x64xf32, #tpu.memory_space<vmem>>, %arg12: memref<64x64xf32, #tpu.memory_space<vmem>>) attributes {dimension_semantics = [#tpu.dimension_semantics<parallel>, #tpu.dimension_semantics<parallel>, #tpu.dimension_semantics<arbitrary>], iteration_bounds = array<i64: 2, 1, 1>, scalar_prefetch = 0 : i64, scratch_operands = 3 : i64, tpu.core_type = #tpu.core_type<tc>, window_params = [{transform_indices = @transform_0, window_bounds = array<i64: 1, 64, 64>}, {transform_indices = @transform_1, window_bounds = array<i64: 1, 64, 64>}, {transform_indices = @transform_2, window_bounds = array<i64: 1, 64, 64>}, {transform_indices = @transform_3, window_bounds = array<i64: 1, 64, 64>}, {pipeline_mode = #tpu.pipeline_mode<synchronous>, transform_indices = @transform_4, window_bounds = array<i64: 64, 64>}, {pipeline_mode = #tpu.pipeline_mode<synchronous>, transform_indices = @transform_5, window_bounds = array<i64: 64, 1>}, {transform_indices = @transform_6, window_bounds = array<i64: 1, 64, 64>}]} {
    %c0_i32 = arith.constant 0 : i32
    %0 = arith.cmpi eq, %arg2, %c0_i32 : i32
    %1 = arith.extui %0 : i1 to i32
    %c0_i32_0 = arith.constant 0 : i32
    %2 = arith.cmpi ne, %1, %c0_i32_0 : i32
    scf.if %2 {
      %cst_26 = arith.constant 0xFF800000 : f32
      %36 = vector.broadcast %cst_26 : f32 to vector<1x64xf32>
      %c0_27 = arith.constant 0 : index
      %c0_28 = arith.constant 0 : index
      %37 = vector.load %arg10[%c0_27, %c0_28] : memref<1x64xf32, #tpu.memory_space<vmem>>, vector<1x64xf32>
      tpu.vector_store %arg10[%c0_27, %c0_28], %36 {strides = array<i32>} : memref<1x64xf32, #tpu.memory_space<vmem>>, vector<1x64xf32>,
      %cst_29 = arith.constant 0.000000e+00 : f32
      %38 = vector.broadcast %cst_29 : f32 to vector<1x64xf32>
      %c0_30 = arith.constant 0 : index
      %c0_31 = arith.constant 0 : index
      %39 = vector.load %arg11[%c0_30, %c0_31] : memref<1x64xf32, #tpu.memory_space<vmem>>, vector<1x64xf32>
      tpu.vector_store %arg11[%c0_30, %c0_31], %38 {strides = array<i32>} : memref<1x64xf32, #tpu.memory_space<vmem>>, vector<1x64xf32>,
      %cst_32 = arith.constant 0.000000e+00 : f32
      %40 = vector.broadcast %cst_32 : f32 to vector<64x64xf32>
      %c0_33 = arith.constant 0 : index
      %c0_34 = arith.constant 0 : index
      %41 = vector.load %arg12[%c0_33, %c0_34] : memref<64x64xf32, #tpu.memory_space<vmem>>, vector<64x64xf32>
      tpu.vector_store %arg12[%c0_33, %c0_34], %40 {strides = array<i32>} : memref<64x64xf32, #tpu.memory_space<vmem>>, vector<64x64xf32>,
    } else {
    }
    %c0 = arith.constant 0 : index
    %c0_1 = arith.constant 0 : index
    %c0_2 = arith.constant 0 : index
    %3 = vector.load %arg4[%c0, %c0_1, %c0_2] : memref<1x64x64xbf16, #tpu.memory_space<vmem>>, vector<1x64x64xbf16>
    %4 = vector.shape_cast %3 : vector<1x64x64xbf16> to vector<64x64xbf16>
    %c0_3 = arith.constant 0 : index
    %c0_4 = arith.constant 0 : index
    %c0_5 = arith.constant 0 : index
    %5 = vector.load %arg5[%c0_3, %c0_4, %c0_5] : memref<1x64x64xbf16, #tpu.memory_space<vmem>>, vector<1x64x64xbf16>
    %6 = vector.shape_cast %5 : vector<1x64x64xbf16> to vector<64x64xbf16>
    %c0_6 = arith.constant 0 : index
    %c0_7 = arith.constant 0 : index
    %c0_8 = arith.constant 0 : index
    %7 = vector.load %arg6[%c0_6, %c0_7, %c0_8] : memref<1x64x64xbf16, #tpu.memory_space<vmem>>, vector<1x64x64xbf16>
    %8 = vector.shape_cast %7 : vector<1x64x64xbf16> to vector<64x64xbf16>
    %cst = arith.constant dense<0.000000e+00> : vector<64x64xf32>
    %9 = tpu.matmul %6, %4, %cst {dimension_numbers = #tpu.dot_dimension_numbers<[1], [0], [0], [1], [0, 0, 1, 1], [], []>} : vector<64x64xbf16>, vector<64x64xbf16>, vector<64x64xf32> -> vector<64x64xf32>
    %c0_9 = arith.constant 0 : index
    %c0_10 = arith.constant 0 : index
    %10 = vector.load %arg10[%c0_9, %c0_10] : memref<1x64xf32, #tpu.memory_space<vmem>>, vector<1x64xf32>
    %cst_11 = arith.constant dense<0xFF800000> : vector<64xf32>
    %11 = vector.multi_reduction <maximumf>, %9, %cst_11 [0] : vector<64x64xf32> to vector<64xf32>
    %12 = vector.shape_cast %11 : vector<64xf32> to vector<1x64xf32>
    %13 = arith.maximumf %10, %12 : vector<1x64xf32>
    %14 = arith.subf %10, %13 : vector<1x64xf32>
    %15 = math.exp %14 : vector<1x64xf32>
    %16 = vector.broadcast %13 : vector<1x64xf32> to vector<64x64xf32>
    %17 = arith.subf %9, %16 : vector<64x64xf32>
    %18 = math.exp %17 : vector<64x64xf32>
    %c0_12 = arith.constant 0 : index
    %c0_13 = arith.constant 0 : index
    %19 = vector.load %arg11[%c0_12, %c0_13] : memref<1x64xf32, #tpu.memory_space<vmem>>, vector<1x64xf32>
    %20 = arith.mulf %15, %19 : vector<1x64xf32>
    %cst_14 = arith.constant dense<0.000000e+00> : vector<64xf32>
    %21 = vector.multi_reduction <add>, %18, %cst_14 [0] : vector<64x64xf32> to vector<64xf32>
    %22 = vector.shape_cast %21 : vector<64xf32> to vector<1x64xf32>
    %23 = arith.addf %20, %22 : vector<1x64xf32>
    %c0_15 = arith.constant 0 : index
    %c0_16 = arith.constant 0 : index
    %24 = vector.load %arg11[%c0_15, %c0_16] : memref<1x64xf32, #tpu.memory_space<vmem>>, vector<1x64xf32>
    tpu.vector_store %arg11[%c0_15, %c0_16], %23 {strides = array<i32>} : memref<1x64xf32, #tpu.memory_space<vmem>>, vector<1x64xf32>,
    %c0_17 = arith.constant 0 : index
    %c0_18 = arith.constant 0 : index
    %25 = vector.load %arg12[%c0_17, %c0_18] : memref<64x64xf32, #tpu.memory_space<vmem>>, vector<64x64xf32>
    %26 = vector.broadcast %15 : vector<1x64xf32> to vector<64x64xf32>
    %27 = arith.mulf %26, %25 : vector<64x64xf32>
    %28 = arith.truncf %18 : vector<64x64xf32> to vector<64x64xbf16>
    %cst_19 = arith.constant dense<0.000000e+00> : vector<64x64xf32>
    %29 = tpu.matmul %8, %28, %cst_19 {dimension_numbers = #tpu.dot_dimension_numbers<[1], [0], [0], [1], [0, 0, 1, 1], [], []>} : vector<64x64xbf16>, vector<64x64xbf16>, vector<64x64xf32> -> vector<64x64xf32>
    %30 = arith.addf %27, %29 : vector<64x64xf32>
    %c0_20 = arith.constant 0 : index
    %c0_21 = arith.constant 0 : index
    %31 = vector.load %arg12[%c0_20, %c0_21] : memref<64x64xf32, #tpu.memory_space<vmem>>, vector<64x64xf32>
    tpu.vector_store %arg12[%c0_20, %c0_21], %30 {strides = array<i32>} : memref<64x64xf32, #tpu.memory_space<vmem>>, vector<64x64xf32>,
    %c0_22 = arith.constant 0 : index
    %c0_23 = arith.constant 0 : index
    %32 = vector.load %arg10[%c0_22, %c0_23] : memref<1x64xf32, #tpu.memory_space<vmem>>, vector<1x64xf32>
    tpu.vector_store %arg10[%c0_22, %c0_23], %13 {strides = array<i32>} : memref<1x64xf32, #tpu.memory_space<vmem>>, vector<1x64xf32>,
    %c0_i32_24 = arith.constant 0 : i32
    %33 = arith.cmpi eq, %arg2, %c0_i32_24 : i32
    %34 = arith.extui %33 : i1 to i32
    %c0_i32_25 = arith.constant 0 : i32
    %35 = arith.cmpi ne, %34, %c0_i32_25 : i32
    scf.if %35 {
      %c0_26 = arith.constant 0 : index
      %c0_27 = arith.constant 0 : index
      %36 = vector.load %arg12[%c0_26, %c0_27] : memref<64x64xf32, #tpu.memory_space<vmem>>, vector<64x64xf32>
      %c0_28 = arith.constant 0 : index
      %c0_29 = arith.constant 0 : index
      %37 = vector.load %arg11[%c0_28, %c0_29] : memref<1x64xf32, #tpu.memory_space<vmem>>, vector<1x64xf32>
      %38 = tpu.reciprocal %37 : vector<1x64xf32> -> vector<1x64xf32>
      %39 = vector.broadcast %38 : vector<1x64xf32> to vector<64x64xf32>
      %40 = arith.mulf %36, %39 : vector<64x64xf32>
      %c0_30 = arith.constant 0 : index
      %c0_31 = arith.constant 0 : index
      %41 = vector.load %arg7[%c0_30, %c0_31] : memref<64x64xbf16, #tpu.memory_space<vmem>>, vector<64x64xbf16>
      %42 = arith.truncf %40 : vector<64x64xf32> to vector<64x64xbf16>
      %cst_32 = arith.constant dense<0.000000e+00> : vector<64x64xf32>
      %43 = tpu.matmul %41, %42, %cst_32 {dimension_numbers = #tpu.dot_dimension_numbers<[1], [0], [0], [1], [0, 0, 1, 1], [], []>} : vector<64x64xbf16>, vector<64x64xbf16>, vector<64x64xf32> -> vector<64x64xf32>
      %c0_33 = arith.constant 0 : index
      %c0_34 = arith.constant 0 : index
      %c0_35 = arith.constant 0 : index
      %44 = vector.load %arg3[%c0_33, %c0_34, %c0_35] : memref<1x64x64xf32, #tpu.memory_space<vmem>>, vector<1x64x64xf32>
      %45 = vector.shape_cast %44 : vector<1x64x64xf32> to vector<64x64xf32>
      %46 = arith.addf %45, %43 : vector<64x64xf32>
      %c0_36 = arith.constant 0 : index
      %c0_37 = arith.constant 0 : index
      %47 = vector.load %arg8[%c0_36, %c0_37] : memref<64x1xf32, #tpu.memory_space<vmem>>, vector<64x1xf32>
      %48 = vector.broadcast %47 : vector<64x1xf32> to vector<64x64xf32>
      %49 = arith.addf %46, %48 : vector<64x64xf32>
      %c0_38 = arith.constant 0 : index
      %c0_39 = arith.constant 0 : index
      %c0_40 = arith.constant 0 : index
      %50 = vector.load %arg9[%c0_38, %c0_39, %c0_40] : memref<1x64x64xf32, #tpu.memory_space<vmem>>, vector<1x64x64xf32>
      %51 = vector.shape_cast %50 : vector<1x64x64xf32> to vector<64x64xf32>
      %52 = vector.shape_cast %49 : vector<64x64xf32> to vector<1x64x64xf32>
      tpu.vector_store %arg9[%c0_38, %c0_39, %c0_40], %52 {strides = array<i32>} : memref<1x64x64xf32, #tpu.memory_space<vmem>>, vector<1x64x64xf32>,
    } else {
    }
    return
  }
  func.func @transform_0(%arg0: i32, %arg1: i32, %arg2: i32) -> (i32, i32, i32) {
    %c0_i32 = arith.constant 0 : i32
    %c0_i32_0 = arith.constant 0 : i32
    return %arg0, %c0_i32, %arg1 : i32, i32, i32
  }
  func.func @transform_1(%arg0: i32, %arg1: i32, %arg2: i32) -> (i32, i32, i32) {
    %c0_i32 = arith.constant 0 : i32
    %c0_i32_0 = arith.constant 0 : i32
    return %arg0, %c0_i32, %arg1 : i32, i32, i32
  }
  func.func @transform_2(%arg0: i32, %arg1: i32, %arg2: i32) -> (i32, i32, i32) {
    %c0_i32 = arith.constant 0 : i32
    %c0_i32_0 = arith.constant 0 : i32
    return %arg0, %arg2, %c0_i32 : i32, i32, i32
  }
  func.func @transform_3(%arg0: i32, %arg1: i32, %arg2: i32) -> (i32, i32, i32) {
    %c0_i32 = arith.constant 0 : i32
    %c0_i32_0 = arith.constant 0 : i32
    return %arg0, %c0_i32, %arg2 : i32, i32, i32
  }
  func.func @transform_4(%arg0: i32, %arg1: i32, %arg2: i32) -> (i32, i32) {
    %c0_i32 = arith.constant 0 : i32
    %c0_i32_0 = arith.constant 0 : i32
    %c0_i32_1 = arith.constant 0 : i32
    return %c0_i32, %c0_i32_0 : i32, i32
  }
  func.func @transform_5(%arg0: i32, %arg1: i32, %arg2: i32) -> (i32, i32) {
    %c0_i32 = arith.constant 0 : i32
    %c0_i32_0 = arith.constant 0 : i32
    %c0_i32_1 = arith.constant 0 : i32
    return %c0_i32, %c0_i32_0 : i32, i32
  }
  func.func @transform_6(%arg0: i32, %arg1: i32, %arg2: i32) -> (i32, i32, i32) {
    %c0_i32 = arith.constant 0 : i32
    %c0_i32_0 = arith.constant 0 : i32
    return %arg0, %c0_i32, %arg1 : i32, i32, i32
  }
}

module attributes {stable_mosaic.version = 11 : i64} {
  func.func @_proj_kernel(%arg0: i32, %arg1: i32, %arg2: memref<1x64x64xf32, #tpu.memory_space<vmem>>, %arg3: memref<1x64x1xf32, #tpu.memory_space<vmem>>, %arg4: memref<1x64x1xf32, #tpu.memory_space<vmem>>, %arg5: memref<64x1xf32, #tpu.memory_space<vmem>>, %arg6: memref<64x1xf32, #tpu.memory_space<vmem>>, %arg7: memref<64x64xbf16, #tpu.memory_space<vmem>>, %arg8: memref<64x64xbf16, #tpu.memory_space<vmem>>, %arg9: memref<64x64xbf16, #tpu.memory_space<vmem>>, %arg10: memref<64x1xf32, #tpu.memory_space<vmem>>, %arg11: memref<64x1xf32, #tpu.memory_space<vmem>>, %arg12: memref<64x1xf32, #tpu.memory_space<vmem>>, %arg13: memref<1x64x64xbf16, #tpu.memory_space<vmem>>, %arg14: memref<1x64x64xbf16, #tpu.memory_space<vmem>>, %arg15: memref<1x64x64xbf16, #tpu.memory_space<vmem>>) attributes {dimension_semantics = [#tpu.dimension_semantics<parallel>, #tpu.dimension_semantics<parallel>], iteration_bounds = array<i64: 2, 1>, scalar_prefetch = 0 : i64, scratch_operands = 0 : i64, tpu.core_type = #tpu.core_type<tc>, window_params = [{transform_indices = @transform_0, window_bounds = array<i64: 1, 64, 64>}, {transform_indices = @transform_1, window_bounds = array<i64: 1, 64, 1>}, {transform_indices = @transform_2, window_bounds = array<i64: 1, 64, 1>}, {pipeline_mode = #tpu.pipeline_mode<synchronous>, transform_indices = @transform_3, window_bounds = array<i64: 64, 1>}, {pipeline_mode = #tpu.pipeline_mode<synchronous>, transform_indices = @transform_4, window_bounds = array<i64: 64, 1>}, {pipeline_mode = #tpu.pipeline_mode<synchronous>, transform_indices = @transform_5, window_bounds = array<i64: 64, 64>}, {pipeline_mode = #tpu.pipeline_mode<synchronous>, transform_indices = @transform_6, window_bounds = array<i64: 64, 64>}, {pipeline_mode = #tpu.pipeline_mode<synchronous>, transform_indices = @transform_7, window_bounds = array<i64: 64, 64>}, {pipeline_mode = #tpu.pipeline_mode<synchronous>, transform_indices = @transform_8, window_bounds = array<i64: 64, 1>}, {pipeline_mode = #tpu.pipeline_mode<synchronous>, transform_indices = @transform_9, window_bounds = array<i64: 64, 1>}, {pipeline_mode = #tpu.pipeline_mode<synchronous>, transform_indices = @transform_10, window_bounds = array<i64: 64, 1>}, {transform_indices = @transform_11, window_bounds = array<i64: 1, 64, 64>}, {transform_indices = @transform_12, window_bounds = array<i64: 1, 64, 64>}, {transform_indices = @transform_13, window_bounds = array<i64: 1, 64, 64>}]} {
    %c0 = arith.constant 0 : index
    %c0_0 = arith.constant 0 : index
    %c0_1 = arith.constant 0 : index
    %0 = vector.load %arg2[%c0, %c0_0, %c0_1] : memref<1x64x64xf32, #tpu.memory_space<vmem>>, vector<1x64x64xf32>
    %1 = vector.shape_cast %0 : vector<1x64x64xf32> to vector<64x64xf32>
    %c0_2 = arith.constant 0 : index
    %c0_3 = arith.constant 0 : index
    %c0_4 = arith.constant 0 : index
    %2 = vector.load %arg3[%c0_2, %c0_3, %c0_4] : memref<1x64x1xf32, #tpu.memory_space<vmem>>, vector<1x64x1xf32>
    %3 = vector.shape_cast %2 : vector<1x64x1xf32> to vector<64x1xf32>
    %4 = vector.broadcast %3 : vector<64x1xf32> to vector<64x64xf32>
    %5 = arith.subf %1, %4 : vector<64x64xf32>
    %c0_5 = arith.constant 0 : index
    %c0_6 = arith.constant 0 : index
    %c0_7 = arith.constant 0 : index
    %6 = vector.load %arg4[%c0_5, %c0_6, %c0_7] : memref<1x64x1xf32, #tpu.memory_space<vmem>>, vector<1x64x1xf32>
    %7 = vector.shape_cast %6 : vector<1x64x1xf32> to vector<64x1xf32>
    %8 = vector.broadcast %7 : vector<64x1xf32> to vector<64x64xf32>
    %9 = arith.mulf %5, %8 : vector<64x64xf32>
    %c0_8 = arith.constant 0 : index
    %c0_9 = arith.constant 0 : index
    %10 = vector.load %arg5[%c0_8, %c0_9] : memref<64x1xf32, #tpu.memory_space<vmem>>, vector<64x1xf32>
    %11 = vector.broadcast %10 : vector<64x1xf32> to vector<64x64xf32>
    %12 = arith.mulf %9, %11 : vector<64x64xf32>
    %c0_10 = arith.constant 0 : index
    %c0_11 = arith.constant 0 : index
    %13 = vector.load %arg6[%c0_10, %c0_11] : memref<64x1xf32, #tpu.memory_space<vmem>>, vector<64x1xf32>
    %14 = vector.broadcast %13 : vector<64x1xf32> to vector<64x64xf32>
    %15 = arith.addf %12, %14 : vector<64x64xf32>
    %16 = arith.truncf %15 : vector<64x64xf32> to vector<64x64xbf16>
    %c0_12 = arith.constant 0 : index
    %c0_13 = arith.constant 0 : index
    %17 = vector.load %arg7[%c0_12, %c0_13] : memref<64x64xbf16, #tpu.memory_space<vmem>>, vector<64x64xbf16>
    %cst = arith.constant dense<0.000000e+00> : vector<64x64xf32>
    %18 = tpu.matmul %17, %16, %cst {dimension_numbers = #tpu.dot_dimension_numbers<[1], [0], [0], [1], [0, 0, 1, 1], [], []>} : vector<64x64xbf16>, vector<64x64xbf16>, vector<64x64xf32> -> vector<64x64xf32>
    %c0_14 = arith.constant 0 : index
    %c0_15 = arith.constant 0 : index
    %19 = vector.load %arg10[%c0_14, %c0_15] : memref<64x1xf32, #tpu.memory_space<vmem>>, vector<64x1xf32>
    %20 = vector.broadcast %19 : vector<64x1xf32> to vector<64x64xf32>
    %21 = arith.addf %18, %20 : vector<64x64xf32>
    %cst_16 = arith.constant 1.250000e-01 : f32
    %22 = vector.broadcast %cst_16 : f32 to vector<64x64xf32>
    %23 = arith.mulf %21, %22 : vector<64x64xf32>
    %24 = arith.truncf %23 : vector<64x64xf32> to vector<64x64xbf16>
    %c0_17 = arith.constant 0 : index
    %c0_18 = arith.constant 0 : index
    %c0_19 = arith.constant 0 : index
    %25 = vector.load %arg13[%c0_17, %c0_18, %c0_19] : memref<1x64x64xbf16, #tpu.memory_space<vmem>>, vector<1x64x64xbf16>
    %26 = vector.shape_cast %25 : vector<1x64x64xbf16> to vector<64x64xbf16>
    %27 = vector.shape_cast %24 : vector<64x64xbf16> to vector<1x64x64xbf16>
    tpu.vector_store %arg13[%c0_17, %c0_18, %c0_19], %27 {strides = array<i32>} : memref<1x64x64xbf16, #tpu.memory_space<vmem>>, vector<1x64x64xbf16>,
    %c0_20 = arith.constant 0 : index
    %c0_21 = arith.constant 0 : index
    %28 = vector.load %arg8[%c0_20, %c0_21] : memref<64x64xbf16, #tpu.memory_space<vmem>>, vector<64x64xbf16>
    %cst_22 = arith.constant dense<0.000000e+00> : vector<64x64xf32>
    %29 = tpu.matmul %28, %16, %cst_22 {dimension_numbers = #tpu.dot_dimension_numbers<[1], [0], [0], [1], [0, 0, 1, 1], [], []>} : vector<64x64xbf16>, vector<64x64xbf16>, vector<64x64xf32> -> vector<64x64xf32>
    %c0_23 = arith.constant 0 : index
    %c0_24 = arith.constant 0 : index
    %30 = vector.load %arg11[%c0_23, %c0_24] : memref<64x1xf32, #tpu.memory_space<vmem>>, vector<64x1xf32>
    %31 = vector.broadcast %30 : vector<64x1xf32> to vector<64x64xf32>
    %32 = arith.addf %29, %31 : vector<64x64xf32>
    %33 = tpu.transpose %32, [1, 0] : vector<64x64xf32> -> vector<64x64xf32>
    %34 = arith.truncf %33 : vector<64x64xf32> to vector<64x64xbf16>
    %c0_25 = arith.constant 0 : index
    %c0_26 = arith.constant 0 : index
    %c0_27 = arith.constant 0 : index
    %35 = vector.load %arg14[%c0_25, %c0_26, %c0_27] : memref<1x64x64xbf16, #tpu.memory_space<vmem>>, vector<1x64x64xbf16>
    %36 = vector.shape_cast %35 : vector<1x64x64xbf16> to vector<64x64xbf16>
    %37 = vector.shape_cast %34 : vector<64x64xbf16> to vector<1x64x64xbf16>
    tpu.vector_store %arg14[%c0_25, %c0_26, %c0_27], %37 {strides = array<i32>} : memref<1x64x64xbf16, #tpu.memory_space<vmem>>, vector<1x64x64xbf16>,
    %c0_28 = arith.constant 0 : index
    %c0_29 = arith.constant 0 : index
    %38 = vector.load %arg9[%c0_28, %c0_29] : memref<64x64xbf16, #tpu.memory_space<vmem>>, vector<64x64xbf16>
    %cst_30 = arith.constant dense<0.000000e+00> : vector<64x64xf32>
    %39 = tpu.matmul %38, %16, %cst_30 {dimension_numbers = #tpu.dot_dimension_numbers<[1], [0], [0], [1], [0, 0, 1, 1], [], []>} : vector<64x64xbf16>, vector<64x64xbf16>, vector<64x64xf32> -> vector<64x64xf32>
    %c0_31 = arith.constant 0 : index
    %c0_32 = arith.constant 0 : index
    %40 = vector.load %arg12[%c0_31, %c0_32] : memref<64x1xf32, #tpu.memory_space<vmem>>, vector<64x1xf32>
    %41 = vector.broadcast %40 : vector<64x1xf32> to vector<64x64xf32>
    %42 = arith.addf %39, %41 : vector<64x64xf32>
    %43 = arith.truncf %42 : vector<64x64xf32> to vector<64x64xbf16>
    %c0_33 = arith.constant 0 : index
    %c0_34 = arith.constant 0 : index
    %c0_35 = arith.constant 0 : index
    %44 = vector.load %arg15[%c0_33, %c0_34, %c0_35] : memref<1x64x64xbf16, #tpu.memory_space<vmem>>, vector<1x64x64xbf16>
    %45 = vector.shape_cast %44 : vector<1x64x64xbf16> to vector<64x64xbf16>
    %46 = vector.shape_cast %43 : vector<64x64xbf16> to vector<1x64x64xbf16>
    tpu.vector_store %arg15[%c0_33, %c0_34, %c0_35], %46 {strides = array<i32>} : memref<1x64x64xbf16, #tpu.memory_space<vmem>>, vector<1x64x64xbf16>,
    return
  }
  func.func @transform_0(%arg0: i32, %arg1: i32) -> (i32, i32, i32) {
    %c0_i32 = arith.constant 0 : i32
    %c0_i32_0 = arith.constant 0 : i32
    return %arg0, %c0_i32, %arg1 : i32, i32, i32
  }
  func.func @transform_1(%arg0: i32, %arg1: i32) -> (i32, i32, i32) {
    %c0_i32 = arith.constant 0 : i32
    %c0_i32_0 = arith.constant 0 : i32
    %c0_i32_1 = arith.constant 0 : i32
    return %arg0, %c0_i32, %c0_i32_0 : i32, i32, i32
  }
  func.func @transform_2(%arg0: i32, %arg1: i32) -> (i32, i32, i32) {
    %c0_i32 = arith.constant 0 : i32
    %c0_i32_0 = arith.constant 0 : i32
    %c0_i32_1 = arith.constant 0 : i32
    return %arg0, %c0_i32, %c0_i32_0 : i32, i32, i32
  }
  func.func @transform_3(%arg0: i32, %arg1: i32) -> (i32, i32) {
    %c0_i32 = arith.constant 0 : i32
    %c0_i32_0 = arith.constant 0 : i32
    %c0_i32_1 = arith.constant 0 : i32
    return %c0_i32, %c0_i32_0 : i32, i32
  }
  func.func @transform_4(%arg0: i32, %arg1: i32) -> (i32, i32) {
    %c0_i32 = arith.constant 0 : i32
    %c0_i32_0 = arith.constant 0 : i32
    %c0_i32_1 = arith.constant 0 : i32
    return %c0_i32, %c0_i32_0 : i32, i32
  }
  func.func @transform_5(%arg0: i32, %arg1: i32) -> (i32, i32) {
    %c0_i32 = arith.constant 0 : i32
    %c0_i32_0 = arith.constant 0 : i32
    %c0_i32_1 = arith.constant 0 : i32
    return %c0_i32, %c0_i32_0 : i32, i32
  }
  func.func @transform_6(%arg0: i32, %arg1: i32) -> (i32, i32) {
    %c0_i32 = arith.constant 0 : i32
    %c0_i32_0 = arith.constant 0 : i32
    %c0_i32_1 = arith.constant 0 : i32
    return %c0_i32, %c0_i32_0 : i32, i32
  }
  func.func @transform_7(%arg0: i32, %arg1: i32) -> (i32, i32) {
    %c0_i32 = arith.constant 0 : i32
    %c0_i32_0 = arith.constant 0 : i32
    %c0_i32_1 = arith.constant 0 : i32
    return %c0_i32, %c0_i32_0 : i32, i32
  }
  func.func @transform_8(%arg0: i32, %arg1: i32) -> (i32, i32) {
    %c0_i32 = arith.constant 0 : i32
    %c0_i32_0 = arith.constant 0 : i32
    %c0_i32_1 = arith.constant 0 : i32
    return %c0_i32, %c0_i32_0 : i32, i32
  }
  func.func @transform_9(%arg0: i32, %arg1: i32) -> (i32, i32) {
    %c0_i32 = arith.constant 0 : i32
    %c0_i32_0 = arith.constant 0 : i32
    %c0_i32_1 = arith.constant 0 : i32
    return %c0_i32, %c0_i32_0 : i32, i32
  }
  func.func @transform_10(%arg0: i32, %arg1: i32) -> (i32, i32) {
    %c0_i32 = arith.constant 0 : i32
    %c0_i32_0 = arith.constant 0 : i32
    %c0_i32_1 = arith.constant 0 : i32
    return %c0_i32, %c0_i32_0 : i32, i32
  }
  func.func @transform_11(%arg0: i32, %arg1: i32) -> (i32, i32, i32) {
    %c0_i32 = arith.constant 0 : i32
    %c0_i32_0 = arith.constant 0 : i32
    return %arg0, %c0_i32, %arg1 : i32, i32, i32
  }
  func.func @transform_12(%arg0: i32, %arg1: i32) -> (i32, i32, i32) {
    %c0_i32 = arith.constant 0 : i32
    %c0_i32_0 = arith.constant 0 : i32
    return %arg0, %arg1, %c0_i32 : i32, i32, i32
  }
  func.func @transform_13(%arg0: i32, %arg1: i32) -> (i32, i32, i32) {
    %c0_i32 = arith.constant 0 : i32
    %c0_i32_0 = arith.constant 0 : i32
    return %arg0, %c0_i32, %arg1 : i32, i32, i32
  }
}

</mosaic_0001>

<llo_original>
// kernel: attn_block_pallas.3
$region0: #{attn_block_pallas.3}
  #allocation0 [shape = 'u32[]', space=smem, size = 0x4, offset = 0x4, fixed_abs, tag = 'smem constant byte address 0x4 - core index']
  #allocation1 [shape = 'u32[144,128]{1,0:T(1,128)}', space=vmem, size = 0x12000, scoped, tag = 'internal scratch']
  %s0 = inlined_call_operand.vmem [shape: f32[2,64,64], index: 0, kind: input, shape index: {}]
  %s1 = inlined_call_operand.vmem [shape: f32[2,64,64], index: 1, kind: output, shape index: {0}]
  %s2 = inlined_call_operand.vmem [shape: f32[2,64,64], index: 2, kind: output, shape index: {1}]
  %3 = xla_tuple %s1, %s2
  %s4 = sld [smem:[#allocation0]]
  $region49: #{attn_block_pallas.3} parent=0
    _
  %s6 = ssub.s32 1, %s4
  %s7 = scalar_select 0, %s6, %s4
  loop: start=0, step=1, limit=4
  $region2: #{attn_block_pallas.3} parent=0 // loop_pre_header
    _
  $region3: #{attn_block_pallas.3} parent=0 // loop_header
    %s9 = sphi 0, %s13
    %p10 = scmp.ge.s32.totalorder %s9, 4
    %s16 = sphi 0, %s28
    %s17 = sphi 0, %s24
    %s18 = sphi 0, %s16
    %s19 = sphi 0, %s17
    %s20 = sphi 0, %s18
    %s21 = sphi 0, %s19
    %s33 = sphi 0, %s35
    %s36 = sphi 0, %s33
    %s37 = sphi 0, %s36
    %s53 = sphi 0, %s37
    %s59 = sphi 0, %s61
    %s62 = sphi 0, %s59
    %s63 = sphi 0, %s62
    %s79 = sphi 0, %s63
    %s85 = sphi 0, %s87
    %s88 = sphi 0, %s85
    %s89 = sphi 0, %s88
    %s105 = sphi 0, %s89
  $region4: #{attn_block_pallas.3} parent=0 // loop_header_branch
    %12 = sbr.rel (%p10) target = $region8
  $region5: #{attn_block_pallas.3} parent=0 // loop_body
    %s14 = ssub.s32 %s9, 1
    %s15 = ssub.s32 %s9, 2
    %s22 = sadd.s32 1, %s17
    %p23 = scmp.ge.s32.totalorder %s22, 1
    %s24 = scalar_select %p23, 0, %s22
    %s25 = sadd.s32 1, %s16
    %s26 = scalar_select %p23, %s25, %s16
    %p27 = scmp.ge.s32.totalorder %s26, 2
    %s28 = scalar_select %p27, 0, %s26
    %s29 = ssub.s32 %s16, %s28
    %s30 = ssub.s32 %s17, %s24
    %s31 = sor.u32 %s29, %s30
    %p32 = scmp.eq.s32.totalorder %s31, 0
    %s34 = sadd.s32 %s33, 1
    %s35 = scalar_select %p32, %s33, %s34
    %p38 = pneg %p32
    %p39 = scmp.eq.s32.totalorder %s9, 1
    %p40 = por %p38, %p39
    %p41 = scmp.ne.s32.totalorder %s33, %s36
    %p42 = scmp.eq.s32.totalorder %s9, 0
    %p43 = por %p41, %p42
    %p44 = scmp.ne.s32.totalorder %s33, %s36
    %p45 = scmp.eq.s32.totalorder %s14, 1
    %p46 = por %p44, %p45
    %p47 = scmp.ne.s32.totalorder %s36, %s37
    %p48 = scmp.eq.s32.totalorder %s14, 0
    %p49 = por %p47, %p48
    %p50 = scmp.ne.s32.totalorder %s36, %s37
    %p51 = scmp.eq.s32.totalorder %s15, 1
    %p52 = por %p50, %p51
    %p54 = scmp.ne.s32.totalorder %s37, %s53
    %p55 = scmp.eq.s32.totalorder %s15, 0
    %p56 = por %p54, %p55
    %s57 = ssub.s32 %s16, %s28
    %p58 = scmp.eq.s32.totalorder %s57, 0
    %s60 = sadd.s32 %s59, 1
    %s61 = scalar_select %p58, %s59, %s60
    %p64 = pneg %p58
    %p65 = scmp.eq.s32.totalorder %s9, 1
    %p66 = por %p64, %p65
    %p67 = scmp.ne.s32.totalorder %s59, %s62
    %p68 = scmp.eq.s32.totalorder %s9, 0
    %p69 = por %p67, %p68
    %p70 = scmp.ne.s32.totalorder %s59, %s62
    %p71 = scmp.eq.s32.totalorder %s14, 1
    %p72 = por %p70, %p71
    %p73 = scmp.ne.s32.totalorder %s62, %s63
    %p74 = scmp.eq.s32.totalorder %s14, 0
    %p75 = por %p73, %p74
    %p76 = scmp.ne.s32.totalorder %s62, %s63
    %p77 = scmp.eq.s32.totalorder %s15, 1
    %p78 = por %p76, %p77
    %p80 = scmp.ne.s32.totalorder %s63, %s79
    %p81 = scmp.eq.s32.totalorder %s15, 0
    %p82 = por %p80, %p81
    %s83 = ssub.s32 %s16, %s28
    %p84 = scmp.eq.s32.totalorder %s83, 0
    %s86 = sadd.s32 %s85, 1
    %s87 = scalar_select %p84, %s85, %s86
    %p90 = pneg %p84
    %p91 = scmp.eq.s32.totalorder %s9, 1
    %p92 = por %p90, %p91
    %p93 = scmp.ne.s32.totalorder %s85, %s88
    %p94 = scmp.eq.s32.totalorder %s9, 0
    %p95 = por %p93, %p94
    %p96 = scmp.ne.s32.totalorder %s85, %s88
    %p97 = scmp.eq.s32.totalorder %s14, 1
    %p98 = por %p96, %p97
    %p99 = scmp.ne.s32.totalorder %s88, %s89
    %p100 = scmp.eq.s32.totalorder %s14, 0
    %p101 = por %p99, %p100
    %p102 = scmp.ne.s32.totalorder %s88, %s89
    %p103 = scmp.eq.s32.totalorder %s15, 1
    %p104 = por %p102, %p103
    %p106 = scmp.ne.s32.totalorder %s89, %s105
    %p107 = scmp.eq.s32.totalorder %s15, 0
    %p108 = por %p106, %p107
    %p109 = scmp.le.s32.totalorder 1, %s9
    %p110 = scmp.lt.s32.totalorder %s9, 3
    %p111 = pnand %p109, %p110
    %p112 = pneg %p111
    // Predicated region
    $region9: #{attn_block_pallas.3} parent=5 // pred_check
      _
    $region10: #{attn_block_pallas.3} parent=5 // pred_check_branch
      %114 = sbr.rel (%p111) target = $region12
    $region11: #{attn_block_pallas.3} parent=5 // pred_region
      %s115 = ssub.s32 %s9, 1
    $region12: #{attn_block_pallas.3} parent=5 // pred_fallthru
      _
    %p116 = scmp.lt.s32.totalorder %s9, 2
    // Predicated region
    $region13: #{attn_block_pallas.3} parent=5 // pred_check
      %p117 = pneg %p116
    $region14: #{attn_block_pallas.3} parent=5 // pred_check_branch
      %119 = sbr.rel (%p117) target = $region16
    $region15: #{attn_block_pallas.3} parent=5 // pred_region
      // Predicated region
      $region17: #{attn_block_pallas.3} parent=15 // pred_check
        %p120 = pneg %p43
      $region18: #{attn_block_pallas.3} parent=15 // pred_check_branch
        %122 = sbr.rel (%p120) target = $region20
      $region19: #{attn_block_pallas.3} parent=15 // pred_region
        %p123 = scmp.lt.s32.totalorder %s16, 1
        %s124 = scalar_select %p123, %s16, 1
        %p125 = scmp.lt.s32.totalorder %s17, 0
        %s126 = scalar_select %p125, %s17, 0
        %s127 = smul.addr %s124, 8
        %s128 = sadd.s32 %s126, %s127
        %s129 = smul.addr %s128, 8
        %s130 = scalar_lea.vmem %s0, %s129
      $region20: #{attn_block_pallas.3} parent=15 // pred_fallthru
        _
    $region16: #{attn_block_pallas.3} parent=5 // pred_fallthru
      _
    %p131 = scmp.le.s32.totalorder 1, %s9
    %p132 = scmp.lt.s32.totalorder %s9, 3
    %p133 = pnand %p131, %p132
    %p134 = pneg %p133
    // Predicated region
    $region21: #{attn_block_pallas.3} parent=5 // pred_check
      _
    $region22: #{attn_block_pallas.3} parent=5 // pred_check_branch
      %136 = sbr.rel (%p133) target = $region24
    $region23: #{attn_block_pallas.3} parent=5 // pred_region
      %s137 = ssub.s32 %s9, 1
      %p138 = scmp.lt.s32.totalorder %s18, 1
      %s139 = scalar_select %p138, %s18, 1
      %p140 = scmp.lt.s32.totalorder %s19, 0
      %s141 = scalar_select %p140, %s19, 0
      %s142 = smul.addr %s139, 8
      %s143 = sadd.s32 %s141, %s142
      %s144 = smul.addr %s143, 8
      %s145 = scalar_lea.vmem %s0, %s144
      %p146 = pneg %p49
      %p147 = pneg %p46
      %p148 = pneg %p75
      %p149 = pneg %p72
      %p150 = scmp.lt.s32.totalorder %s18, 1
      %s151 = scalar_select %p150, %s18, 1
      %s152 = smul.addr %s151, 8
      %s153 = smul.addr %s152, 8
      %s154 = scalar_lea.vmem %s1, %s153
      %p155 = pneg %p101
      %p156 = pneg %p98
      %p157 = scmp.lt.s32.totalorder %s18, 1
      %s158 = scalar_select %p157, %s18, 1
      %s159 = smul.addr %s158, 8
      %s160 = smul.addr %s159, 8
      %s161 = scalar_lea.vmem %s2, %s160
      %p162 = scmp.lt.s32.totalorder %s18, 1
      %s163 = scalar_select %p162, %s18, 1
      %p164 = scmp.lt.s32.totalorder %s19, 0
      %s165 = scalar_select %p164, %s19, 0
      %s166 = smul.addr %s163, 8
      %s167 = sadd.s32 %s165, %s166
      %s168 = smul.addr %s167, 8
      %s169 = scalar_lea.vmem %s0, %s168
      %p170 = scmp.lt.s32.totalorder %s18, 1
      %s171 = scalar_select %p170, %s18, 1
      %s172 = smul.addr %s171, 8
      %s173 = smul.addr %s172, 8
      %s174 = scalar_lea.vmem %s1, %s173
      %p175 = scmp.lt.s32.totalorder %s18, 1
      %s176 = scalar_select %p175, %s18, 1
      %s177 = smul.addr %s176, 8
      %s178 = smul.addr %s177, 8
      %s179 = scalar_lea.vmem %s2, %s178
      %v180 = vld [vmem:[%s169] sm:$0xff]
      %v181 = vld [vmem:[%s169 + $0x8] sm:$0xff]
      %v182 = vld [vmem:[%s169 + $0x10] sm:$0xff]
      %v183 = vld [vmem:[%s169 + $0x18] sm:$0xff]
      %v184 = vld [vmem:[%s169 + $0x20] sm:$0xff]
      %v185 = vld [vmem:[%s169 + $0x28] sm:$0xff]
      %v186 = vld [vmem:[%s169 + $0x30] sm:$0xff]
      %v187 = vld [vmem:[%s169 + $0x38] sm:$0xff]
      %p188 = scmp.eq.s32.totalorder %s19, 0
      // Predicated region
      $region25: #{attn_block_pallas.3} parent=23 // pred_check
        %p189 = pneg %p188
      $region26: #{attn_block_pallas.3} parent=23 // pred_check_branch
        %191 = sbr.rel (%p189) target = $region28
      $region27: #{attn_block_pallas.3} parent=23 // pred_region
        %vm192 = vcmask 523264
        %193 = vst.msk [vmem:[%s174] sm:$0xff] %vm192, 0.0
        %194 = vst.msk [vmem:[%s174 + $0x8] sm:$0xff] %vm192, 0.0
        %195 = vst.msk [vmem:[%s174 + $0x10] sm:$0xff] %vm192, 0.0
        %196 = vst.msk [vmem:[%s174 + $0x18] sm:$0xff] %vm192, 0.0
        %197 = vst.msk [vmem:[%s174 + $0x20] sm:$0xff] %vm192, 0.0
        %198 = vst.msk [vmem:[%s174 + $0x28] sm:$0xff] %vm192, 0.0
        %199 = vst.msk [vmem:[%s174 + $0x30] sm:$0xff] %vm192, 0.0
        %200 = vst.msk [vmem:[%s174 + $0x38] sm:$0xff] %vm192, 0.0
        %201 = vst.msk [vmem:[%s179] sm:$0xff] %vm192, 0.0
        %202 = vst.msk [vmem:[%s179 + $0x8] sm:$0xff] %vm192, 0.0
        %203 = vst.msk [vmem:[%s179 + $0x10] sm:$0xff] %vm192, 0.0
        %204 = vst.msk [vmem:[%s179 + $0x18] sm:$0xff] %vm192, 0.0
        %205 = vst.msk [vmem:[%s179 + $0x20] sm:$0xff] %vm192, 0.0
        %206 = vst.msk [vmem:[%s179 + $0x28] sm:$0xff] %vm192, 0.0
        %207 = vst.msk [vmem:[%s179 + $0x30] sm:$0xff] %vm192, 0.0
        %208 = vst.msk [vmem:[%s179 + $0x38] sm:$0xff] %vm192, 0.0
      $region28: #{attn_block_pallas.3} parent=23 // pred_fallthru
        _
      %v209 = vmul.f32 %v180, %v180
      %v210 = vmul.f32 %v181, %v181
      %v211 = vmul.f32 %v182, %v182
      %v212 = vmul.f32 %v183, %v183
      %v213 = vmul.f32 %v184, %v184
      %v214 = vmul.f32 %v185, %v185
      %v215 = vmul.f32 %v186, %v186
      %v216 = vmul.f32 %v187, %v187
      %v217 = vld [vmem:[%s174] sm:$0xff]
      %v218 = vld [vmem:[%s174 + $0x8] sm:$0xff]
      %v219 = vld [vmem:[%s174 + $0x10] sm:$0xff]
      %v220 = vld [vmem:[%s174 + $0x18] sm:$0xff]
      %v221 = vld [vmem:[%s174 + $0x20] sm:$0xff]
      %v222 = vld [vmem:[%s174 + $0x28] sm:$0xff]
      %v223 = vld [vmem:[%s174 + $0x30] sm:$0xff]
      %v224 = vld [vmem:[%s174 + $0x38] sm:$0xff]
      %v225 = vadd.f32 %v217, %v180
      %v226 = vadd.f32 %v218, %v181
      %v227 = vadd.f32 %v219, %v182
      %v228 = vadd.f32 %v220, %v183
      %v229 = vadd.f32 %v221, %v184
      %v230 = vadd.f32 %v222, %v185
      %v231 = vadd.f32 %v223, %v186
      %v232 = vadd.f32 %v224, %v187
      %vm233 = vcmask 523264
      %234 = vst.msk [vmem:[%s174] sm:$0xff] %vm233, %v225
      %235 = vst.msk [vmem:[%s174 + $0x8] sm:$0xff] %vm233, %v226
      %236 = vst.msk [vmem:[%s174 + $0x10] sm:$0xff] %vm233, %v227
      %237 = vst.msk [vmem:[%s174 + $0x18] sm:$0xff] %vm233, %v228
      %238 = vst.msk [vmem:[%s174 + $0x20] sm:$0xff] %vm233, %v229
      %239 = vst.msk [vmem:[%s174 + $0x28] sm:$0xff] %vm233, %v230
      %240 = vst.msk [vmem:[%s174 + $0x30] sm:$0xff] %vm233, %v231
      %241 = vst.msk [vmem:[%s174 + $0x38] sm:$0xff] %vm233, %v232
      %v242 = vld [vmem:[%s179] sm:$0xff]
      %v243 = vld [vmem:[%s179 + $0x8] sm:$0xff]
      %v244 = vld [vmem:[%s179 + $0x10] sm:$0xff]
      %v245 = vld [vmem:[%s179 + $0x18] sm:$0xff]
      %v246 = vld [vmem:[%s179 + $0x20] sm:$0xff]
      %v247 = vld [vmem:[%s179 + $0x28] sm:$0xff]
      %v248 = vld [vmem:[%s179 + $0x30] sm:$0xff]
      %v249 = vld [vmem:[%s179 + $0x38] sm:$0xff]
      %v250 = vadd.f32 %v242, %v209
      %v251 = vadd.f32 %v243, %v210
      %v252 = vadd.f32 %v244, %v211
      %v253 = vadd.f32 %v245, %v212
      %v254 = vadd.f32 %v246, %v213
      %v255 = vadd.f32 %v247, %v214
      %v256 = vadd.f32 %v248, %v215
      %v257 = vadd.f32 %v249, %v216
      %258 = vst.msk [vmem:[%s179] sm:$0xff] %vm233, %v250
      %259 = vst.msk [vmem:[%s179 + $0x8] sm:$0xff] %vm233, %v251
      %260 = vst.msk [vmem:[%s179 + $0x10] sm:$0xff] %vm233, %v252
      %261 = vst.msk [vmem:[%s179 + $0x18] sm:$0xff] %vm233, %v253
      %262 = vst.msk [vmem:[%s179 + $0x20] sm:$0xff] %vm233, %v254
      %263 = vst.msk [vmem:[%s179 + $0x28] sm:$0xff] %vm233, %v255
      %264 = vst.msk [vmem:[%s179 + $0x30] sm:$0xff] %vm233, %v256
      %265 = vst.msk [vmem:[%s179 + $0x38] sm:$0xff] %vm233, %v257
      %p266 = scmp.lt.s32.totalorder %s18, 1
      %s267 = scalar_select %p266, %s18, 1
      %s268 = smul.addr %s267, 8
      %s269 = smul.addr %s268, 8
      %s270 = scalar_lea.vmem %s1, %s269
      %p271 = scmp.lt.s32.totalorder %s18, 1
      %s272 = scalar_select %p271, %s18, 1
      %s273 = smul.addr %s272, 8
      %s274 = smul.addr %s273, 8
      %s275 = scalar_lea.vmem %s2, %s274
      // Predicated region
      $region29: #{attn_block_pallas.3} parent=23 // pred_check
        %p276 = pneg %p72
      $region30: #{attn_block_pallas.3} parent=23 // pred_check_branch
        %278 = sbr.rel (%p276) target = $region32
      $region31: #{attn_block_pallas.3} parent=23 // pred_region
        _
      $region32: #{attn_block_pallas.3} parent=23 // pred_fallthru
        _
      // Predicated region
      $region33: #{attn_block_pallas.3} parent=23 // pred_check
        %p279 = pneg %p98
      $region34: #{attn_block_pallas.3} parent=23 // pred_check_branch
        %281 = sbr.rel (%p279) target = $region36
      $region35: #{attn_block_pallas.3} parent=23 // pred_region
        _
      $region36: #{attn_block_pallas.3} parent=23 // pred_fallthru
        _
    $region24: #{attn_block_pallas.3} parent=5 // pred_fallthru
      _
    %p282 = scmp.le.s32.totalorder 2, %s9
    // Predicated region
    $region37: #{attn_block_pallas.3} parent=5 // pred_check
      %p283 = pneg %p282
    $region38: #{attn_block_pallas.3} parent=5 // pred_check_branch
      %285 = sbr.rel (%p283) target = $region40
    $region39: #{attn_block_pallas.3} parent=5 // pred_region
      %s286 = ssub.s32 %s9, 2
      // Predicated region
      $region41: #{attn_block_pallas.3} parent=39 // pred_check
        %p287 = pneg %p78
      $region42: #{attn_block_pallas.3} parent=39 // pred_check_branch
        %289 = sbr.rel (%p287) target = $region44
      $region43: #{attn_block_pallas.3} parent=39 // pred_region
        %p290 = scmp.lt.s32.totalorder %s20, 1
        %s291 = scalar_select %p290, %s20, 1
        %s292 = smul.addr %s291, 8
        %s293 = smul.addr %s292, 8
        %s294 = scalar_lea.vmem %s1, %s293
      $region44: #{attn_block_pallas.3} parent=39 // pred_fallthru
        _
      // Predicated region
      $region45: #{attn_block_pallas.3} parent=39 // pred_check
        %p295 = pneg %p104
      $region46: #{attn_block_pallas.3} parent=39 // pred_check_branch
        %297 = sbr.rel (%p295) target = $region48
      $region47: #{attn_block_pallas.3} parent=39 // pred_region
        %p298 = scmp.lt.s32.totalorder %s20, 1
        %s299 = scalar_select %p298, %s20, 1
        %s300 = smul.addr %s299, 8
        %s301 = smul.addr %s300, 8
        %s302 = scalar_lea.vmem %s2, %s301
      $region48: #{attn_block_pallas.3} parent=39 // pred_fallthru
        _
    $region40: #{attn_block_pallas.3} parent=5 // pred_fallthru
      _
  $region6: #{attn_block_pallas.3} parent=0 // loop_footer
    %s13 = sadd.s32 1, %s9
  $region7: #{attn_block_pallas.3} parent=0 // loop_footer_branch
    %8 = sbr.rel target = $region3
  $region8: #{attn_block_pallas.3} parent=0 // loop_exit
    _

// kernel: attn_block_pallas.5
$region0: #{attn_block_pallas.5}
  #allocation0 [shape = 'u32[]', space=smem, size = 0x4, offset = 0x4, fixed_abs, tag = 'smem constant byte address 0x4 - core index']
  #allocation1 [shape = 'u32[144,128]{1,0:T(1,128)}', space=vmem, size = 0x12000, scoped, tag = 'internal scratch']
  #allocation2 [shape = 'f32[1,64]{1,0:T(1,128)}', space=vmem, size = 0x200, scoped, tag = 'scratch operand']
  #allocation3 [shape = 'f32[1,64]{1,0:T(1,128)}', space=vmem, size = 0x200, scoped, tag = 'scratch operand']
  #allocation4 [shape = 'f32[64,64]{1,0:T(8,128)}', space=vmem, size = 0x8000, scoped, tag = 'scratch operand']
  %s0 = inlined_call_operand.vmem [shape: f32[2,64,64], index: 0, kind: input, shape index: {}]
  %s1 = inlined_call_operand.vmem [shape: bf16[2,64,64], index: 1, kind: input, shape index: {}]
  %s2 = inlined_call_operand.vmem [shape: bf16[2,64,64], index: 2, kind: input, shape index: {}]
  %s3 = inlined_call_operand.vmem [shape: bf16[2,64,64], index: 3, kind: input, shape index: {}]
  %s4 = inlined_call_operand.vmem [shape: bf16[64,64], index: 4, kind: input, shape index: {}]
  %s5 = inlined_call_operand.vmem [shape: f32[64,1], index: 5, kind: input, shape index: {}]
  %s6 = inlined_call_operand.vmem [shape: f32[2,64,64], index: 6, kind: output, shape index: {}]
  %s7 = sld [smem:[#allocation0]]
  $region65: #{attn_block_pallas.5} parent=0
    _
  %s9 = ssub.s32 1, %s7
  %s10 = scalar_select 0, %s9, %s7
  loop: start=0, step=1, limit=4
  $region2: #{attn_block_pallas.5} parent=0 // loop_pre_header
    _
  $region3: #{attn_block_pallas.5} parent=0 // loop_header
    %s12 = sphi 0, %s16
    %p13 = scmp.ge.s32.totalorder %s12, 4
    %s19 = sphi 0, %s38
    %s20 = sphi 0, %s34
    %s21 = sphi 0, %s30
    %s22 = sphi 0, %s19
    %s23 = sphi 0, %s20
    %s24 = sphi 0, %s21
    %s25 = sphi 0, %s22
    %s26 = sphi 0, %s23
    %s27 = sphi 0, %s24
    %s43 = sphi 0, %s45
    %s46 = sphi 0, %s43
    %s47 = sphi 0, %s46
    %s63 = sphi 0, %s47
    %s71 = sphi 0, %s73
    %s74 = sphi 0, %s71
    %s75 = sphi 0, %s74
    %s91 = sphi 0, %s75
    %s99 = sphi 0, %s101
    %s102 = sphi 0, %s99
    %s103 = sphi 0, %s102
    %s119 = sphi 0, %s103
    %s127 = sphi 0, %s129
    %s130 = sphi 0, %s127
    %s131 = sphi 0, %s130
    %s147 = sphi 0, %s131
    %s151 = sphi 0, %s151
    %s153 = sphi 0, %s151
    %s154 = sphi 0, %s153
    %s168 = sphi 0, %s154
    %s172 = sphi 0, %s172
    %s174 = sphi 0, %s172
    %s175 = sphi 0, %s174
    %s189 = sphi 0, %s175
    %s197 = sphi 0, %s199
    %s200 = sphi 0, %s197
    %s201 = sphi 0, %s200
    %s217 = sphi 0, %s201
  $region4: #{attn_block_pallas.5} parent=0 // loop_header_branch
    %15 = sbr.rel (%p13) target = $region8
  $region5: #{attn_block_pallas.5} parent=0 // loop_body
    %s17 = ssub.s32 %s12, 1
    %s18 = ssub.s32 %s12, 2
    %s28 = sadd.s32 1, %s21
    %p29 = scmp.ge.s32.totalorder %s28, 1
    %s30 = scalar_select %p29, 0, %s28
    %s31 = sadd.s32 1, %s20
    %s32 = scalar_select %p29, %s31, %s20
    %p33 = scmp.ge.s32.totalorder %s32, 1
    %s34 = scalar_select %p33, 0, %s32
    %s35 = sadd.s32 1, %s19
    %s36 = scalar_select %p33, %s35, %s19
    %p37 = scmp.ge.s32.totalorder %s36, 2
    %s38 = scalar_select %p37, 0, %s36
    %s39 = ssub.s32 %s19, %s38
    %s40 = ssub.s32 %s20, %s34
    %s41 = sor.u32 %s39, %s40
    %p42 = scmp.eq.s32.totalorder %s41, 0
    %s44 = sadd.s32 %s43, 1
    %s45 = scalar_select %p42, %s43, %s44
    %p48 = pneg %p42
    %p49 = scmp.eq.s32.totalorder %s12, 1
    %p50 = por %p48, %p49
    %p51 = scmp.ne.s32.totalorder %s43, %s46
    %p52 = scmp.eq.s32.totalorder %s12, 0
    %p53 = por %p51, %p52
    %p54 = scmp.ne.s32.totalorder %s43, %s46
    %p55 = scmp.eq.s32.totalorder %s17, 1
    %p56 = por %p54, %p55
    %p57 = scmp.ne.s32.totalorder %s46, %s47
    %p58 = scmp.eq.s32.totalorder %s17, 0
    %p59 = por %p57, %p58
    %p60 = scmp.ne.s32.totalorder %s46, %s47
    %p61 = scmp.eq.s32.totalorder %s18, 1
    %p62 = por %p60, %p61
    %p64 = scmp.ne.s32.totalorder %s47, %s63
    %p65 = scmp.eq.s32.totalorder %s18, 0
    %p66 = por %p64, %p65
    %s67 = ssub.s32 %s19, %s38
    %s68 = ssub.s32 %s20, %s34
    %s69 = sor.u32 %s67, %s68
    %p70 = scmp.eq.s32.totalorder %s69, 0
    %s72 = sadd.s32 %s71, 1
    %s73 = scalar_select %p70, %s71, %s72
    %p76 = pneg %p70
    %p77 = scmp.eq.s32.totalorder %s12, 1
    %p78 = por %p76, %p77
    %p79 = scmp.ne.s32.totalorder %s71, %s74
    %p80 = scmp.eq.s32.totalorder %s12, 0
    %p81 = por %p79, %p80
    %p82 = scmp.ne.s32.totalorder %s71, %s74
    %p83 = scmp.eq.s32.totalorder %s17, 1
    %p84 = por %p82, %p83
    %p85 = scmp.ne.s32.totalorder %s74, %s75
    %p86 = scmp.eq.s32.totalorder %s17, 0
    %p87 = por %p85, %p86
    %p88 = scmp.ne.s32.totalorder %s74, %s75
    %p89 = scmp.eq.s32.totalorder %s18, 1
    %p90 = por %p88, %p89
    %p92 = scmp.ne.s32.totalorder %s75, %s91
    %p93 = scmp.eq.s32.totalorder %s18, 0
    %p94 = por %p92, %p93
    %s95 = ssub.s32 %s19, %s38
    %s96 = ssub.s32 %s21, %s30
    %s97 = sor.u32 %s95, %s96
    %p98 = scmp.eq.s32.totalorder %s97, 0
    %s100 = sadd.s32 %s99, 1
    %s101 = scalar_select %p98, %s99, %s100
    %p104 = pneg %p98
    %p105 = scmp.eq.s32.totalorder %s12, 1
    %p106 = por %p104, %p105
    %p107 = scmp.ne.s32.totalorder %s99, %s102
    %p108 = scmp.eq.s32.totalorder %s12, 0
    %p109 = por %p107, %p108
    %p110 = scmp.ne.s32.totalorder %s99, %s102
    %p111 = scmp.eq.s32.totalorder %s17, 1
    %p112 = por %p110, %p111
    %p113 = scmp.ne.s32.totalorder %s102, %s103
    %p114 = scmp.eq.s32.totalorder %s17, 0
    %p115 = por %p113, %p114
    %p116 = scmp.ne.s32.totalorder %s102, %s103
    %p117 = scmp.eq.s32.totalorder %s18, 1
    %p118 = por %p116, %p117
    %p120 = scmp.ne.s32.totalorder %s103, %s119
    %p121 = scmp.eq.s32.totalorder %s18, 0
    %p122 = por %p120, %p121
    %s123 = ssub.s32 %s19, %s38
    %s124 = ssub.s32 %s21, %s30
    %s125 = sor.u32 %s123, %s124
    %p126 = scmp.eq.s32.totalorder %s125, 0
    %s128 = sadd.s32 %s127, 1
    %s129 = scalar_select %p126, %s127, %s128
    %p132 = pneg %p126
    %p133 = scmp.eq.s32.totalorder %s12, 1
    %p134 = por %p132, %p133
    %p135 = scmp.ne.s32.totalorder %s127, %s130
    %p136 = scmp.eq.s32.totalorder %s12, 0
    %p137 = por %p135, %p136
    %p138 = scmp.ne.s32.totalorder %s127, %s130
    %p139 = scmp.eq.s32.totalorder %s17, 1
    %p140 = por %p138, %p139
    %p141 = scmp.ne.s32.totalorder %s130, %s131
    %p142 = scmp.eq.s32.totalorder %s17, 0
    %p143 = por %p141, %p142
    %p144 = scmp.ne.s32.totalorder %s130, %s131
    %p145 = scmp.eq.s32.totalorder %s18, 1
    %p146 = por %p144, %p145
    %p148 = scmp.ne.s32.totalorder %s131, %s147
    %p149 = scmp.eq.s32.totalorder %s18, 0
    %p150 = por %p148, %p149
    %s152 = sadd.s32 %s151, 1
    %p155 = scmp.eq.s32.totalorder %s12, 1
    %p156 = scmp.ne.s32.totalorder %s151, %s153
    %p157 = scmp.eq.s32.totalorder %s12, 0
    %p158 = por %p156, %p157
    %p159 = scmp.ne.s32.totalorder %s151, %s153
    %p160 = scmp.eq.s32.totalorder %s17, 1
    %p161 = por %p159, %p160
    %p162 = scmp.ne.s32.totalorder %s153, %s154
    %p163 = scmp.eq.s32.totalorder %s17, 0
    %p164 = por %p162, %p163
    %p165 = scmp.ne.s32.totalorder %s153, %s154
    %p166 = scmp.eq.s32.totalorder %s18, 1
    %p167 = por %p165, %p166
    %p169 = scmp.ne.s32.totalorder %s154, %s168
    %p170 = scmp.eq.s32.totalorder %s18, 0
    %p171 = por %p169, %p170
    %s173 = sadd.s32 %s172, 1
    %p176 = scmp.eq.s32.totalorder %s12, 1
    %p177 = scmp.ne.s32.totalorder %s172, %s174
    %p178 = scmp.eq.s32.totalorder %s12, 0
    %p179 = por %p177, %p178
    %p180 = scmp.ne.s32.totalorder %s172, %s174
    %p181 = scmp.eq.s32.totalorder %s17, 1
    %p182 = por %p180, %p181
    %p183 = scmp.ne.s32.totalorder %s174, %s175
    %p184 = scmp.eq.s32.totalorder %s17, 0
    %p185 = por %p183, %p184
    %p186 = scmp.ne.s32.totalorder %s174, %s175
    %p187 = scmp.eq.s32.totalorder %s18, 1
    %p188 = por %p186, %p187
    %p190 = scmp.ne.s32.totalorder %s175, %s189
    %p191 = scmp.eq.s32.totalorder %s18, 0
    %p192 = por %p190, %p191
    %s193 = ssub.s32 %s19, %s38
    %s194 = ssub.s32 %s20, %s34
    %s195 = sor.u32 %s193, %s194
    %p196 = scmp.eq.s32.totalorder %s195, 0
    %s198 = sadd.s32 %s197, 1
    %s199 = scalar_select %p196, %s197, %s198
    %p202 = pneg %p196
    %p203 = scmp.eq.s32.totalorder %s12, 1
    %p204 = por %p202, %p203
    %p205 = scmp.ne.s32.totalorder %s197, %s200
    %p206 = scmp.eq.s32.totalorder %s12, 0
    %p207 = por %p205, %p206
    %p208 = scmp.ne.s32.totalorder %s197, %s200
    %p209 = scmp.eq.s32.totalorder %s17, 1
    %p210 = por %p208, %p209
    %p211 = scmp.ne.s32.totalorder %s200, %s201
    %p212 = scmp.eq.s32.totalorder %s17, 0
    %p213 = por %p211, %p212
    %p214 = scmp.ne.s32.totalorder %s200, %s201
    %p215 = scmp.eq.s32.totalorder %s18, 1
    %p216 = por %p214, %p215
    %p218 = scmp.ne.s32.totalorder %s201, %s217
    %p219 = scmp.eq.s32.totalorder %s18, 0
    %p220 = por %p218, %p219
    %p221 = scmp.le.s32.totalorder 1, %s12
    %p222 = scmp.lt.s32.totalorder %s12, 3
    %p223 = pnand %p221, %p222
    %p224 = pneg %p223
    // Predicated region
    $region9: #{attn_block_pallas.5} parent=5 // pred_check
      _
    $region10: #{attn_block_pallas.5} parent=5 // pred_check_branch
      %226 = sbr.rel (%p223) target = $region12
    $region11: #{attn_block_pallas.5} parent=5 // pred_region
      %s227 = ssub.s32 %s12, 1
      // Predicated region
      $region13: #{attn_block_pallas.5} parent=11 // pred_check
        %p228 = pneg %p164
      $region14: #{attn_block_pallas.5} parent=11 // pred_check_branch
        %230 = sbr.rel (%p228) target = $region16
      $region15: #{attn_block_pallas.5} parent=11 // pred_region
        _
      $region16: #{attn_block_pallas.5} parent=11 // pred_fallthru
        _
      // Predicated region
      $region17: #{attn_block_pallas.5} parent=11 // pred_check
        %p231 = pneg %p185
      $region18: #{attn_block_pallas.5} parent=11 // pred_check_branch
        %233 = sbr.rel (%p231) target = $region20
      $region19: #{attn_block_pallas.5} parent=11 // pred_region
        _
      $region20: #{attn_block_pallas.5} parent=11 // pred_fallthru
        _
    $region12: #{attn_block_pallas.5} parent=5 // pred_fallthru
      _
    %p234 = scmp.lt.s32.totalorder %s12, 2
    // Predicated region
    $region21: #{attn_block_pallas.5} parent=5 // pred_check
      %p235 = pneg %p234
    $region22: #{attn_block_pallas.5} parent=5 // pred_check_branch
      %237 = sbr.rel (%p235) target = $region24
    $region23: #{attn_block_pallas.5} parent=5 // pred_region
      // Predicated region
      $region25: #{attn_block_pallas.5} parent=23 // pred_check
        %p238 = pneg %p53
      $region26: #{attn_block_pallas.5} parent=23 // pred_check_branch
        %240 = sbr.rel (%p238) target = $region28
      $region27: #{attn_block_pallas.5} parent=23 // pred_region
        %p241 = scmp.lt.s32.totalorder %s19, 1
        %s242 = scalar_select %p241, %s19, 1
        %p243 = scmp.lt.s32.totalorder %s20, 0
        %s244 = scalar_select %p243, %s20, 0
        %s245 = smul.addr %s242, 8
        %s246 = sadd.s32 %s244, %s245
        %s247 = smul.addr %s246, 8
        %s248 = scalar_lea.vmem %s0, %s247
      $region28: #{attn_block_pallas.5} parent=23 // pred_fallthru
        _
      // Predicated region
      $region29: #{attn_block_pallas.5} parent=23 // pred_check
        %p249 = pneg %p81
      $region30: #{attn_block_pallas.5} parent=23 // pred_check_branch
        %251 = sbr.rel (%p249) target = $region32
      $region31: #{attn_block_pallas.5} parent=23 // pred_region
        %p252 = scmp.lt.s32.totalorder %s19, 1
        %s253 = scalar_select %p252, %s19, 1
        %p254 = scmp.lt.s32.totalorder %s20, 0
        %s255 = scalar_select %p254, %s20, 0
        %s256 = smul.addr %s253, 8
        %s257 = sadd.s32 %s255, %s256
        %s258 = smul.addr %s257, 4
        %s259 = scalar_lea.vmem %s1, %s258
      $region32: #{attn_block_pallas.5} parent=23 // pred_fallthru
        _
      // Predicated region
      $region33: #{attn_block_pallas.5} parent=23 // pred_check
        %p260 = pneg %p109
      $region34: #{attn_block_pallas.5} parent=23 // pred_check_branch
        %262 = sbr.rel (%p260) target = $region36
      $region35: #{attn_block_pallas.5} parent=23 // pred_region
        %s263 = smul.u32 8, %s21
        %p264 = scmp.lt.s32.totalorder %s19, 1
        %s265 = scalar_select %p264, %s19, 1
        %p266 = scmp.lt.s32.totalorder %s263, 7
        %s267 = scalar_select %p266, %s263, 7
        %s268 = smul.addr %s265, 8
        %s269 = sadd.s32 %s267, %s268
        %s270 = smul.addr %s269, 4
        %s271 = scalar_lea.vmem %s2, %s270
        %s272 = smul.u32 8, %s21
      $region36: #{attn_block_pallas.5} parent=23 // pred_fallthru
        _
      // Predicated region
      $region37: #{attn_block_pallas.5} parent=23 // pred_check
        %p273 = pneg %p137
      $region38: #{attn_block_pallas.5} parent=23 // pred_check_branch
        %275 = sbr.rel (%p273) target = $region40
      $region39: #{attn_block_pallas.5} parent=23 // pred_region
        %p276 = scmp.lt.s32.totalorder %s19, 1
        %s277 = scalar_select %p276, %s19, 1
        %p278 = scmp.lt.s32.totalorder %s21, 0
        %s279 = scalar_select %p278, %s21, 0
        %s280 = smul.addr %s277, 8
        %s281 = sadd.s32 %s279, %s280
        %s282 = smul.addr %s281, 4
        %s283 = scalar_lea.vmem %s3, %s282
      $region40: #{attn_block_pallas.5} parent=23 // pred_fallthru
        _
    $region24: #{attn_block_pallas.5} parent=5 // pred_fallthru
      _
    %p284 = scmp.le.s32.totalorder 1, %s12
    %p285 = scmp.lt.s32.totalorder %s12, 3
    %p286 = pnand %p284, %p285
    %p287 = pneg %p286
    // Predicated region
    $region41: #{attn_block_pallas.5} parent=5 // pred_check
      _
    $region42: #{attn_block_pallas.5} parent=5 // pred_check_branch
      %289 = sbr.rel (%p286) target = $region44
    $region43: #{attn_block_pallas.5} parent=5 // pred_region
      %s290 = ssub.s32 %s12, 1
      %p291 = scmp.lt.s32.totalorder %s22, 1
      %s292 = scalar_select %p291, %s22, 1
      %p293 = scmp.lt.s32.totalorder %s23, 0
      %s294 = scalar_select %p293, %s23, 0
      %s295 = smul.addr %s292, 8
      %s296 = sadd.s32 %s294, %s295
      %s297 = smul.addr %s296, 8
      %s298 = scalar_lea.vmem %s0, %s297
      %p299 = pneg %p59
      %p300 = pneg %p56
      %p301 = scmp.lt.s32.totalorder %s22, 1
      %s302 = scalar_select %p301, %s22, 1
      %p303 = scmp.lt.s32.totalorder %s23, 0
      %s304 = scalar_select %p303, %s23, 0
      %s305 = smul.addr %s302, 8
      %s306 = sadd.s32 %s304, %s305
      %s307 = smul.addr %s306, 4
      %s308 = scalar_lea.vmem %s1, %s307
      %p309 = pneg %p87
      %p310 = pneg %p84
      %s311 = smul.u32 8, %s24
      %p312 = scmp.lt.s32.totalorder %s22, 1
      %s313 = scalar_select %p312, %s22, 1
      %p314 = scmp.lt.s32.totalorder %s311, 7
      %s315 = scalar_select %p314, %s311, 7
      %s316 = smul.addr %s313, 8
      %s317 = sadd.s32 %s315, %s316
      %s318 = smul.addr %s317, 4
      %s319 = scalar_lea.vmem %s2, %s318
      %p320 = pneg %p115
      %p321 = pneg %p112
      %p322 = scmp.lt.s32.totalorder %s22, 1
      %s323 = scalar_select %p322, %s22, 1
      %p324 = scmp.lt.s32.totalorder %s24, 0
      %s325 = scalar_select %p324, %s24, 0
      %s326 = smul.addr %s323, 8
      %s327 = sadd.s32 %s325, %s326
      %s328 = smul.addr %s327, 4
      %s329 = scalar_lea.vmem %s3, %s328
      %p330 = pneg %p143
      %p331 = pneg %p140
      %p332 = pneg %p164
      %p333 = pneg %p161
      %p334 = pneg %p185
      %p335 = pneg %p182
      %p336 = pneg %p213
      %p337 = pneg %p210
      %p338 = scmp.lt.s32.totalorder %s22, 1
      %s339 = scalar_select %p338, %s22, 1
      %p340 = scmp.lt.s32.totalorder %s23, 0
      %s341 = scalar_select %p340, %s23, 0
      %s342 = smul.addr %s339, 8
      %s343 = sadd.s32 %s341, %s342
      %s344 = smul.addr %s343, 8
      %s345 = scalar_lea.vmem %s6, %s344
      %p346 = scmp.lt.s32.totalorder %s22, 1
      %s347 = scalar_select %p346, %s22, 1
      %p348 = scmp.lt.s32.totalorder %s23, 0
      %s349 = scalar_select %p348, %s23, 0
      %s350 = smul.addr %s347, 8
      %s351 = sadd.s32 %s349, %s350
      %s352 = smul.addr %s351, 8
      %s353 = scalar_lea.vmem %s0, %s352
      %p354 = scmp.lt.s32.totalorder %s22, 1
      %s355 = scalar_select %p354, %s22, 1
      %p356 = scmp.lt.s32.totalorder %s23, 0
      %s357 = scalar_select %p356, %s23, 0
      %s358 = smul.addr %s355, 8
      %s359 = sadd.s32 %s357, %s358
      %s360 = smul.addr %s359, 4
      %s361 = scalar_lea.vmem %s1, %s360
      %s362 = smul.u32 8, %s24
      %p363 = scmp.lt.s32.totalorder %s22, 1
      %s364 = scalar_select %p363, %s22, 1
      %p365 = scmp.lt.s32.totalorder %s362, 7
      %s366 = scalar_select %p365, %s362, 7
      %s367 = smul.addr %s364, 8
      %s368 = sadd.s32 %s366, %s367
      %s369 = smul.addr %s368, 4
      %s370 = scalar_lea.vmem %s2, %s369
      %s371 = smul.u32 8, %s24
      %p372 = scmp.lt.s32.totalorder %s22, 1
      %s373 = scalar_select %p372, %s22, 1
      %p374 = scmp.lt.s32.totalorder %s24, 0
      %s375 = scalar_select %p374, %s24, 0
      %s376 = smul.addr %s373, 8
      %s377 = sadd.s32 %s375, %s376
      %s378 = smul.addr %s377, 4
      %s379 = scalar_lea.vmem %s3, %s378
      %p380 = scmp.lt.s32.totalorder %s22, 1
      %s381 = scalar_select %p380, %s22, 1
      %p382 = scmp.lt.s32.totalorder %s23, 0
      %s383 = scalar_select %p382, %s23, 0
      %s384 = smul.addr %s381, 8
      %s385 = sadd.s32 %s383, %s384
      %s386 = smul.addr %s385, 8
      %s387 = scalar_lea.vmem %s6, %s386
      %p389 = scmp.eq.s32.totalorder %s24, 0
      // Predicated region
      $region45: #{attn_block_pallas.5} parent=43 // pred_check
        %p390 = pneg %p389
      $region46: #{attn_block_pallas.5} parent=43 // pred_check_branch
        %392 = sbr.rel (%p390) target = $region48
      $region47: #{attn_block_pallas.5} parent=43 // pred_region
        %vm393 = vcmask 516096
        %394 = vst.msk [vmem:[#allocation2] sm:$0x1] %vm393, -inf
        %395 = vst.msk [vmem:[#allocation3] sm:$0x1] %vm393, 0.0
        %vm396 = vcmask 523264
        %397 = vst.msk [vmem:[#allocation4] sm:$0xff] %vm396, 0.0
        %398 = vst.msk [vmem:[#allocation4 + $0x8] sm:$0xff] %vm396, 0.0
        %399 = vst.msk [vmem:[#allocation4 + $0x10] sm:$0xff] %vm396, 0.0
        %400 = vst.msk [vmem:[#allocation4 + $0x18] sm:$0xff] %vm396, 0.0
        %401 = vst.msk [vmem:[#allocation4 + $0x20] sm:$0xff] %vm396, 0.0
        %402 = vst.msk [vmem:[#allocation4 + $0x28] sm:$0xff] %vm396, 0.0
        %403 = vst.msk [vmem:[#allocation4 + $0x30] sm:$0xff] %vm396, 0.0
        %404 = vst.msk [vmem:[#allocation4 + $0x38] sm:$0xff] %vm396, 0.0
      $region48: #{attn_block_pallas.5} parent=43 // pred_fallthru
        _
      %v405 = vld [vmem:[%s361] sm:$0xf]
      %v406 = vld [vmem:[%s361 + $0x4] sm:$0xf]
      %v407 = vld [vmem:[%s361 + $0x8] sm:$0xf]
      %v408 = vld [vmem:[%s361 + $0xc] sm:$0xf]
      %v409 = vld [vmem:[%s361 + $0x10] sm:$0xf]
      %v410 = vld [vmem:[%s361 + $0x14] sm:$0xf]
      %v411 = vld [vmem:[%s361 + $0x18] sm:$0xf]
      %v412 = vld [vmem:[%s361 + $0x1c] sm:$0xf]
      %v413 = vld [vmem:[%s370] sm:$0xf]
      %v414 = vld [vmem:[%s370 + $0x4] sm:$0xf]
      %v415 = vld [vmem:[%s370 + $0x8] sm:$0xf]
      %v416 = vld [vmem:[%s370 + $0xc] sm:$0xf]
      %v417 = vld [vmem:[%s370 + $0x10] sm:$0xf]
      %v418 = vld [vmem:[%s370 + $0x14] sm:$0xf]
      %v419 = vld [vmem:[%s370 + $0x18] sm:$0xf]
      %v420 = vld [vmem:[%s370 + $0x1c] sm:$0xf]
      %v421 = vld [vmem:[%s379] sm:$0xf]
      %v422 = vld [vmem:[%s379 + $0x4] sm:$0xf]
      %v423 = vld [vmem:[%s379 + $0x8] sm:$0xf]
      %v424 = vld [vmem:[%s379 + $0xc] sm:$0xf]
      %v425 = vld [vmem:[%s379 + $0x10] sm:$0xf]
      %v426 = vld [vmem:[%s379 + $0x14] sm:$0xf]
      %v427 = vld [vmem:[%s379 + $0x18] sm:$0xf]
      %v428 = vld [vmem:[%s379 + $0x1c] sm:$0xf]
      %v437 = vunpack.c.l.b16 %v413
      %v438 = vunpack.c.l.b16 %v414
      %v439 = vunpack.c.l.b16 %v415
      %v440 = vunpack.c.l.b16 %v416
      %v441 = vunpack.c.l.b16 %v417
      %v442 = vunpack.c.l.b16 %v418
      %v443 = vunpack.c.l.b16 %v419
      %v444 = vunpack.c.l.b16 %v420
      %v445 = vpack.c.b16 %v438, %v437
      %v446 = vpack.c.b16 %v440, %v439
      %v447 = vpack.c.b16 %v442, %v441
      %v448 = vpack.c.b16 %v444, %v443
      %v457 = vunpack.c.l.b16 %v405
      %v458 = vunpack.c.l.b16 %v406
      %v459 = vunpack.c.l.b16 %v407
      %v460 = vunpack.c.l.b16 %v408
      %v461 = vunpack.c.l.b16 %v409
      %v462 = vunpack.c.l.b16 %v410
      %v463 = vunpack.c.l.b16 %v411
      %v464 = vunpack.c.l.b16 %v412
      %v465 = vpack.c.b16 %v458, %v457
      %v466 = vpack.c.b16 %v460, %v459
      %v467 = vpack.c.b16 %v462, %v461
      %v468 = vpack.c.b16 %v464, %v463
      %vm473 = vcmask 523264
      %v475 = vsel %vm473, %v445, 0
      %v478 = vsel %vm473, %v446, 0
      %v481 = vsel %vm473, %v447, 0
      %v484 = vsel %vm473, %v448, 0
      %486 = vmatprep.subr.bf16.mxu0 0
      %487 = vmatpush1.bf16.msra.mxu0 %v465
      %488 = vmatprep.subr.bf16.mxu0 0
      %489 = vmatpush1.bf16.msra.mxu0 %v466
      %490 = vmatprep.subr.bf16.mxu0 0
      %491 = vmatpush1.bf16.msra.mxu0 %v467
      %492 = vmatprep.subr.bf16.mxu0 0
      %493 = vmatpush1.bf16.msra.mxu0 %v468
      %494 = vmatprep.subr.bf16.mxu0 0
      %495 = vmatpush1.bf16.msra.mxu0 0
      %496 = vmatprep.subr.bf16.mxu0 0
      %497 = vmatpush1.bf16.msra.mxu0 0
      %498 = vmatprep.subr.bf16.mxu0 0
      %499 = vmatpush1.bf16.msra.mxu0 0
      %500 = vmatprep.subr.bf16.mxu0 0
      %501 = vmatpush1.bf16.msra.mxu0 0
      %502 = vmatprep.subr.bf16.mxu0 0
      %503 = vmatpush1.bf16.msra.mxu0 0
      %504 = vmatprep.subr.bf16.mxu0 0
      %505 = vmatpush1.bf16.msra.mxu0 0
      %506 = vmatprep.subr.bf16.mxu0 0
      %507 = vmatpush1.bf16.msra.mxu0 0
      %508 = vmatprep.subr.bf16.mxu0 0
      %509 = vmatpush1.bf16.msra.mxu0 0
      %510 = vmatprep.subr.bf16.mxu0 0
      %511 = vmatpush1.bf16.msra.mxu0 0
      %512 = vmatprep.subr.bf16.mxu0 0
      %513 = vmatpush1.bf16.msra.mxu0 0
      %514 = vmatprep.subr.bf16.mxu0 0
      %515 = vmatpush1.bf16.msra.mxu0 0
      %516 = vmatprep.subr.bf16.mxu0 0
      %517 = vmatpush1.bf16.msra.mxu0 0
      %518 = vmatprep.mubr.bf16.mxu0 0
      %519 = vmatmul.mubr.bf16.gmra.mrb[0].mxu0 %v475
      %v520 = vpop.f32.mrb[0].mxu0
      %v521 = vadd.f32 0.0, %v520
      %v522 = vpop.f32.mrb[0].mxu0
      %v523 = vpop.f32.mrb[0].mxu0
      %v524 = vadd.f32 0.0, %v523
      %v525 = vpop.f32.mrb[0].mxu0
      %526 = vmatprep.mubr.bf16.mxu0 0
      %527 = vmatmul.mubr.bf16.gmra.mrb[0].mxu0 %v478
      %v528 = vpop.f32.mrb[0].mxu0
      %v529 = vadd.f32 0.0, %v528
      %v530 = vpop.f32.mrb[0].mxu0
      %v531 = vpop.f32.mrb[0].mxu0
      %v532 = vadd.f32 0.0, %v531
      %v533 = vpop.f32.mrb[0].mxu0
      %534 = vmatprep.mubr.bf16.mxu0 0
      %535 = vmatmul.mubr.bf16.gmra.mrb[0].mxu0 %v481
      %v536 = vpop.f32.mrb[0].mxu0
      %v537 = vadd.f32 0.0, %v536
      %v538 = vpop.f32.mrb[0].mxu0
      %v539 = vpop.f32.mrb[0].mxu0
      %v540 = vadd.f32 0.0, %v539
      %v541 = vpop.f32.mrb[0].mxu0
      %542 = vmatprep.mubr.bf16.mxu0 0
      %543 = vmatmul.mubr.bf16.gmra.mrb[0].mxu0 %v484
      %v544 = vpop.f32.mrb[0].mxu0
      %v545 = vadd.f32 0.0, %v544
      %v546 = vpop.f32.mrb[0].mxu0
      %v547 = vpop.f32.mrb[0].mxu0
      %v548 = vadd.f32 0.0, %v547
      %v549 = vpop.f32.mrb[0].mxu0
      %550 = vdwg.mxu0
      %v551 = vld [vmem:[#allocation2] sm:$0x1]
      %v552 = vsel %vm473, %v521, -inf
      %v553 = vsel %vm473, %v524, -inf
      %v554 = vsel %vm473, %v529, -inf
      %v555 = vsel %vm473, %v532, -inf
      %v556 = vsel %vm473, %v537, -inf
      %v557 = vmax.f32 %v552, %v556
      %v558 = vsel %vm473, %v540, -inf
      %v559 = vmax.f32 %v553, %v558
      %v560 = vsel %vm473, %v545, -inf
      %v561 = vmax.f32 %v554, %v560
      %v562 = vsel %vm473, %v548, -inf
      %v563 = vmax.f32 %v555, %v562
      %v564 = vmax.f32 %v557, %v559
      %v565 = vmax.f32 %v561, %v563
      %v566 = vmax.f32 %v564, %v565
      %v567 = vrot.slane %v566, 4
      %v568 = vmax.f32 %v566, %v567
      %v569 = vrot.slane %v568, 2
      %v570 = vmax.f32 %v568, %v569
      %v571 = vrot.slane %v570, 1
      %v572 = vmax.f32 %v570, %v571
      %v573 = vmax.f32 %v551, %v572
      %v574 = vsub.f32 %v551, %v573
      %v575 = vmul.f32 %v574, 1.442695
      %v576 = vpow.pop %v575
      %v578 = vlaneseq
      %v579 = vshrl.u32 %v578, 7
      %v580 = vsub.s32 0, %v579
      %v581 = vrot.slane %v573, %v580
      %v583 = vsub.f32 %v521, %v581
      %v584 = vsub.f32 %v524, %v581
      %v585 = vsub.f32 %v529, %v581
      %v586 = vsub.f32 %v532, %v581
      %v587 = vsub.f32 %v537, %v581
      %v588 = vsub.f32 %v540, %v581
      %v589 = vsub.f32 %v545, %v581
      %v590 = vsub.f32 %v548, %v581
      %v591 = vmul.f32 %v583, 1.442695
      %v592 = vpow.pop %v591
      %v593 = vmul.f32 %v584, 1.442695
      %v594 = vpow.pop %v593
      %v595 = vmul.f32 %v585, 1.442695
      %v596 = vpow.pop %v595
      %v597 = vmul.f32 %v586, 1.442695
      %v598 = vpow.pop %v597
      %v599 = vmul.f32 %v587, 1.442695
      %v600 = vpow.pop %v599
      %v601 = vmul.f32 %v588, 1.442695
      %v602 = vpow.pop %v601
      %v603 = vmul.f32 %v589, 1.442695
      %v604 = vpow.pop %v603
      %v605 = vmul.f32 %v590, 1.442695
      %v606 = vpow.pop %v605
      %v607 = vld [vmem:[#allocation3] sm:$0x1]
      %v608 = vmul.f32 %v576, %v607
      %v609 = vsel %vm473, %v592, 0.0
      %v610 = vsel %vm473, %v594, 0.0
      %v611 = vadd.f32 %v609, %v610
      %v612 = vsel %vm473, %v596, 0.0
      %v613 = vadd.f32 %v611, %v612
      %v614 = vsel %vm473, %v598, 0.0
      %v615 = vadd.f32 %v613, %v614
      %v616 = vsel %vm473, %v600, 0.0
      %v617 = vadd.f32 %v615, %v616
      %v618 = vsel %vm473, %v602, 0.0
      %v619 = vadd.f32 %v617, %v618
      %v620 = vsel %vm473, %v604, 0.0
      %v621 = vadd.f32 %v619, %v620
      %v622 = vsel %vm473, %v606, 0.0
      %v623 = vadd.f32 %v621, %v622
      %v624 = vrot.slane %v623, 4
      %v625 = vadd.f32 %v623, %v624
      %v626 = vrot.slane %v625, 2
      %v627 = vadd.f32 %v625, %v626
      %v628 = vrot.slane %v627, 1
      %v629 = vadd.f32 %v627, %v628
      %v630 = vadd.f32 %v608, %v629
      %vm631 = vcmask 516096
      %632 = vst.msk [vmem:[#allocation3] sm:$0x1] %vm631, %v630
      %v633 = vld [vmem:[#allocation4] sm:$0xff]
      %v634 = vld [vmem:[#allocation4 + $0x8] sm:$0xff]
      %v635 = vld [vmem:[#allocation4 + $0x10] sm:$0xff]
      %v636 = vld [vmem:[#allocation4 + $0x18] sm:$0xff]
      %v637 = vld [vmem:[#allocation4 + $0x20] sm:$0xff]
      %v638 = vld [vmem:[#allocation4 + $0x28] sm:$0xff]
      %v639 = vld [vmem:[#allocation4 + $0x30] sm:$0xff]
      %v640 = vld [vmem:[#allocation4 + $0x38] sm:$0xff]
      %v642 = vlaneseq
      %v643 = vshrl.u32 %v642, 7
      %v644 = vsub.s32 0, %v643
      %v645 = vrot.slane %v576, %v644
      %v647 = vmul.f32 %v645, %v633
      %v648 = vmul.f32 %v645, %v634
      %v649 = vmul.f32 %v645, %v635
      %v650 = vmul.f32 %v645, %v636
      %v651 = vmul.f32 %v645, %v637
      %v652 = vmul.f32 %v645, %v638
      %v653 = vmul.f32 %v645, %v639
      %v654 = vmul.f32 %v645, %v640
      %v655 = vpack.c.bf16 %v594, %v592
      %v656 = vpack.c.bf16 %v598, %v596
      %v657 = vpack.c.bf16 %v602, %v600
      %v658 = vpack.c.bf16 %v606, %v604
      %v667 = vunpack.c.l.b16 %v421
      %v668 = vunpack.c.l.b16 %v422
      %v669 = vunpack.c.l.b16 %v423
      %v670 = vunpack.c.l.b16 %v424
      %v671 = vunpack.c.l.b16 %v425
      %v672 = vunpack.c.l.b16 %v426
      %v673 = vunpack.c.l.b16 %v427
      %v674 = vunpack.c.l.b16 %v428
      %v675 = vpack.c.b16 %v668, %v667
      %v676 = vpack.c.b16 %v670, %v669
      %v677 = vpack.c.b16 %v672, %v671
      %v678 = vpack.c.b16 %v674, %v673
      %v680 = vsel %vm473, %v675, 0
      %v683 = vsel %vm473, %v676, 0
      %v686 = vsel %vm473, %v677, 0
      %v689 = vsel %vm473, %v678, 0
      %691 = vmatprep.subr.bf16.mxu0 0
      %692 = vmatpush1.bf16.msra.mxu0 %v655
      %693 = vmatprep.subr.bf16.mxu0 0
      %694 = vmatpush1.bf16.msra.mxu0 %v656
      %695 = vmatprep.subr.bf16.mxu0 0
      %696 = vmatpush1.bf16.msra.mxu0 %v657
      %697 = vmatprep.subr.bf16.mxu0 0
      %698 = vmatpush1.bf16.msra.mxu0 %v658
      %699 = vmatprep.subr.bf16.mxu0 0
      %700 = vmatpush1.bf16.msra.mxu0 0
      %701 = vmatprep.subr.bf16.mxu0 0
      %702 = vmatpush1.bf16.msra.mxu0 0
      %703 = vmatprep.subr.bf16.mxu0 0
      %704 = vmatpush1.bf16.msra.mxu0 0
      %705 = vmatprep.subr.bf16.mxu0 0
      %706 = vmatpush1.bf16.msra.mxu0 0
      %707 = vmatprep.subr.bf16.mxu0 0
      %708 = vmatpush1.bf16.msra.mxu0 0
      %709 = vmatprep.subr.bf16.mxu0 0
      %710 = vmatpush1.bf16.msra.mxu0 0
      %711 = vmatprep.subr.bf16.mxu0 0
      %712 = vmatpush1.bf16.msra.mxu0 0
      %713 = vmatprep.subr.bf16.mxu0 0
      %714 = vmatpush1.bf16.msra.mxu0 0
      %715 = vmatprep.subr.bf16.mxu0 0
      %716 = vmatpush1.bf16.msra.mxu0 0
      %717 = vmatprep.subr.bf16.mxu0 0
      %718 = vmatpush1.bf16.msra.mxu0 0
      %719 = vmatprep.subr.bf16.mxu0 0
      %720 = vmatpush1.bf16.msra.mxu0 0
      %721 = vmatprep.subr.bf16.mxu0 0
      %722 = vmatpush1.bf16.msra.mxu0 0
      %723 = vmatprep.mubr.bf16.mxu0 0
      %724 = vmatmul.mubr.bf16.gmra.mrb[0].mxu0 %v680
      %v725 = vpop.f32.mrb[0].mxu0
      %v726 = vadd.f32 0.0, %v725
      %v727 = vpop.f32.mrb[0].mxu0
      %v728 = vpop.f32.mrb[0].mxu0
      %v729 = vadd.f32 0.0, %v728
      %v730 = vpop.f32.mrb[0].mxu0
      %731 = vmatprep.mubr.bf16.mxu0 0
      %732 = vmatmul.mubr.bf16.gmra.mrb[0].mxu0 %v683
      %v733 = vpop.f32.mrb[0].mxu0
      %v734 = vadd.f32 0.0, %v733
      %v735 = vpop.f32.mrb[0].mxu0
      %v736 = vpop.f32.mrb[0].mxu0
      %v737 = vadd.f32 0.0, %v736
      %v738 = vpop.f32.mrb[0].mxu0
      %739 = vmatprep.mubr.bf16.mxu0 0
      %740 = vmatmul.mubr.bf16.gmra.mrb[0].mxu0 %v686
      %v741 = vpop.f32.mrb[0].mxu0
      %v742 = vadd.f32 0.0, %v741
      %v743 = vpop.f32.mrb[0].mxu0
      %v744 = vpop.f32.mrb[0].mxu0
      %v745 = vadd.f32 0.0, %v744
      %v746 = vpop.f32.mrb[0].mxu0
      %747 = vmatprep.mubr.bf16.mxu0 0
      %748 = vmatmul.mubr.bf16.gmra.mrb[0].mxu0 %v689
      %v749 = vpop.f32.mrb[0].mxu0
      %v750 = vadd.f32 0.0, %v749
      %v751 = vpop.f32.mrb[0].mxu0
      %v752 = vpop.f32.mrb[0].mxu0
      %v753 = vadd.f32 0.0, %v752
      %v754 = vpop.f32.mrb[0].mxu0
      %755 = vdwg.mxu0
      %v756 = vadd.f32 %v647, %v726
      %v757 = vadd.f32 %v648, %v729
      %v758 = vadd.f32 %v649, %v734
      %v759 = vadd.f32 %v650, %v737
      %v760 = vadd.f32 %v651, %v742
      %v761 = vadd.f32 %v652, %v745
      %v762 = vadd.f32 %v653, %v750
      %v763 = vadd.f32 %v654, %v753
      %764 = vst.msk [vmem:[#allocation4] sm:$0xff] %vm473, %v756
      %765 = vst.msk [vmem:[#allocation4 + $0x8] sm:$0xff] %vm473, %v757
      %766 = vst.msk [vmem:[#allocation4 + $0x10] sm:$0xff] %vm473, %v758
      %767 = vst.msk [vmem:[#allocation4 + $0x18] sm:$0xff] %vm473, %v759
      %768 = vst.msk [vmem:[#allocation4 + $0x20] sm:$0xff] %vm473, %v760
      %769 = vst.msk [vmem:[#allocation4 + $0x28] sm:$0xff] %vm473, %v761
      %770 = vst.msk [vmem:[#allocation4 + $0x30] sm:$0xff] %vm473, %v762
      %771 = vst.msk [vmem:[#allocation4 + $0x38] sm:$0xff] %vm473, %v763
      %772 = vst.msk [vmem:[#allocation2] sm:$0x1] %vm631, %v573
      // Predicated region
      $region49: #{attn_block_pallas.5} parent=43 // pred_check
        %p773 = pneg %p389
      $region50: #{attn_block_pallas.5} parent=43 // pred_check_branch
        %775 = sbr.rel (%p773) target = $region52
      $region51: #{attn_block_pallas.5} parent=43 // pred_region
        %v776 = vld [vmem:[#allocation4] sm:$0xff]
        %v777 = vld [vmem:[#allocation4 + $0x8] sm:$0xff]
        %v778 = vld [vmem:[#allocation4 + $0x10] sm:$0xff]
        %v779 = vld [vmem:[#allocation4 + $0x18] sm:$0xff]
        %v780 = vld [vmem:[#allocation4 + $0x20] sm:$0xff]
        %v781 = vld [vmem:[#allocation4 + $0x28] sm:$0xff]
        %v782 = vld [vmem:[#allocation4 + $0x30] sm:$0xff]
        %v783 = vld [vmem:[#allocation4 + $0x38] sm:$0xff]
        %v784 = vld [vmem:[#allocation3] sm:$0x1]
        %v785 = vrcp.pop %v784
        %v787 = vlaneseq
        %v788 = vshrl.u32 %v787, 7
        %v789 = vsub.s32 0, %v788
        %v790 = vrot.slane %v785, %v789
        %v792 = vmul.f32 %v776, %v790
        %v793 = vmul.f32 %v777, %v790
        %v794 = vmul.f32 %v778, %v790
        %v795 = vmul.f32 %v779, %v790
        %v796 = vmul.f32 %v780, %v790
        %v797 = vmul.f32 %v781, %v790
        %v798 = vmul.f32 %v782, %v790
        %v799 = vmul.f32 %v783, %v790
        %v800 = vld [vmem:[%s4] sm:$0xf]
        %v801 = vld [vmem:[%s4 + $0x4] sm:$0xf]
        %v802 = vld [vmem:[%s4 + $0x8] sm:$0xf]
        %v803 = vld [vmem:[%s4 + $0xc] sm:$0xf]
        %v804 = vld [vmem:[%s4 + $0x10] sm:$0xf]
        %v805 = vld [vmem:[%s4 + $0x14] sm:$0xf]
        %v806 = vld [vmem:[%s4 + $0x18] sm:$0xf]
        %v807 = vld [vmem:[%s4 + $0x1c] sm:$0xf]
        %v808 = vpack.c.bf16 %v793, %v792
        %v809 = vpack.c.bf16 %v795, %v794
        %v810 = vpack.c.bf16 %v797, %v796
        %v811 = vpack.c.bf16 %v799, %v798
        %v820 = vunpack.c.l.b16 %v800
        %v821 = vunpack.c.l.b16 %v801
        %v822 = vunpack.c.l.b16 %v802
        %v823 = vunpack.c.l.b16 %v803
        %v824 = vunpack.c.l.b16 %v804
        %v825 = vunpack.c.l.b16 %v805
        %v826 = vunpack.c.l.b16 %v806
        %v827 = vunpack.c.l.b16 %v807
        %v828 = vpack.c.b16 %v821, %v820
        %v829 = vpack.c.b16 %v823, %v822
        %v830 = vpack.c.b16 %v825, %v824
        %v831 = vpack.c.b16 %v827, %v826
        %v833 = vsel %vm473, %v828, 0
        %v836 = vsel %vm473, %v829, 0
        %v839 = vsel %vm473, %v830, 0
        %v842 = vsel %vm473, %v831, 0
        %844 = vmatprep.subr.bf16.mxu0 0
        %845 = vmatpush1.bf16.msra.mxu0 %v808
        %846 = vmatprep.subr.bf16.mxu0 0
        %847 = vmatpush1.bf16.msra.mxu0 %v809
        %848 = vmatprep.subr.bf16.mxu0 0
        %849 = vmatpush1.bf16.msra.mxu0 %v810
        %850 = vmatprep.subr.bf16.mxu0 0
        %851 = vmatpush1.bf16.msra.mxu0 %v811
        %852 = vmatprep.subr.bf16.mxu0 0
        %853 = vmatpush1.bf16.msra.mxu0 0
        %854 = vmatprep.subr.bf16.mxu0 0
        %855 = vmatpush1.bf16.msra.mxu0 0
        %856 = vmatprep.subr.bf16.mxu0 0
        %857 = vmatpush1.bf16.msra.mxu0 0
        %858 = vmatprep.subr.bf16.mxu0 0
        %859 = vmatpush1.bf16.msra.mxu0 0
        %860 = vmatprep.subr.bf16.mxu0 0
        %861 = vmatpush1.bf16.msra.mxu0 0
        %862 = vmatprep.subr.bf16.mxu0 0
        %863 = vmatpush1.bf16.msra.mxu0 0
        %864 = vmatprep.subr.bf16.mxu0 0
        %865 = vmatpush1.bf16.msra.mxu0 0
        %866 = vmatprep.subr.bf16.mxu0 0
        %867 = vmatpush1.bf16.msra.mxu0 0
        %868 = vmatprep.subr.bf16.mxu0 0
        %869 = vmatpush1.bf16.msra.mxu0 0
        %870 = vmatprep.subr.bf16.mxu0 0
        %871 = vmatpush1.bf16.msra.mxu0 0
        %872 = vmatprep.subr.bf16.mxu0 0
        %873 = vmatpush1.bf16.msra.mxu0 0
        %874 = vmatprep.subr.bf16.mxu0 0
        %875 = vmatpush1.bf16.msra.mxu0 0
        %876 = vmatprep.mubr.bf16.mxu0 0
        %877 = vmatmul.mubr.bf16.gmra.mrb[0].mxu0 %v833
        %v878 = vpop.f32.mrb[0].mxu0
        %v879 = vadd.f32 0.0, %v878
        %v880 = vpop.f32.mrb[0].mxu0
        %v881 = vpop.f32.mrb[0].mxu0
        %v882 = vadd.f32 0.0, %v881
        %v883 = vpop.f32.mrb[0].mxu0
        %884 = vmatprep.mubr.bf16.mxu0 0
        %885 = vmatmul.mubr.bf16.gmra.mrb[0].mxu0 %v836
        %v886 = vpop.f32.mrb[0].mxu0
        %v887 = vadd.f32 0.0, %v886
        %v888 = vpop.f32.mrb[0].mxu0
        %v889 = vpop.f32.mrb[0].mxu0
        %v890 = vadd.f32 0.0, %v889
        %v891 = vpop.f32.mrb[0].mxu0
        %892 = vmatprep.mubr.bf16.mxu0 0
        %893 = vmatmul.mubr.bf16.gmra.mrb[0].mxu0 %v839
        %v894 = vpop.f32.mrb[0].mxu0
        %v895 = vadd.f32 0.0, %v894
        %v896 = vpop.f32.mrb[0].mxu0
        %v897 = vpop.f32.mrb[0].mxu0
        %v898 = vadd.f32 0.0, %v897
        %v899 = vpop.f32.mrb[0].mxu0
        %900 = vmatprep.mubr.bf16.mxu0 0
        %901 = vmatmul.mubr.bf16.gmra.mrb[0].mxu0 %v842
        %v902 = vpop.f32.mrb[0].mxu0
        %v903 = vadd.f32 0.0, %v902
        %v904 = vpop.f32.mrb[0].mxu0
        %v905 = vpop.f32.mrb[0].mxu0
        %v906 = vadd.f32 0.0, %v905
        %v907 = vpop.f32.mrb[0].mxu0
        %908 = vdwg.mxu0
        %v909 = vld [vmem:[%s353] sm:$0xff]
        %v910 = vld [vmem:[%s353 + $0x8] sm:$0xff]
        %v911 = vld [vmem:[%s353 + $0x10] sm:$0xff]
        %v912 = vld [vmem:[%s353 + $0x18] sm:$0xff]
        %v913 = vld [vmem:[%s353 + $0x20] sm:$0xff]
        %v914 = vld [vmem:[%s353 + $0x28] sm:$0xff]
        %v915 = vld [vmem:[%s353 + $0x30] sm:$0xff]
        %v916 = vld [vmem:[%s353 + $0x38] sm:$0xff]
        %v917 = vadd.f32 %v909, %v879
        %v918 = vadd.f32 %v910, %v882
        %v919 = vadd.f32 %v911, %v887
        %v920 = vadd.f32 %v912, %v890
        %v921 = vadd.f32 %v913, %v895
        %v922 = vadd.f32 %v914, %v898
        %v923 = vadd.f32 %v915, %v903
        %v924 = vadd.f32 %v916, %v906
        %v925 = vld [vmem:[%s5] sm:$0xff]
        %v926 = vld [vmem:[%s5 + $0x8] sm:$0xff]
        %v927 = vld [vmem:[%s5 + $0x10] sm:$0xff]
        %v928 = vld [vmem:[%s5 + $0x18] sm:$0xff]
        %v929 = vld [vmem:[%s5 + $0x20] sm:$0xff]
        %v930 = vld [vmem:[%s5 + $0x28] sm:$0xff]
        %v931 = vld [vmem:[%s5 + $0x30] sm:$0xff]
        %v932 = vld [vmem:[%s5 + $0x38] sm:$0xff]
        %934 = vset.pattern.permute.xlu0 0
        %935 = vperm.xlu0 %934, %v925
        %v936 = vpop.permute.xlu0 %935
        %939 = vset.pattern.permute.xlu0 0
        %940 = vperm.xlu0 %939, %v926
        %v941 = vpop.permute.xlu0 %940
        %944 = vset.pattern.permute.xlu0 0
        %945 = vperm.xlu0 %944, %v927
        %v946 = vpop.permute.xlu0 %945
        %949 = vset.pattern.permute.xlu0 0
        %950 = vperm.xlu0 %949, %v928
        %v951 = vpop.permute.xlu0 %950
        %954 = vset.pattern.permute.xlu0 0
        %955 = vperm.xlu0 %954, %v929
        %v956 = vpop.permute.xlu0 %955
        %959 = vset.pattern.permute.xlu0 0
        %960 = vperm.xlu0 %959, %v930
        %v961 = vpop.permute.xlu0 %960
        %964 = vset.pattern.permute.xlu0 0
        %965 = vperm.xlu0 %964, %v931
        %v966 = vpop.permute.xlu0 %965
        %969 = vset.pattern.permute.xlu0 0
        %970 = vperm.xlu0 %969, %v932
        %v971 = vpop.permute.xlu0 %970
        %v973 = vadd.f32 %v917, %v936
        %v974 = vadd.f32 %v918, %v941
        %v975 = vadd.f32 %v919, %v946
        %v976 = vadd.f32 %v920, %v951
        %v977 = vadd.f32 %v921, %v956
        %v978 = vadd.f32 %v922, %v961
        %v979 = vadd.f32 %v923, %v966
        %v980 = vadd.f32 %v924, %v971
        %981 = vst.msk [vmem:[%s387] sm:$0xff] %vm473, %v973
        %982 = vst.msk [vmem:[%s387 + $0x8] sm:$0xff] %vm473, %v974
        %983 = vst.msk [vmem:[%s387 + $0x10] sm:$0xff] %vm473, %v975
        %984 = vst.msk [vmem:[%s387 + $0x18] sm:$0xff] %vm473, %v976
        %985 = vst.msk [vmem:[%s387 + $0x20] sm:$0xff] %vm473, %v977
        %986 = vst.msk [vmem:[%s387 + $0x28] sm:$0xff] %vm473, %v978
        %987 = vst.msk [vmem:[%s387 + $0x30] sm:$0xff] %vm473, %v979
        %988 = vst.msk [vmem:[%s387 + $0x38] sm:$0xff] %vm473, %v980
      $region52: #{attn_block_pallas.5} parent=43 // pred_fallthru
        _
      %p989 = scmp.lt.s32.totalorder %s22, 1
      %s990 = scalar_select %p989, %s22, 1
      %p991 = scmp.lt.s32.totalorder %s23, 0
      %s992 = scalar_select %p991, %s23, 0
      %s993 = smul.addr %s990, 8
      %s994 = sadd.s32 %s992, %s993
      %s995 = smul.addr %s994, 8
      %s996 = scalar_lea.vmem %s6, %s995
      // Predicated region
      $region53: #{attn_block_pallas.5} parent=43 // pred_check
        %p997 = pneg %p210
      $region54: #{attn_block_pallas.5} parent=43 // pred_check_branch
        %999 = sbr.rel (%p997) target = $region56
      $region55: #{attn_block_pallas.5} parent=43 // pred_region
        _
      $region56: #{attn_block_pallas.5} parent=43 // pred_fallthru
        _
    $region44: #{attn_block_pallas.5} parent=5 // pred_fallthru
      _
    %p1000 = scmp.le.s32.totalorder 2, %s12
    // Predicated region
    $region57: #{attn_block_pallas.5} parent=5 // pred_check
      %p1001 = pneg %p1000
    $region58: #{attn_block_pallas.5} parent=5 // pred_check_branch
      %1003 = sbr.rel (%p1001) target = $region60
    $region59: #{attn_block_pallas.5} parent=5 // pred_region
      %s1004 = ssub.s32 %s12, 2
      // Predicated region
      $region61: #{attn_block_pallas.5} parent=59 // pred_check
        %p1005 = pneg %p216
      $region62: #{attn_block_pallas.5} parent=59 // pred_check_branch
        %1007 = sbr.rel (%p1005) target = $region64
      $region63: #{attn_block_pallas.5} parent=59 // pred_region
        %p1008 = scmp.lt.s32.totalorder %s25, 1
        %s1009 = scalar_select %p1008, %s25, 1
        %p1010 = scmp.lt.s32.totalorder %s26, 0
        %s1011 = scalar_select %p1010, %s26, 0
        %s1012 = smul.addr %s1009, 8
        %s1013 = sadd.s32 %s1011, %s1012
        %s1014 = smul.addr %s1013, 8
        %s1015 = scalar_lea.vmem %s6, %s1014
      $region64: #{attn_block_pallas.5} parent=59 // pred_fallthru
        _
    $region60: #{attn_block_pallas.5} parent=5 // pred_fallthru
      _
  $region6: #{attn_block_pallas.5} parent=0 // loop_footer
    %s16 = sadd.s32 1, %s12
  $region7: #{attn_block_pallas.5} parent=0 // loop_footer_branch
    %11 = sbr.rel target = $region3
  $region8: #{attn_block_pallas.5} parent=0 // loop_exit
    _

// kernel: attn_block_pallas.4
$region0: #{attn_block_pallas.4}
  #allocation0 [shape = 'u32[]', space=smem, size = 0x4, offset = 0x4, fixed_abs, tag = 'smem constant byte address 0x4 - core index']
  #allocation1 [shape = 'u32[144,128]{1,0:T(1,128)}', space=vmem, size = 0x12000, scoped, tag = 'internal scratch']
  %s0 = inlined_call_operand.vmem [shape: f32[2,64,64], index: 0, kind: input, shape index: {}]
  %s1 = inlined_call_operand.vmem [shape: f32[2,64,1], index: 1, kind: input, shape index: {}]
  %s2 = inlined_call_operand.vmem [shape: f32[2,64,1], index: 2, kind: input, shape index: {}]
  %s3 = inlined_call_operand.vmem [shape: f32[64,1], index: 3, kind: input, shape index: {}]
  %s4 = inlined_call_operand.vmem [shape: f32[64,1], index: 4, kind: input, shape index: {}]
  %s5 = inlined_call_operand.vmem [shape: bf16[64,64], index: 5, kind: input, shape index: {}]
  %s6 = inlined_call_operand.vmem [shape: bf16[64,64], index: 6, kind: input, shape index: {}]
  %s7 = inlined_call_operand.vmem [shape: bf16[64,64], index: 7, kind: input, shape index: {}]
  %s8 = inlined_call_operand.vmem [shape: f32[64,1], index: 8, kind: input, shape index: {}]
  %s9 = inlined_call_operand.vmem [shape: f32[64,1], index: 9, kind: input, shape index: {}]
  %s10 = inlined_call_operand.vmem [shape: f32[64,1], index: 10, kind: input, shape index: {}]
  %s11 = inlined_call_operand.vmem [shape: bf16[2,64,64], index: 11, kind: output, shape index: {0}]
  %s12 = inlined_call_operand.vmem [shape: bf16[2,64,64], index: 12, kind: output, shape index: {1}]
  %s13 = inlined_call_operand.vmem [shape: bf16[2,64,64], index: 13, kind: output, shape index: {2}]
  %14 = xla_tuple %s11, %s12, %s13
  %s15 = sld [smem:[#allocation0]]
  $region93: #{attn_block_pallas.4} parent=0
    _
  %s17 = ssub.s32 1, %s15
  %s18 = scalar_select 0, %s17, %s15
  loop: start=0, step=1, limit=4
  $region2: #{attn_block_pallas.4} parent=0 // loop_pre_header
    _
  $region3: #{attn_block_pallas.4} parent=0 // loop_header
    %s20 = sphi 0, %s24
    %p21 = scmp.ge.s32.totalorder %s20, 4
    %s27 = sphi 0, %s39
    %s28 = sphi 0, %s35
    %s29 = sphi 0, %s27
    %s30 = sphi 0, %s28
    %s31 = sphi 0, %s29
    %s32 = sphi 0, %s30
    %s44 = sphi 0, %s46
    %s47 = sphi 0, %s44
    %s48 = sphi 0, %s47
    %s64 = sphi 0, %s48
    %s70 = sphi 0, %s72
    %s73 = sphi 0, %s70
    %s74 = sphi 0, %s73
    %s90 = sphi 0, %s74
    %s96 = sphi 0, %s98
    %s99 = sphi 0, %s96
    %s100 = sphi 0, %s99
    %s116 = sphi 0, %s100
    %s120 = sphi 0, %s120
    %s122 = sphi 0, %s120
    %s123 = sphi 0, %s122
    %s137 = sphi 0, %s123
    %s141 = sphi 0, %s141
    %s143 = sphi 0, %s141
    %s144 = sphi 0, %s143
    %s158 = sphi 0, %s144
    %s162 = sphi 0, %s162
    %s164 = sphi 0, %s162
    %s165 = sphi 0, %s164
    %s179 = sphi 0, %s165
    %s183 = sphi 0, %s183
    %s185 = sphi 0, %s183
    %s186 = sphi 0, %s185
    %s200 = sphi 0, %s186
    %s204 = sphi 0, %s204
    %s206 = sphi 0, %s204
    %s207 = sphi 0, %s206
    %s221 = sphi 0, %s207
    %s225 = sphi 0, %s225
    %s227 = sphi 0, %s225
    %s228 = sphi 0, %s227
    %s242 = sphi 0, %s228
    %s246 = sphi 0, %s246
    %s248 = sphi 0, %s246
    %s249 = sphi 0, %s248
    %s263 = sphi 0, %s249
    %s267 = sphi 0, %s267
    %s269 = sphi 0, %s267
    %s270 = sphi 0, %s269
    %s284 = sphi 0, %s270
    %s292 = sphi 0, %s294
    %s295 = sphi 0, %s292
    %s296 = sphi 0, %s295
    %s312 = sphi 0, %s296
    %s320 = sphi 0, %s322
    %s323 = sphi 0, %s320
    %s324 = sphi 0, %s323
    %s340 = sphi 0, %s324
    %s348 = sphi 0, %s350
    %s351 = sphi 0, %s348
    %s352 = sphi 0, %s351
    %s368 = sphi 0, %s352
  $region4: #{attn_block_pallas.4} parent=0 // loop_header_branch
    %23 = sbr.rel (%p21) target = $region8
  $region5: #{attn_block_pallas.4} parent=0 // loop_body
    %s25 = ssub.s32 %s20, 1
    %s26 = ssub.s32 %s20, 2
    %s33 = sadd.s32 1, %s28
    %p34 = scmp.ge.s32.totalorder %s33, 1
    %s35 = scalar_select %p34, 0, %s33
    %s36 = sadd.s32 1, %s27
    %s37 = scalar_select %p34, %s36, %s27
    %p38 = scmp.ge.s32.totalorder %s37, 2
    %s39 = scalar_select %p38, 0, %s37
    %s40 = ssub.s32 %s27, %s39
    %s41 = ssub.s32 %s28, %s35
    %s42 = sor.u32 %s40, %s41
    %p43 = scmp.eq.s32.totalorder %s42, 0
    %s45 = sadd.s32 %s44, 1
    %s46 = scalar_select %p43, %s44, %s45
    %p49 = pneg %p43
    %p50 = scmp.eq.s32.totalorder %s20, 1
    %p51 = por %p49, %p50
    %p52 = scmp.ne.s32.totalorder %s44, %s47
    %p53 = scmp.eq.s32.totalorder %s20, 0
    %p54 = por %p52, %p53
    %p55 = scmp.ne.s32.totalorder %s44, %s47
    %p56 = scmp.eq.s32.totalorder %s25, 1
    %p57 = por %p55, %p56
    %p58 = scmp.ne.s32.totalorder %s47, %s48
    %p59 = scmp.eq.s32.totalorder %s25, 0
    %p60 = por %p58, %p59
    %p61 = scmp.ne.s32.totalorder %s47, %s48
    %p62 = scmp.eq.s32.totalorder %s26, 1
    %p63 = por %p61, %p62
    %p65 = scmp.ne.s32.totalorder %s48, %s64
    %p66 = scmp.eq.s32.totalorder %s26, 0
    %p67 = por %p65, %p66
    %s68 = ssub.s32 %s27, %s39
    %p69 = scmp.eq.s32.totalorder %s68, 0
    %s71 = sadd.s32 %s70, 1
    %s72 = scalar_select %p69, %s70, %s71
    %p75 = pneg %p69
    %p76 = scmp.eq.s32.totalorder %s20, 1
    %p77 = por %p75, %p76
    %p78 = scmp.ne.s32.totalorder %s70, %s73
    %p79 = scmp.eq.s32.totalorder %s20, 0
    %p80 = por %p78, %p79
    %p81 = scmp.ne.s32.totalorder %s70, %s73
    %p82 = scmp.eq.s32.totalorder %s25, 1
    %p83 = por %p81, %p82
    %p84 = scmp.ne.s32.totalorder %s73, %s74
    %p85 = scmp.eq.s32.totalorder %s25, 0
    %p86 = por %p84, %p85
    %p87 = scmp.ne.s32.totalorder %s73, %s74
    %p88 = scmp.eq.s32.totalorder %s26, 1
    %p89 = por %p87, %p88
    %p91 = scmp.ne.s32.totalorder %s74, %s90
    %p92 = scmp.eq.s32.totalorder %s26, 0
    %p93 = por %p91, %p92
    %s94 = ssub.s32 %s27, %s39
    %p95 = scmp.eq.s32.totalorder %s94, 0
    %s97 = sadd.s32 %s96, 1
    %s98 = scalar_select %p95, %s96, %s97
    %p101 = pneg %p95
    %p102 = scmp.eq.s32.totalorder %s20, 1
    %p103 = por %p101, %p102
    %p104 = scmp.ne.s32.totalorder %s96, %s99
    %p105 = scmp.eq.s32.totalorder %s20, 0
    %p106 = por %p104, %p105
    %p107 = scmp.ne.s32.totalorder %s96, %s99
    %p108 = scmp.eq.s32.totalorder %s25, 1
    %p109 = por %p107, %p108
    %p110 = scmp.ne.s32.totalorder %s99, %s100
    %p111 = scmp.eq.s32.totalorder %s25, 0
    %p112 = por %p110, %p111
    %p113 = scmp.ne.s32.totalorder %s99, %s100
    %p114 = scmp.eq.s32.totalorder %s26, 1
    %p115 = por %p113, %p114
    %p117 = scmp.ne.s32.totalorder %s100, %s116
    %p118 = scmp.eq.s32.totalorder %s26, 0
    %p119 = por %p117, %p118
    %s121 = sadd.s32 %s120, 1
    %p124 = scmp.eq.s32.totalorder %s20, 1
    %p125 = scmp.ne.s32.totalorder %s120, %s122
    %p126 = scmp.eq.s32.totalorder %s20, 0
    %p127 = por %p125, %p126
    %p128 = scmp.ne.s32.totalorder %s120, %s122
    %p129 = scmp.eq.s32.totalorder %s25, 1
    %p130 = por %p128, %p129
    %p131 = scmp.ne.s32.totalorder %s122, %s123
    %p132 = scmp.eq.s32.totalorder %s25, 0
    %p133 = por %p131, %p132
    %p134 = scmp.ne.s32.totalorder %s122, %s123
    %p135 = scmp.eq.s32.totalorder %s26, 1
    %p136 = por %p134, %p135
    %p138 = scmp.ne.s32.totalorder %s123, %s137
    %p139 = scmp.eq.s32.totalorder %s26, 0
    %p140 = por %p138, %p139
    %s142 = sadd.s32 %s141, 1
    %p145 = scmp.eq.s32.totalorder %s20, 1
    %p146 = scmp.ne.s32.totalorder %s141, %s143
    %p147 = scmp.eq.s32.totalorder %s20, 0
    %p148 = por %p146, %p147
    %p149 = scmp.ne.s32.totalorder %s141, %s143
    %p150 = scmp.eq.s32.totalorder %s25, 1
    %p151 = por %p149, %p150
    %p152 = scmp.ne.s32.totalorder %s143, %s144
    %p153 = scmp.eq.s32.totalorder %s25, 0
    %p154 = por %p152, %p153
    %p155 = scmp.ne.s32.totalorder %s143, %s144
    %p156 = scmp.eq.s32.totalorder %s26, 1
    %p157 = por %p155, %p156
    %p159 = scmp.ne.s32.totalorder %s144, %s158
    %p160 = scmp.eq.s32.totalorder %s26, 0
    %p161 = por %p159, %p160
    %s163 = sadd.s32 %s162, 1
    %p166 = scmp.eq.s32.totalorder %s20, 1
    %p167 = scmp.ne.s32.totalorder %s162, %s164
    %p168 = scmp.eq.s32.totalorder %s20, 0
    %p169 = por %p167, %p168
    %p170 = scmp.ne.s32.totalorder %s162, %s164
    %p171 = scmp.eq.s32.totalorder %s25, 1
    %p172 = por %p170, %p171
    %p173 = scmp.ne.s32.totalorder %s164, %s165
    %p174 = scmp.eq.s32.totalorder %s25, 0
    %p175 = por %p173, %p174
    %p176 = scmp.ne.s32.totalorder %s164, %s165
    %p177 = scmp.eq.s32.totalorder %s26, 1
    %p178 = por %p176, %p177
    %p180 = scmp.ne.s32.totalorder %s165, %s179
    %p181 = scmp.eq.s32.totalorder %s26, 0
    %p182 = por %p180, %p181
    %s184 = sadd.s32 %s183, 1
    %p187 = scmp.eq.s32.totalorder %s20, 1
    %p188 = scmp.ne.s32.totalorder %s183, %s185
    %p189 = scmp.eq.s32.totalorder %s20, 0
    %p190 = por %p188, %p189
    %p191 = scmp.ne.s32.totalorder %s183, %s185
    %p192 = scmp.eq.s32.totalorder %s25, 1
    %p193 = por %p191, %p192
    %p194 = scmp.ne.s32.totalorder %s185, %s186
    %p195 = scmp.eq.s32.totalorder %s25, 0
    %p196 = por %p194, %p195
    %p197 = scmp.ne.s32.totalorder %s185, %s186
    %p198 = scmp.eq.s32.totalorder %s26, 1
    %p199 = por %p197, %p198
    %p201 = scmp.ne.s32.totalorder %s186, %s200
    %p202 = scmp.eq.s32.totalorder %s26, 0
    %p203 = por %p201, %p202
    %s205 = sadd.s32 %s204, 1
    %p208 = scmp.eq.s32.totalorder %s20, 1
    %p209 = scmp.ne.s32.totalorder %s204, %s206
    %p210 = scmp.eq.s32.totalorder %s20, 0
    %p211 = por %p209, %p210
    %p212 = scmp.ne.s32.totalorder %s204, %s206
    %p213 = scmp.eq.s32.totalorder %s25, 1
    %p214 = por %p212, %p213
    %p215 = scmp.ne.s32.totalorder %s206, %s207
    %p216 = scmp.eq.s32.totalorder %s25, 0
    %p217 = por %p215, %p216
    %p218 = scmp.ne.s32.totalorder %s206, %s207
    %p219 = scmp.eq.s32.totalorder %s26, 1
    %p220 = por %p218, %p219
    %p222 = scmp.ne.s32.totalorder %s207, %s221
    %p223 = scmp.eq.s32.totalorder %s26, 0
    %p224 = por %p222, %p223
    %s226 = sadd.s32 %s225, 1
    %p229 = scmp.eq.s32.totalorder %s20, 1
    %p230 = scmp.ne.s32.totalorder %s225, %s227
    %p231 = scmp.eq.s32.totalorder %s20, 0
    %p232 = por %p230, %p231
    %p233 = scmp.ne.s32.totalorder %s225, %s227
    %p234 = scmp.eq.s32.totalorder %s25, 1
    %p235 = por %p233, %p234
    %p236 = scmp.ne.s32.totalorder %s227, %s228
    %p237 = scmp.eq.s32.totalorder %s25, 0
    %p238 = por %p236, %p237
    %p239 = scmp.ne.s32.totalorder %s227, %s228
    %p240 = scmp.eq.s32.totalorder %s26, 1
    %p241 = por %p239, %p240
    %p243 = scmp.ne.s32.totalorder %s228, %s242
    %p244 = scmp.eq.s32.totalorder %s26, 0
    %p245 = por %p243, %p244
    %s247 = sadd.s32 %s246, 1
    %p250 = scmp.eq.s32.totalorder %s20, 1
    %p251 = scmp.ne.s32.totalorder %s246, %s248
    %p252 = scmp.eq.s32.totalorder %s20, 0
    %p253 = por %p251, %p252
    %p254 = scmp.ne.s32.totalorder %s246, %s248
    %p255 = scmp.eq.s32.totalorder %s25, 1
    %p256 = por %p254, %p255
    %p257 = scmp.ne.s32.totalorder %s248, %s249
    %p258 = scmp.eq.s32.totalorder %s25, 0
    %p259 = por %p257, %p258
    %p260 = scmp.ne.s32.totalorder %s248, %s249
    %p261 = scmp.eq.s32.totalorder %s26, 1
    %p262 = por %p260, %p261
    %p264 = scmp.ne.s32.totalorder %s249, %s263
    %p265 = scmp.eq.s32.totalorder %s26, 0
    %p266 = por %p264, %p265
    %s268 = sadd.s32 %s267, 1
    %p271 = scmp.eq.s32.totalorder %s20, 1
    %p272 = scmp.ne.s32.totalorder %s267, %s269
    %p273 = scmp.eq.s32.totalorder %s20, 0
    %p274 = por %p272, %p273
    %p275 = scmp.ne.s32.totalorder %s267, %s269
    %p276 = scmp.eq.s32.totalorder %s25, 1
    %p277 = por %p275, %p276
    %p278 = scmp.ne.s32.totalorder %s269, %s270
    %p279 = scmp.eq.s32.totalorder %s25, 0
    %p280 = por %p278, %p279
    %p281 = scmp.ne.s32.totalorder %s269, %s270
    %p282 = scmp.eq.s32.totalorder %s26, 1
    %p283 = por %p281, %p282
    %p285 = scmp.ne.s32.totalorder %s270, %s284
    %p286 = scmp.eq.s32.totalorder %s26, 0
    %p287 = por %p285, %p286
    %s288 = ssub.s32 %s27, %s39
    %s289 = ssub.s32 %s28, %s35
    %s290 = sor.u32 %s288, %s289
    %p291 = scmp.eq.s32.totalorder %s290, 0
    %s293 = sadd.s32 %s292, 1
    %s294 = scalar_select %p291, %s292, %s293
    %p297 = pneg %p291
    %p298 = scmp.eq.s32.totalorder %s20, 1
    %p299 = por %p297, %p298
    %p300 = scmp.ne.s32.totalorder %s292, %s295
    %p301 = scmp.eq.s32.totalorder %s20, 0
    %p302 = por %p300, %p301
    %p303 = scmp.ne.s32.totalorder %s292, %s295
    %p304 = scmp.eq.s32.totalorder %s25, 1
    %p305 = por %p303, %p304
    %p306 = scmp.ne.s32.totalorder %s295, %s296
    %p307 = scmp.eq.s32.totalorder %s25, 0
    %p308 = por %p306, %p307
    %p309 = scmp.ne.s32.totalorder %s295, %s296
    %p310 = scmp.eq.s32.totalorder %s26, 1
    %p311 = por %p309, %p310
    %p313 = scmp.ne.s32.totalorder %s296, %s312
    %p314 = scmp.eq.s32.totalorder %s26, 0
    %p315 = por %p313, %p314
    %s316 = ssub.s32 %s27, %s39
    %s317 = ssub.s32 %s28, %s35
    %s318 = sor.u32 %s316, %s317
    %p319 = scmp.eq.s32.totalorder %s318, 0
    %s321 = sadd.s32 %s320, 1
    %s322 = scalar_select %p319, %s320, %s321
    %p325 = pneg %p319
    %p326 = scmp.eq.s32.totalorder %s20, 1
    %p327 = por %p325, %p326
    %p328 = scmp.ne.s32.totalorder %s320, %s323
    %p329 = scmp.eq.s32.totalorder %s20, 0
    %p330 = por %p328, %p329
    %p331 = scmp.ne.s32.totalorder %s320, %s323
    %p332 = scmp.eq.s32.totalorder %s25, 1
    %p333 = por %p331, %p332
    %p334 = scmp.ne.s32.totalorder %s323, %s324
    %p335 = scmp.eq.s32.totalorder %s25, 0
    %p336 = por %p334, %p335
    %p337 = scmp.ne.s32.totalorder %s323, %s324
    %p338 = scmp.eq.s32.totalorder %s26, 1
    %p339 = por %p337, %p338
    %p341 = scmp.ne.s32.totalorder %s324, %s340
    %p342 = scmp.eq.s32.totalorder %s26, 0
    %p343 = por %p341, %p342
    %s344 = ssub.s32 %s27, %s39
    %s345 = ssub.s32 %s28, %s35
    %s346 = sor.u32 %s344, %s345
    %p347 = scmp.eq.s32.totalorder %s346, 0
    %s349 = sadd.s32 %s348, 1
    %s350 = scalar_select %p347, %s348, %s349
    %p353 = pneg %p347
    %p354 = scmp.eq.s32.totalorder %s20, 1
    %p355 = por %p353, %p354
    %p356 = scmp.ne.s32.totalorder %s348, %s351
    %p357 = scmp.eq.s32.totalorder %s20, 0
    %p358 = por %p356, %p357
    %p359 = scmp.ne.s32.totalorder %s348, %s351
    %p360 = scmp.eq.s32.totalorder %s25, 1
    %p361 = por %p359, %p360
    %p362 = scmp.ne.s32.totalorder %s351, %s352
    %p363 = scmp.eq.s32.totalorder %s25, 0
    %p364 = por %p362, %p363
    %p365 = scmp.ne.s32.totalorder %s351, %s352
    %p366 = scmp.eq.s32.totalorder %s26, 1
    %p367 = por %p365, %p366
    %p369 = scmp.ne.s32.totalorder %s352, %s368
    %p370 = scmp.eq.s32.totalorder %s26, 0
    %p371 = por %p369, %p370
    %p372 = scmp.le.s32.totalorder 1, %s20
    %p373 = scmp.lt.s32.totalorder %s20, 3
    %p374 = pnand %p372, %p373
    %p375 = pneg %p374
    // Predicated region
    $region9: #{attn_block_pallas.4} parent=5 // pred_check
      _
    $region10: #{attn_block_pallas.4} parent=5 // pred_check_branch
      %377 = sbr.rel (%p374) target = $region12
    $region11: #{attn_block_pallas.4} parent=5 // pred_region
      %s378 = ssub.s32 %s20, 1
      // Predicated region
      $region13: #{attn_block_pallas.4} parent=11 // pred_check
        %p379 = pneg %p133
      $region14: #{attn_block_pallas.4} parent=11 // pred_check_branch
        %381 = sbr.rel (%p379) target = $region16
      $region15: #{attn_block_pallas.4} parent=11 // pred_region
        _
      $region16: #{attn_block_pallas.4} parent=11 // pred_fallthru
        _
      // Predicated region
      $region17: #{attn_block_pallas.4} parent=11 // pred_check
        %p382 = pneg %p154
      $region18: #{attn_block_pallas.4} parent=11 // pred_check_branch
        %384 = sbr.rel (%p382) target = $region20
      $region19: #{attn_block_pallas.4} parent=11 // pred_region
        _
      $region20: #{attn_block_pallas.4} parent=11 // pred_fallthru
        _
      // Predicated region
      $region21: #{attn_block_pallas.4} parent=11 // pred_check
        %p385 = pneg %p175
      $region22: #{attn_block_pallas.4} parent=11 // pred_check_branch
        %387 = sbr.rel (%p385) target = $region24
      $region23: #{attn_block_pallas.4} parent=11 // pred_region
        _
      $region24: #{attn_block_pallas.4} parent=11 // pred_fallthru
        _
      // Predicated region
      $region25: #{attn_block_pallas.4} parent=11 // pred_check
        %p388 = pneg %p196
      $region26: #{attn_block_pallas.4} parent=11 // pred_check_branch
        %390 = sbr.rel (%p388) target = $region28
      $region27: #{attn_block_pallas.4} parent=11 // pred_region
        _
      $region28: #{attn_block_pallas.4} parent=11 // pred_fallthru
        _
      // Predicated region
      $region29: #{attn_block_pallas.4} parent=11 // pred_check
        %p391 = pneg %p217
      $region30: #{attn_block_pallas.4} parent=11 // pred_check_branch
        %393 = sbr.rel (%p391) target = $region32
      $region31: #{attn_block_pallas.4} parent=11 // pred_region
        _
      $region32: #{attn_block_pallas.4} parent=11 // pred_fallthru
        _
      // Predicated region
      $region33: #{attn_block_pallas.4} parent=11 // pred_check
        %p394 = pneg %p238
      $region34: #{attn_block_pallas.4} parent=11 // pred_check_branch
        %396 = sbr.rel (%p394) target = $region36
      $region35: #{attn_block_pallas.4} parent=11 // pred_region
        _
      $region36: #{attn_block_pallas.4} parent=11 // pred_fallthru
        _
      // Predicated region
      $region37: #{attn_block_pallas.4} parent=11 // pred_check
        %p397 = pneg %p259
      $region38: #{attn_block_pallas.4} parent=11 // pred_check_branch
        %399 = sbr.rel (%p397) target = $region40
      $region39: #{attn_block_pallas.4} parent=11 // pred_region
        _
      $region40: #{attn_block_pallas.4} parent=11 // pred_fallthru
        _
      // Predicated region
      $region41: #{attn_block_pallas.4} parent=11 // pred_check
        %p400 = pneg %p280
      $region42: #{attn_block_pallas.4} parent=11 // pred_check_branch
        %402 = sbr.rel (%p400) target = $region44
      $region43: #{attn_block_pallas.4} parent=11 // pred_region
        _
      $region44: #{attn_block_pallas.4} parent=11 // pred_fallthru
        _
    $region12: #{attn_block_pallas.4} parent=5 // pred_fallthru
      _
    %p403 = scmp.lt.s32.totalorder %s20, 2
    // Predicated region
    $region45: #{attn_block_pallas.4} parent=5 // pred_check
      %p404 = pneg %p403
    $region46: #{attn_block_pallas.4} parent=5 // pred_check_branch
      %406 = sbr.rel (%p404) target = $region48
    $region47: #{attn_block_pallas.4} parent=5 // pred_region
      // Predicated region
      $region49: #{attn_block_pallas.4} parent=47 // pred_check
        %p407 = pneg %p54
      $region50: #{attn_block_pallas.4} parent=47 // pred_check_branch
        %409 = sbr.rel (%p407) target = $region52
      $region51: #{attn_block_pallas.4} parent=47 // pred_region
        %p410 = scmp.lt.s32.totalorder %s27, 1
        %s411 = scalar_select %p410, %s27, 1
        %p412 = scmp.lt.s32.totalorder %s28, 0
        %s413 = scalar_select %p412, %s28, 0
        %s414 = smul.addr %s411, 8
        %s415 = sadd.s32 %s413, %s414
        %s416 = smul.addr %s415, 8
        %s417 = scalar_lea.vmem %s0, %s416
      $region52: #{attn_block_pallas.4} parent=47 // pred_fallthru
        _
      // Predicated region
      $region53: #{attn_block_pallas.4} parent=47 // pred_check
        %p418 = pneg %p80
      $region54: #{attn_block_pallas.4} parent=47 // pred_check_branch
        %420 = sbr.rel (%p418) target = $region56
      $region55: #{attn_block_pallas.4} parent=47 // pred_region
        %p421 = scmp.lt.s32.totalorder %s27, 1
        %s422 = scalar_select %p421, %s27, 1
        %s423 = smul.addr %s422, 8
        %s424 = smul.addr %s423, 8
        %s425 = scalar_lea.vmem %s1, %s424
      $region56: #{attn_block_pallas.4} parent=47 // pred_fallthru
        _
      // Predicated region
      $region57: #{attn_block_pallas.4} parent=47 // pred_check
        %p426 = pneg %p106
      $region58: #{attn_block_pallas.4} parent=47 // pred_check_branch
        %428 = sbr.rel (%p426) target = $region60
      $region59: #{attn_block_pallas.4} parent=47 // pred_region
        %p429 = scmp.lt.s32.totalorder %s27, 1
        %s430 = scalar_select %p429, %s27, 1
        %s431 = smul.addr %s430, 8
        %s432 = smul.addr %s431, 8
        %s433 = scalar_lea.vmem %s2, %s432
      $region60: #{attn_block_pallas.4} parent=47 // pred_fallthru
        _
    $region48: #{attn_block_pallas.4} parent=5 // pred_fallthru
      _
    %p434 = scmp.le.s32.totalorder 1, %s20
    %p435 = scmp.lt.s32.totalorder %s20, 3
    %p436 = pnand %p434, %p435
    %p437 = pneg %p436
    // Predicated region
    $region61: #{attn_block_pallas.4} parent=5 // pred_check
      _
    $region62: #{attn_block_pallas.4} parent=5 // pred_check_branch
      %439 = sbr.rel (%p436) target = $region64
    $region63: #{attn_block_pallas.4} parent=5 // pred_region
      %s440 = ssub.s32 %s20, 1
      %p441 = scmp.lt.s32.totalorder %s29, 1
      %s442 = scalar_select %p441, %s29, 1
      %p443 = scmp.lt.s32.totalorder %s30, 0
      %s444 = scalar_select %p443, %s30, 0
      %s445 = smul.addr %s442, 8
      %s446 = sadd.s32 %s444, %s445
      %s447 = smul.addr %s446, 8
      %s448 = scalar_lea.vmem %s0, %s447
      %p449 = pneg %p60
      %p450 = pneg %p57
      %p451 = scmp.lt.s32.totalorder %s29, 1
      %s452 = scalar_select %p451, %s29, 1
      %s453 = smul.addr %s452, 8
      %s454 = smul.addr %s453, 8
      %s455 = scalar_lea.vmem %s1, %s454
      %p456 = pneg %p86
      %p457 = pneg %p83
      %p458 = scmp.lt.s32.totalorder %s29, 1
      %s459 = scalar_select %p458, %s29, 1
      %s460 = smul.addr %s459, 8
      %s461 = smul.addr %s460, 8
      %s462 = scalar_lea.vmem %s2, %s461
      %p463 = pneg %p112
      %p464 = pneg %p109
      %p465 = pneg %p133
      %p466 = pneg %p130
      %p467 = pneg %p154
      %p468 = pneg %p151
      %p469 = pneg %p175
      %p470 = pneg %p172
      %p471 = pneg %p196
      %p472 = pneg %p193
      %p473 = pneg %p217
      %p474 = pneg %p214
      %p475 = pneg %p238
      %p476 = pneg %p235
      %p477 = pneg %p259
      %p478 = pneg %p256
      %p479 = pneg %p280
      %p480 = pneg %p277
      %p481 = pneg %p308
      %p482 = pneg %p305
      %p483 = scmp.lt.s32.totalorder %s29, 1
      %s484 = scalar_select %p483, %s29, 1
      %p485 = scmp.lt.s32.totalorder %s30, 0
      %s486 = scalar_select %p485, %s30, 0
      %s487 = smul.addr %s484, 8
      %s488 = sadd.s32 %s486, %s487
      %s489 = smul.addr %s488, 4
      %s490 = scalar_lea.vmem %s11, %s489
      %p491 = pneg %p336
      %p492 = pneg %p333
      %s493 = smul.u32 8, %s30
      %p494 = scmp.lt.s32.totalorder %s29, 1
      %s495 = scalar_select %p494, %s29, 1
      %p496 = scmp.lt.s32.totalorder %s493, 7
      %s497 = scalar_select %p496, %s493, 7
      %s498 = smul.addr %s495, 8
      %s499 = sadd.s32 %s497, %s498
      %s500 = smul.addr %s499, 4
      %s501 = scalar_lea.vmem %s12, %s500
      %p502 = pneg %p364
      %p503 = pneg %p361
      %p504 = scmp.lt.s32.totalorder %s29, 1
      %s505 = scalar_select %p504, %s29, 1
      %p506 = scmp.lt.s32.totalorder %s30, 0
      %s507 = scalar_select %p506, %s30, 0
      %s508 = smul.addr %s505, 8
      %s509 = sadd.s32 %s507, %s508
      %s510 = smul.addr %s509, 4
      %s511 = scalar_lea.vmem %s13, %s510
      %p512 = scmp.lt.s32.totalorder %s29, 1
      %s513 = scalar_select %p512, %s29, 1
      %p514 = scmp.lt.s32.totalorder %s30, 0
      %s515 = scalar_select %p514, %s30, 0
      %s516 = smul.addr %s513, 8
      %s517 = sadd.s32 %s515, %s516
      %s518 = smul.addr %s517, 8
      %s519 = scalar_lea.vmem %s0, %s518
      %p520 = scmp.lt.s32.totalorder %s29, 1
      %s521 = scalar_select %p520, %s29, 1
      %s522 = smul.addr %s521, 8
      %s523 = smul.addr %s522, 8
      %s524 = scalar_lea.vmem %s1, %s523
      %p525 = scmp.lt.s32.totalorder %s29, 1
      %s526 = scalar_select %p525, %s29, 1
      %s527 = smul.addr %s526, 8
      %s528 = smul.addr %s527, 8
      %s529 = scalar_lea.vmem %s2, %s528
      %p530 = scmp.lt.s32.totalorder %s29, 1
      %s531 = scalar_select %p530, %s29, 1
      %p532 = scmp.lt.s32.totalorder %s30, 0
      %s533 = scalar_select %p532, %s30, 0
      %s534 = smul.addr %s531, 8
      %s535 = sadd.s32 %s533, %s534
      %s536 = smul.addr %s535, 4
      %s537 = scalar_lea.vmem %s11, %s536
      %s538 = smul.u32 8, %s30
      %p539 = scmp.lt.s32.totalorder %s29, 1
      %s540 = scalar_select %p539, %s29, 1
      %p541 = scmp.lt.s32.totalorder %s538, 7
      %s542 = scalar_select %p541, %s538, 7
      %s543 = smul.addr %s540, 8
      %s544 = sadd.s32 %s542, %s543
      %s545 = smul.addr %s544, 4
      %s546 = scalar_lea.vmem %s12, %s545
      %s547 = smul.u32 8, %s30
      %p548 = scmp.lt.s32.totalorder %s29, 1
      %s549 = scalar_select %p548, %s29, 1
      %p550 = scmp.lt.s32.totalorder %s30, 0
      %s551 = scalar_select %p550, %s30, 0
      %s552 = smul.addr %s549, 8
      %s553 = sadd.s32 %s551, %s552
      %s554 = smul.addr %s553, 4
      %s555 = scalar_lea.vmem %s13, %s554
      %v557 = vld [vmem:[%s519] sm:$0xff]
      %v558 = vld [vmem:[%s519 + $0x8] sm:$0xff]
      %v559 = vld [vmem:[%s519 + $0x10] sm:$0xff]
      %v560 = vld [vmem:[%s519 + $0x18] sm:$0xff]
      %v561 = vld [vmem:[%s519 + $0x20] sm:$0xff]
      %v562 = vld [vmem:[%s519 + $0x28] sm:$0xff]
      %v563 = vld [vmem:[%s519 + $0x30] sm:$0xff]
      %v564 = vld [vmem:[%s519 + $0x38] sm:$0xff]
      %v565 = vld [vmem:[%s524] sm:$0xff]
      %v566 = vld [vmem:[%s524 + $0x8] sm:$0xff]
      %v567 = vld [vmem:[%s524 + $0x10] sm:$0xff]
      %v568 = vld [vmem:[%s524 + $0x18] sm:$0xff]
      %v569 = vld [vmem:[%s524 + $0x20] sm:$0xff]
      %v570 = vld [vmem:[%s524 + $0x28] sm:$0xff]
      %v571 = vld [vmem:[%s524 + $0x30] sm:$0xff]
      %v572 = vld [vmem:[%s524 + $0x38] sm:$0xff]
      %574 = vset.pattern.permute.xlu0 0
      %575 = vperm.xlu0 %574, %v565
      %v576 = vpop.permute.xlu0 %575
      %579 = vset.pattern.permute.xlu0 0
      %580 = vperm.xlu0 %579, %v566
      %v581 = vpop.permute.xlu0 %580
      %584 = vset.pattern.permute.xlu0 0
      %585 = vperm.xlu0 %584, %v567
      %v586 = vpop.permute.xlu0 %585
      %589 = vset.pattern.permute.xlu0 0
      %590 = vperm.xlu0 %589, %v568
      %v591 = vpop.permute.xlu0 %590
      %594 = vset.pattern.permute.xlu0 0
      %595 = vperm.xlu0 %594, %v569
      %v596 = vpop.permute.xlu0 %595
      %599 = vset.pattern.permute.xlu0 0
      %600 = vperm.xlu0 %599, %v570
      %v601 = vpop.permute.xlu0 %600
      %604 = vset.pattern.permute.xlu0 0
      %605 = vperm.xlu0 %604, %v571
      %v606 = vpop.permute.xlu0 %605
      %609 = vset.pattern.permute.xlu0 0
      %610 = vperm.xlu0 %609, %v572
      %v611 = vpop.permute.xlu0 %610
      %v613 = vsub.f32 %v557, %v576
      %v614 = vsub.f32 %v558, %v581
      %v615 = vsub.f32 %v559, %v586
      %v616 = vsub.f32 %v560, %v591
      %v617 = vsub.f32 %v561, %v596
      %v618 = vsub.f32 %v562, %v601
      %v619 = vsub.f32 %v563, %v606
      %v620 = vsub.f32 %v564, %v611
      %v621 = vld [vmem:[%s529] sm:$0xff]
      %v622 = vld [vmem:[%s529 + $0x8] sm:$0xff]
      %v623 = vld [vmem:[%s529 + $0x10] sm:$0xff]
      %v624 = vld [vmem:[%s529 + $0x18] sm:$0xff]
      %v625 = vld [vmem:[%s529 + $0x20] sm:$0xff]
      %v626 = vld [vmem:[%s529 + $0x28] sm:$0xff]
      %v627 = vld [vmem:[%s529 + $0x30] sm:$0xff]
      %v628 = vld [vmem:[%s529 + $0x38] sm:$0xff]
      %630 = vset.pattern.permute.xlu0 0
      %631 = vperm.xlu0 %630, %v621
      %v632 = vpop.permute.xlu0 %631
      %635 = vset.pattern.permute.xlu0 0
      %636 = vperm.xlu0 %635, %v622
      %v637 = vpop.permute.xlu0 %636
      %640 = vset.pattern.permute.xlu0 0
      %641 = vperm.xlu0 %640, %v623
      %v642 = vpop.permute.xlu0 %641
      %645 = vset.pattern.permute.xlu0 0
      %646 = vperm.xlu0 %645, %v624
      %v647 = vpop.permute.xlu0 %646
      %650 = vset.pattern.permute.xlu0 0
      %651 = vperm.xlu0 %650, %v625
      %v652 = vpop.permute.xlu0 %651
      %655 = vset.pattern.permute.xlu0 0
      %656 = vperm.xlu0 %655, %v626
      %v657 = vpop.permute.xlu0 %656
      %660 = vset.pattern.permute.xlu0 0
      %661 = vperm.xlu0 %660, %v627
      %v662 = vpop.permute.xlu0 %661
      %665 = vset.pattern.permute.xlu0 0
      %666 = vperm.xlu0 %665, %v628
      %v667 = vpop.permute.xlu0 %666
      %v669 = vmul.f32 %v613, %v632
      %v670 = vmul.f32 %v614, %v637
      %v671 = vmul.f32 %v615, %v642
      %v672 = vmul.f32 %v616, %v647
      %v673 = vmul.f32 %v617, %v652
      %v674 = vmul.f32 %v618, %v657
      %v675 = vmul.f32 %v619, %v662
      %v676 = vmul.f32 %v620, %v667
      %v677 = vld [vmem:[%s3] sm:$0xff]
      %v678 = vld [vmem:[%s3 + $0x8] sm:$0xff]
      %v679 = vld [vmem:[%s3 + $0x10] sm:$0xff]
      %v680 = vld [vmem:[%s3 + $0x18] sm:$0xff]
      %v681 = vld [vmem:[%s3 + $0x20] sm:$0xff]
      %v682 = vld [vmem:[%s3 + $0x28] sm:$0xff]
      %v683 = vld [vmem:[%s3 + $0x30] sm:$0xff]
      %v684 = vld [vmem:[%s3 + $0x38] sm:$0xff]
      %686 = vset.pattern.permute.xlu0 0
      %687 = vperm.xlu0 %686, %v677
      %v688 = vpop.permute.xlu0 %687
      %691 = vset.pattern.permute.xlu0 0
      %692 = vperm.xlu0 %691, %v678
      %v693 = vpop.permute.xlu0 %692
      %696 = vset.pattern.permute.xlu0 0
      %697 = vperm.xlu0 %696, %v679
      %v698 = vpop.permute.xlu0 %697
      %701 = vset.pattern.permute.xlu0 0
      %702 = vperm.xlu0 %701, %v680
      %v703 = vpop.permute.xlu0 %702
      %706 = vset.pattern.permute.xlu0 0
      %707 = vperm.xlu0 %706, %v681
      %v708 = vpop.permute.xlu0 %707
      %711 = vset.pattern.permute.xlu0 0
      %712 = vperm.xlu0 %711, %v682
      %v713 = vpop.permute.xlu0 %712
      %716 = vset.pattern.permute.xlu0 0
      %717 = vperm.xlu0 %716, %v683
      %v718 = vpop.permute.xlu0 %717
      %721 = vset.pattern.permute.xlu0 0
      %722 = vperm.xlu0 %721, %v684
      %v723 = vpop.permute.xlu0 %722
      %v725 = vmul.f32 %v669, %v688
      %v726 = vmul.f32 %v670, %v693
      %v727 = vmul.f32 %v671, %v698
      %v728 = vmul.f32 %v672, %v703
      %v729 = vmul.f32 %v673, %v708
      %v730 = vmul.f32 %v674, %v713
      %v731 = vmul.f32 %v675, %v718
      %v732 = vmul.f32 %v676, %v723
      %v733 = vld [vmem:[%s4] sm:$0xff]
      %v734 = vld [vmem:[%s4 + $0x8] sm:$0xff]
      %v735 = vld [vmem:[%s4 + $0x10] sm:$0xff]
      %v736 = vld [vmem:[%s4 + $0x18] sm:$0xff]
      %v737 = vld [vmem:[%s4 + $0x20] sm:$0xff]
      %v738 = vld [vmem:[%s4 + $0x28] sm:$0xff]
      %v739 = vld [vmem:[%s4 + $0x30] sm:$0xff]
      %v740 = vld [vmem:[%s4 + $0x38] sm:$0xff]
      %742 = vset.pattern.permute.xlu0 0
      %743 = vperm.xlu0 %742, %v733
      %v744 = vpop.permute.xlu0 %743
      %747 = vset.pattern.permute.xlu0 0
      %748 = vperm.xlu0 %747, %v734
      %v749 = vpop.permute.xlu0 %748
      %752 = vset.pattern.permute.xlu0 0
      %753 = vperm.xlu0 %752, %v735
      %v754 = vpop.permute.xlu0 %753
      %757 = vset.pattern.permute.xlu0 0
      %758 = vperm.xlu0 %757, %v736
      %v759 = vpop.permute.xlu0 %758
      %762 = vset.pattern.permute.xlu0 0
      %763 = vperm.xlu0 %762, %v737
      %v764 = vpop.permute.xlu0 %763
      %767 = vset.pattern.permute.xlu0 0
      %768 = vperm.xlu0 %767, %v738
      %v769 = vpop.permute.xlu0 %768
      %772 = vset.pattern.permute.xlu0 0
      %773 = vperm.xlu0 %772, %v739
      %v774 = vpop.permute.xlu0 %773
      %777 = vset.pattern.permute.xlu0 0
      %778 = vperm.xlu0 %777, %v740
      %v779 = vpop.permute.xlu0 %778
      %v781 = vadd.f32 %v725, %v744
      %v782 = vadd.f32 %v726, %v749
      %v783 = vadd.f32 %v727, %v754
      %v784 = vadd.f32 %v728, %v759
      %v785 = vadd.f32 %v729, %v764
      %v786 = vadd.f32 %v730, %v769
      %v787 = vadd.f32 %v731, %v774
      %v788 = vadd.f32 %v732, %v779
      %v789 = vpack.c.bf16 %v782, %v781
      %v790 = vpack.c.bf16 %v784, %v783
      %v791 = vpack.c.bf16 %v786, %v785
      %v792 = vpack.c.bf16 %v788, %v787
      %v793 = vld [vmem:[%s5] sm:$0xf]
      %v794 = vld [vmem:[%s5 + $0x4] sm:$0xf]
      %v795 = vld [vmem:[%s5 + $0x8] sm:$0xf]
      %v796 = vld [vmem:[%s5 + $0xc] sm:$0xf]
      %v797 = vld [vmem:[%s5 + $0x10] sm:$0xf]
      %v798 = vld [vmem:[%s5 + $0x14] sm:$0xf]
      %v799 = vld [vmem:[%s5 + $0x18] sm:$0xf]
      %v800 = vld [vmem:[%s5 + $0x1c] sm:$0xf]
      %v801 = vld [vmem:[%s8] sm:$0xff]
      %v802 = vld [vmem:[%s8 + $0x8] sm:$0xff]
      %v803 = vld [vmem:[%s8 + $0x10] sm:$0xff]
      %v804 = vld [vmem:[%s8 + $0x18] sm:$0xff]
      %v805 = vld [vmem:[%s8 + $0x20] sm:$0xff]
      %v806 = vld [vmem:[%s8 + $0x28] sm:$0xff]
      %v807 = vld [vmem:[%s8 + $0x30] sm:$0xff]
      %v808 = vld [vmem:[%s8 + $0x38] sm:$0xff]
      %810 = vset.pattern.permute.xlu0 0
      %811 = vperm.xlu0 %810, %v801
      %v812 = vpop.permute.xlu0 %811
      %815 = vset.pattern.permute.xlu0 0
      %816 = vperm.xlu0 %815, %v802
      %v817 = vpop.permute.xlu0 %816
      %820 = vset.pattern.permute.xlu0 0
      %821 = vperm.xlu0 %820, %v803
      %v822 = vpop.permute.xlu0 %821
      %825 = vset.pattern.permute.xlu0 0
      %826 = vperm.xlu0 %825, %v804
      %v827 = vpop.permute.xlu0 %826
      %830 = vset.pattern.permute.xlu0 0
      %831 = vperm.xlu0 %830, %v805
      %v832 = vpop.permute.xlu0 %831
      %835 = vset.pattern.permute.xlu0 0
      %836 = vperm.xlu0 %835, %v806
      %v837 = vpop.permute.xlu0 %836
      %840 = vset.pattern.permute.xlu0 0
      %841 = vperm.xlu0 %840, %v807
      %v842 = vpop.permute.xlu0 %841
      %845 = vset.pattern.permute.xlu0 0
      %846 = vperm.xlu0 %845, %v808
      %v847 = vpop.permute.xlu0 %846
      %v857 = vunpack.c.l.b16 %v793
      %v858 = vunpack.c.l.b16 %v794
      %v859 = vunpack.c.l.b16 %v795
      %v860 = vunpack.c.l.b16 %v796
      %v861 = vunpack.c.l.b16 %v797
      %v862 = vunpack.c.l.b16 %v798
      %v863 = vunpack.c.l.b16 %v799
      %v864 = vunpack.c.l.b16 %v800
      %v865 = vpack.c.b16 %v858, %v857
      %v866 = vpack.c.b16 %v860, %v859
      %v867 = vpack.c.b16 %v862, %v861
      %v868 = vpack.c.b16 %v864, %v863
      %vm869 = vcmask 523264
      %v871 = vsel %vm869, %v865, 0
      %v874 = vsel %vm869, %v866, 0
      %v877 = vsel %vm869, %v867, 0
      %v880 = vsel %vm869, %v868, 0
      %882 = vmatprep.subr.bf16.mxu0 0
      %883 = vmatpush1.bf16.msra.mxu0 %v789
      %884 = vmatprep.subr.bf16.mxu0 0
      %885 = vmatpush1.bf16.msra.mxu0 %v790
      %886 = vmatprep.subr.bf16.mxu0 0
      %887 = vmatpush1.bf16.msra.mxu0 %v791
      %888 = vmatprep.subr.bf16.mxu0 0
      %889 = vmatpush1.bf16.msra.mxu0 %v792
      %890 = vmatprep.subr.bf16.mxu0 0
      %891 = vmatpush1.bf16.msra.mxu0 0
      %892 = vmatprep.subr.bf16.mxu0 0
      %893 = vmatpush1.bf16.msra.mxu0 0
      %894 = vmatprep.subr.bf16.mxu0 0
      %895 = vmatpush1.bf16.msra.mxu0 0
      %896 = vmatprep.subr.bf16.mxu0 0
      %897 = vmatpush1.bf16.msra.mxu0 0
      %898 = vmatprep.subr.bf16.mxu0 0
      %899 = vmatpush1.bf16.msra.mxu0 0
      %900 = vmatprep.subr.bf16.mxu0 0
      %901 = vmatpush1.bf16.msra.mxu0 0
      %902 = vmatprep.subr.bf16.mxu0 0
      %903 = vmatpush1.bf16.msra.mxu0 0
      %904 = vmatprep.subr.bf16.mxu0 0
      %905 = vmatpush1.bf16.msra.mxu0 0
      %906 = vmatprep.subr.bf16.mxu0 0
      %907 = vmatpush1.bf16.msra.mxu0 0
      %908 = vmatprep.subr.bf16.mxu0 0
      %909 = vmatpush1.bf16.msra.mxu0 0
      %910 = vmatprep.subr.bf16.mxu0 0
      %911 = vmatpush1.bf16.msra.mxu0 0
      %912 = vmatprep.subr.bf16.mxu0 0
      %913 = vmatpush1.bf16.msra.mxu0 0
      %914 = vmatprep.mubr.bf16.mxu0 0
      %915 = vmatmul.mubr.bf16.gmra.mrb[0].mxu0 %v871
      %v916 = vpop.f32.mrb[0].mxu0
      %v917 = vadd.f32 %v812, %v916
      %v918 = vpop.f32.mrb[0].mxu0
      %v919 = vpop.f32.mrb[0].mxu0
      %v920 = vadd.f32 %v817, %v919
      %v921 = vpop.f32.mrb[0].mxu0
      %922 = vmatprep.mubr.bf16.mxu0 0
      %923 = vmatmul.mubr.bf16.gmra.mrb[0].mxu0 %v874
      %v924 = vpop.f32.mrb[0].mxu0
      %v925 = vadd.f32 %v822, %v924
      %v926 = vpop.f32.mrb[0].mxu0
      %v927 = vpop.f32.mrb[0].mxu0
      %v928 = vadd.f32 %v827, %v927
      %v929 = vpop.f32.mrb[0].mxu0
      %930 = vmatprep.mubr.bf16.mxu0 0
      %931 = vmatmul.mubr.bf16.gmra.mrb[0].mxu0 %v877
      %v932 = vpop.f32.mrb[0].mxu0
      %v933 = vadd.f32 %v832, %v932
      %v934 = vpop.f32.mrb[0].mxu0
      %v935 = vpop.f32.mrb[0].mxu0
      %v936 = vadd.f32 %v837, %v935
      %v937 = vpop.f32.mrb[0].mxu0
      %938 = vmatprep.mubr.bf16.mxu0 0
      %939 = vmatmul.mubr.bf16.gmra.mrb[0].mxu0 %v880
      %v940 = vpop.f32.mrb[0].mxu0
      %v941 = vadd.f32 %v842, %v940
      %v942 = vpop.f32.mrb[0].mxu0
      %v943 = vpop.f32.mrb[0].mxu0
      %v944 = vadd.f32 %v847, %v943
      %v945 = vpop.f32.mrb[0].mxu0
      %946 = vdwg.mxu0
      %v947 = vmul.f32 %v917, 0.125
      %v948 = vmul.f32 %v920, 0.125
      %v949 = vmul.f32 %v925, 0.125
      %v950 = vmul.f32 %v928, 0.125
      %v951 = vmul.f32 %v933, 0.125
      %v952 = vmul.f32 %v936, 0.125
      %v953 = vmul.f32 %v941, 0.125
      %v954 = vmul.f32 %v944, 0.125
      %v955 = vpack.c.bf16 %v948, %v947
      %v956 = vpack.c.bf16 %v950, %v949
      %v957 = vpack.c.bf16 %v952, %v951
      %v958 = vpack.c.bf16 %v954, %v953
      %v963 = vunpack.c.l.b16 %v955
      %v964 = vunpack.c.h.b16 %v955
      %v965 = vunpack.c.l.b16 %v956
      %v966 = vunpack.c.h.b16 %v956
      %v967 = vunpack.c.l.b16 %v957
      %v968 = vunpack.c.h.b16 %v957
      %v969 = vunpack.c.l.b16 %v958
      %v970 = vunpack.c.h.b16 %v958
      %v971 = vpack.c.b16 %v963, %v963
      %v972 = vpack.c.b16 %v964, %v964
      %v973 = vpack.c.b16 %v965, %v965
      %v974 = vpack.c.b16 %v966, %v966
      %v975 = vpack.c.b16 %v967, %v967
      %v976 = vpack.c.b16 %v968, %v968
      %v977 = vpack.c.b16 %v969, %v969
      %v978 = vpack.c.b16 %v970, %v970
      %vm987 = vcmask 519168
      %988 = vst.msk [vmem:[%s537] sm:$0xf] %vm987, %v971
      %989 = vst.msk [vmem:[%s537 + $0x4] sm:$0xf] %vm987, %v972
      %990 = vst.msk [vmem:[%s537 + $0x8] sm:$0xf] %vm987, %v973
      %991 = vst.msk [vmem:[%s537 + $0xc] sm:$0xf] %vm987, %v974
      %992 = vst.msk [vmem:[%s537 + $0x10] sm:$0xf] %vm987, %v975
      %993 = vst.msk [vmem:[%s537 + $0x14] sm:$0xf] %vm987, %v976
      %994 = vst.msk [vmem:[%s537 + $0x18] sm:$0xf] %vm987, %v977
      %995 = vst.msk [vmem:[%s537 + $0x1c] sm:$0xf] %vm987, %v978
      %v996 = vld [vmem:[%s6] sm:$0xf]
      %v997 = vld [vmem:[%s6 + $0x4] sm:$0xf]
      %v998 = vld [vmem:[%s6 + $0x8] sm:$0xf]
      %v999 = vld [vmem:[%s6 + $0xc] sm:$0xf]
      %v1000 = vld [vmem:[%s6 + $0x10] sm:$0xf]
      %v1001 = vld [vmem:[%s6 + $0x14] sm:$0xf]
      %v1002 = vld [vmem:[%s6 + $0x18] sm:$0xf]
      %v1003 = vld [vmem:[%s6 + $0x1c] sm:$0xf]
      %v1004 = vld [vmem:[%s9] sm:$0xff]
      %v1005 = vld [vmem:[%s9 + $0x8] sm:$0xff]
      %v1006 = vld [vmem:[%s9 + $0x10] sm:$0xff]
      %v1007 = vld [vmem:[%s9 + $0x18] sm:$0xff]
      %v1008 = vld [vmem:[%s9 + $0x20] sm:$0xff]
      %v1009 = vld [vmem:[%s9 + $0x28] sm:$0xff]
      %v1010 = vld [vmem:[%s9 + $0x30] sm:$0xff]
      %v1011 = vld [vmem:[%s9 + $0x38] sm:$0xff]
      %1013 = vset.pattern.permute.xlu0 0
      %1014 = vperm.xlu0 %1013, %v1004
      %v1015 = vpop.permute.xlu0 %1014
      %1018 = vset.pattern.permute.xlu0 0
      %1019 = vperm.xlu0 %1018, %v1005
      %v1020 = vpop.permute.xlu0 %1019
      %1023 = vset.pattern.permute.xlu0 0
      %1024 = vperm.xlu0 %1023, %v1006
      %v1025 = vpop.permute.xlu0 %1024
      %1028 = vset.pattern.permute.xlu0 0
      %1029 = vperm.xlu0 %1028, %v1007
      %v1030 = vpop.permute.xlu0 %1029
      %1033 = vset.pattern.permute.xlu0 0
      %1034 = vperm.xlu0 %1033, %v1008
      %v1035 = vpop.permute.xlu0 %1034
      %1038 = vset.pattern.permute.xlu0 0
      %1039 = vperm.xlu0 %1038, %v1009
      %v1040 = vpop.permute.xlu0 %1039
      %1043 = vset.pattern.permute.xlu0 0
      %1044 = vperm.xlu0 %1043, %v1010
      %v1045 = vpop.permute.xlu0 %1044
      %1048 = vset.pattern.permute.xlu0 0
      %1049 = vperm.xlu0 %1048, %v1011
      %v1050 = vpop.permute.xlu0 %1049
      %v1060 = vunpack.c.l.b16 %v996
      %v1061 = vunpack.c.l.b16 %v997
      %v1062 = vunpack.c.l.b16 %v998
      %v1063 = vunpack.c.l.b16 %v999
      %v1064 = vunpack.c.l.b16 %v1000
      %v1065 = vunpack.c.l.b16 %v1001
      %v1066 = vunpack.c.l.b16 %v1002
      %v1067 = vunpack.c.l.b16 %v1003
      %v1068 = vpack.c.b16 %v1061, %v1060
      %v1069 = vpack.c.b16 %v1063, %v1062
      %v1070 = vpack.c.b16 %v1065, %v1064
      %v1071 = vpack.c.b16 %v1067, %v1066
      %v1073 = vsel %vm869, %v1068, 0
      %v1076 = vsel %vm869, %v1069, 0
      %v1079 = vsel %vm869, %v1070, 0
      %v1082 = vsel %vm869, %v1071, 0
      %1084 = vmatprep.subr.bf16.mxu0 0
      %1085 = vmatpush1.bf16.msra.mxu0 %v789
      %1086 = vmatprep.subr.bf16.mxu0 0
      %1087 = vmatpush1.bf16.msra.mxu0 %v790
      %1088 = vmatprep.subr.bf16.mxu0 0
      %1089 = vmatpush1.bf16.msra.mxu0 %v791
      %1090 = vmatprep.subr.bf16.mxu0 0
      %1091 = vmatpush1.bf16.msra.mxu0 %v792
      %1092 = vmatprep.subr.bf16.mxu0 0
      %1093 = vmatpush1.bf16.msra.mxu0 0
      %1094 = vmatprep.subr.bf16.mxu0 0
      %1095 = vmatpush1.bf16.msra.mxu0 0
      %1096 = vmatprep.subr.bf16.mxu0 0
      %1097 = vmatpush1.bf16.msra.mxu0 0
      %1098 = vmatprep.subr.bf16.mxu0 0
      %1099 = vmatpush1.bf16.msra.mxu0 0
      %1100 = vmatprep.subr.bf16.mxu0 0
      %1101 = vmatpush1.bf16.msra.mxu0 0
      %1102 = vmatprep.subr.bf16.mxu0 0
      %1103 = vmatpush1.bf16.msra.mxu0 0
      %1104 = vmatprep.subr.bf16.mxu0 0
      %1105 = vmatpush1.bf16.msra.mxu0 0
      %1106 = vmatprep.subr.bf16.mxu0 0
      %1107 = vmatpush1.bf16.msra.mxu0 0
      %1108 = vmatprep.subr.bf16.mxu0 0
      %1109 = vmatpush1.bf16.msra.mxu0 0
      %1110 = vmatprep.subr.bf16.mxu0 0
      %1111 = vmatpush1.bf16.msra.mxu0 0
      %1112 = vmatprep.subr.bf16.mxu0 0
      %1113 = vmatpush1.bf16.msra.mxu0 0
      %1114 = vmatprep.subr.bf16.mxu0 0
      %1115 = vmatpush1.bf16.msra.mxu0 0
      %1116 = vmatprep.mubr.bf16.mxu0 0
      %1117 = vmatmul.mubr.bf16.gmra.mrb[0].mxu0 %v1073
      %v1118 = vpop.f32.mrb[0].mxu0
      %v1119 = vadd.f32 %v1015, %v1118
      %v1120 = vpop.f32.mrb[0].mxu0
      %v1121 = vpop.f32.mrb[0].mxu0
      %v1122 = vadd.f32 %v1020, %v1121
      %v1123 = vpop.f32.mrb[0].mxu0
      %1124 = vmatprep.mubr.bf16.mxu0 0
      %1125 = vmatmul.mubr.bf16.gmra.mrb[0].mxu0 %v1076
      %v1126 = vpop.f32.mrb[0].mxu0
      %v1127 = vadd.f32 %v1025, %v1126
      %v1128 = vpop.f32.mrb[0].mxu0
      %v1129 = vpop.f32.mrb[0].mxu0
      %v1130 = vadd.f32 %v1030, %v1129
      %v1131 = vpop.f32.mrb[0].mxu0
      %1132 = vmatprep.mubr.bf16.mxu0 0
      %1133 = vmatmul.mubr.bf16.gmra.mrb[0].mxu0 %v1079
      %v1134 = vpop.f32.mrb[0].mxu0
      %v1135 = vadd.f32 %v1035, %v1134
      %v1136 = vpop.f32.mrb[0].mxu0
      %v1137 = vpop.f32.mrb[0].mxu0
      %v1138 = vadd.f32 %v1040, %v1137
      %v1139 = vpop.f32.mrb[0].mxu0
      %1140 = vmatprep.mubr.bf16.mxu0 0
      %1141 = vmatmul.mubr.bf16.gmra.mrb[0].mxu0 %v1082
      %v1142 = vpop.f32.mrb[0].mxu0
      %v1143 = vadd.f32 %v1045, %v1142
      %v1144 = vpop.f32.mrb[0].mxu0
      %v1145 = vpop.f32.mrb[0].mxu0
      %v1146 = vadd.f32 %v1050, %v1145
      %v1147 = vpop.f32.mrb[0].mxu0
      %1148 = vdwg.mxu0
      %1149 = vxpose.xlu0.b32.start [1/16] %v1119, 128
      %1150 = vxpose.xlu0.b32.cont [2/16] %v1122, 128
      %1151 = vxpose.xlu0.b32.cont [3/16] %v1127, 128
      %1152 = vxpose.xlu0.b32.cont [4/16] %v1130, 128
      %1153 = vxpose.xlu0.b32.cont [5/16] %v1135, 128
      %1154 = vxpose.xlu0.b32.cont [6/16] %v1138, 128
      %1155 = vxpose.xlu0.b32.cont [7/16] %v1143, 128
      %1156 = vxpose.xlu0.b32.cont [8/16] %v1146, 128
      %1157 = vxpose.xlu0.b32.cont [9/16] 0.0, 128
      %1158 = vxpose.xlu0.b32.cont [10/16] 0.0, 128
      %1159 = vxpose.xlu0.b32.cont [11/16] 0.0, 128
      %1160 = vxpose.xlu0.b32.cont [12/16] 0.0, 128
      %1161 = vxpose.xlu0.b32.cont [13/16] 0.0, 128
      %1162 = vxpose.xlu0.b32.cont [14/16] 0.0, 128
      %1163 = vxpose.xlu0.b32.cont [15/16] 0.0, 128
      %1164 = vxpose.xlu0.b32.end [16/16] 0.0, 128
      %v1165 = vpop.trf.xlu0
      %v1166 = vpop.trf.xlu0
      %v1167 = vpop.trf.xlu0
      %v1168 = vpop.trf.xlu0
      %v1169 = vpop.trf.xlu0
      %v1170 = vpop.trf.xlu0
      %v1171 = vpop.trf.xlu0
      %v1172 = vpop.trf.xlu0
      %v1173 = vpop.trf.xlu0
      %v1174 = vpop.trf.xlu0
      %v1175 = vpop.trf.xlu0
      %v1176 = vpop.trf.xlu0
      %v1177 = vpop.trf.xlu0
      %v1178 = vpop.trf.xlu0
      %v1179 = vpop.trf.xlu0
      %v1180 = vpop.trf.xlu0
      %v1181 = vpack.c.bf16 %v1166, %v1165
      %v1182 = vpack.c.bf16 %v1168, %v1167
      %v1183 = vpack.c.bf16 %v1170, %v1169
      %v1184 = vpack.c.bf16 %v1172, %v1171
      %v1189 = vunpack.c.l.b16 %v1181
      %v1190 = vunpack.c.h.b16 %v1181
      %v1191 = vunpack.c.l.b16 %v1182
      %v1192 = vunpack.c.h.b16 %v1182
      %v1193 = vunpack.c.l.b16 %v1183
      %v1194 = vunpack.c.h.b16 %v1183
      %v1195 = vunpack.c.l.b16 %v1184
      %v1196 = vunpack.c.h.b16 %v1184
      %v1197 = vpack.c.b16 %v1189, %v1189
      %v1198 = vpack.c.b16 %v1190, %v1190
      %v1199 = vpack.c.b16 %v1191, %v1191
      %v1200 = vpack.c.b16 %v1192, %v1192
      %v1201 = vpack.c.b16 %v1193, %v1193
      %v1202 = vpack.c.b16 %v1194, %v1194
      %v1203 = vpack.c.b16 %v1195, %v1195
      %v1204 = vpack.c.b16 %v1196, %v1196
      %1213 = vst.msk [vmem:[%s546] sm:$0xf] %vm987, %v1197
      %1214 = vst.msk [vmem:[%s546 + $0x4] sm:$0xf] %vm987, %v1198
      %1215 = vst.msk [vmem:[%s546 + $0x8] sm:$0xf] %vm987, %v1199
      %1216 = vst.msk [vmem:[%s546 + $0xc] sm:$0xf] %vm987, %v1200
      %1217 = vst.msk [vmem:[%s546 + $0x10] sm:$0xf] %vm987, %v1201
      %1218 = vst.msk [vmem:[%s546 + $0x14] sm:$0xf] %vm987, %v1202
      %1219 = vst.msk [vmem:[%s546 + $0x18] sm:$0xf] %vm987, %v1203
      %1220 = vst.msk [vmem:[%s546 + $0x1c] sm:$0xf] %vm987, %v1204
      %v1221 = vld [vmem:[%s7] sm:$0xf]
      %v1222 = vld [vmem:[%s7 + $0x4] sm:$0xf]
      %v1223 = vld [vmem:[%s7 + $0x8] sm:$0xf]
      %v1224 = vld [vmem:[%s7 + $0xc] sm:$0xf]
      %v1225 = vld [vmem:[%s7 + $0x10] sm:$0xf]
      %v1226 = vld [vmem:[%s7 + $0x14] sm:$0xf]
      %v1227 = vld [vmem:[%s7 + $0x18] sm:$0xf]
      %v1228 = vld [vmem:[%s7 + $0x1c] sm:$0xf]
      %v1229 = vld [vmem:[%s10] sm:$0xff]
      %v1230 = vld [vmem:[%s10 + $0x8] sm:$0xff]
      %v1231 = vld [vmem:[%s10 + $0x10] sm:$0xff]
      %v1232 = vld [vmem:[%s10 + $0x18] sm:$0xff]
      %v1233 = vld [vmem:[%s10 + $0x20] sm:$0xff]
      %v1234 = vld [vmem:[%s10 + $0x28] sm:$0xff]
      %v1235 = vld [vmem:[%s10 + $0x30] sm:$0xff]
      %v1236 = vld [vmem:[%s10 + $0x38] sm:$0xff]
      %1238 = vset.pattern.permute.xlu0 0
      %1239 = vperm.xlu0 %1238, %v1229
      %v1240 = vpop.permute.xlu0 %1239
      %1243 = vset.pattern.permute.xlu0 0
      %1244 = vperm.xlu0 %1243, %v1230
      %v1245 = vpop.permute.xlu0 %1244
      %1248 = vset.pattern.permute.xlu0 0
      %1249 = vperm.xlu0 %1248, %v1231
      %v1250 = vpop.permute.xlu0 %1249
      %1253 = vset.pattern.permute.xlu0 0
      %1254 = vperm.xlu0 %1253, %v1232
      %v1255 = vpop.permute.xlu0 %1254
      %1258 = vset.pattern.permute.xlu0 0
      %1259 = vperm.xlu0 %1258, %v1233
      %v1260 = vpop.permute.xlu0 %1259
      %1263 = vset.pattern.permute.xlu0 0
      %1264 = vperm.xlu0 %1263, %v1234
      %v1265 = vpop.permute.xlu0 %1264
      %1268 = vset.pattern.permute.xlu0 0
      %1269 = vperm.xlu0 %1268, %v1235
      %v1270 = vpop.permute.xlu0 %1269
      %1273 = vset.pattern.permute.xlu0 0
      %1274 = vperm.xlu0 %1273, %v1236
      %v1275 = vpop.permute.xlu0 %1274
      %v1285 = vunpack.c.l.b16 %v1221
      %v1286 = vunpack.c.l.b16 %v1222
      %v1287 = vunpack.c.l.b16 %v1223
      %v1288 = vunpack.c.l.b16 %v1224
      %v1289 = vunpack.c.l.b16 %v1225
      %v1290 = vunpack.c.l.b16 %v1226
      %v1291 = vunpack.c.l.b16 %v1227
      %v1292 = vunpack.c.l.b16 %v1228
      %v1293 = vpack.c.b16 %v1286, %v1285
      %v1294 = vpack.c.b16 %v1288, %v1287
      %v1295 = vpack.c.b16 %v1290, %v1289
      %v1296 = vpack.c.b16 %v1292, %v1291
      %v1298 = vsel %vm869, %v1293, 0
      %v1301 = vsel %vm869, %v1294, 0
      %v1304 = vsel %vm869, %v1295, 0
      %v1307 = vsel %vm869, %v1296, 0
      %1309 = vmatprep.subr.bf16.mxu0 0
      %1310 = vmatpush1.bf16.msra.mxu0 %v789
      %1311 = vmatprep.subr.bf16.mxu0 0
      %1312 = vmatpush1.bf16.msra.mxu0 %v790
      %1313 = vmatprep.subr.bf16.mxu0 0
      %1314 = vmatpush1.bf16.msra.mxu0 %v791
      %1315 = vmatprep.subr.bf16.mxu0 0
      %1316 = vmatpush1.bf16.msra.mxu0 %v792
      %1317 = vmatprep.subr.bf16.mxu0 0
      %1318 = vmatpush1.bf16.msra.mxu0 0
      %1319 = vmatprep.subr.bf16.mxu0 0
      %1320 = vmatpush1.bf16.msra.mxu0 0
      %1321 = vmatprep.subr.bf16.mxu0 0
      %1322 = vmatpush1.bf16.msra.mxu0 0
      %1323 = vmatprep.subr.bf16.mxu0 0
      %1324 = vmatpush1.bf16.msra.mxu0 0
      %1325 = vmatprep.subr.bf16.mxu0 0
      %1326 = vmatpush1.bf16.msra.mxu0 0
      %1327 = vmatprep.subr.bf16.mxu0 0
      %1328 = vmatpush1.bf16.msra.mxu0 0
      %1329 = vmatprep.subr.bf16.mxu0 0
      %1330 = vmatpush1.bf16.msra.mxu0 0
      %1331 = vmatprep.subr.bf16.mxu0 0
      %1332 = vmatpush1.bf16.msra.mxu0 0
      %1333 = vmatprep.subr.bf16.mxu0 0
      %1334 = vmatpush1.bf16.msra.mxu0 0
      %1335 = vmatprep.subr.bf16.mxu0 0
      %1336 = vmatpush1.bf16.msra.mxu0 0
      %1337 = vmatprep.subr.bf16.mxu0 0
      %1338 = vmatpush1.bf16.msra.mxu0 0
      %1339 = vmatprep.subr.bf16.mxu0 0
      %1340 = vmatpush1.bf16.msra.mxu0 0
      %1341 = vmatprep.mubr.bf16.mxu0 0
      %1342 = vmatmul.mubr.bf16.gmra.mrb[0].mxu0 %v1298
      %v1343 = vpop.f32.mrb[0].mxu0
      %v1344 = vadd.f32 %v1240, %v1343
      %v1345 = vpop.f32.mrb[0].mxu0
      %v1346 = vpop.f32.mrb[0].mxu0
      %v1347 = vadd.f32 %v1245, %v1346
      %v1348 = vpop.f32.mrb[0].mxu0
      %1349 = vmatprep.mubr.bf16.mxu0 0
      %1350 = vmatmul.mubr.bf16.gmra.mrb[0].mxu0 %v1301
      %v1351 = vpop.f32.mrb[0].mxu0
      %v1352 = vadd.f32 %v1250, %v1351
      %v1353 = vpop.f32.mrb[0].mxu0
      %v1354 = vpop.f32.mrb[0].mxu0
      %v1355 = vadd.f32 %v1255, %v1354
      %v1356 = vpop.f32.mrb[0].mxu0
      %1357 = vmatprep.mubr.bf16.mxu0 0
      %1358 = vmatmul.mubr.bf16.gmra.mrb[0].mxu0 %v1304
      %v1359 = vpop.f32.mrb[0].mxu0
      %v1360 = vadd.f32 %v1260, %v1359
      %v1361 = vpop.f32.mrb[0].mxu0
      %v1362 = vpop.f32.mrb[0].mxu0
      %v1363 = vadd.f32 %v1265, %v1362
      %v1364 = vpop.f32.mrb[0].mxu0
      %1365 = vmatprep.mubr.bf16.mxu0 0
      %1366 = vmatmul.mubr.bf16.gmra.mrb[0].mxu0 %v1307
      %v1367 = vpop.f32.mrb[0].mxu0
      %v1368 = vadd.f32 %v1270, %v1367
      %v1369 = vpop.f32.mrb[0].mxu0
      %v1370 = vpop.f32.mrb[0].mxu0
      %v1371 = vadd.f32 %v1275, %v1370
      %v1372 = vpop.f32.mrb[0].mxu0
      %1373 = vdwg.mxu0
      %v1374 = vpack.c.bf16 %v1347, %v1344
      %v1375 = vpack.c.bf16 %v1355, %v1352
      %v1376 = vpack.c.bf16 %v1363, %v1360
      %v1377 = vpack.c.bf16 %v1371, %v1368
      %v1382 = vunpack.c.l.b16 %v1374
      %v1383 = vunpack.c.h.b16 %v1374
      %v1384 = vunpack.c.l.b16 %v1375
      %v1385 = vunpack.c.h.b16 %v1375
      %v1386 = vunpack.c.l.b16 %v1376
      %v1387 = vunpack.c.h.b16 %v1376
      %v1388 = vunpack.c.l.b16 %v1377
      %v1389 = vunpack.c.h.b16 %v1377
      %v1390 = vpack.c.b16 %v1382, %v1382
      %v1391 = vpack.c.b16 %v1383, %v1383
      %v1392 = vpack.c.b16 %v1384, %v1384
      %v1393 = vpack.c.b16 %v1385, %v1385
      %v1394 = vpack.c.b16 %v1386, %v1386
      %v1395 = vpack.c.b16 %v1387, %v1387
      %v1396 = vpack.c.b16 %v1388, %v1388
      %v1397 = vpack.c.b16 %v1389, %v1389
      %1406 = vst.msk [vmem:[%s555] sm:$0xf] %vm987, %v1390
      %1407 = vst.msk [vmem:[%s555 + $0x4] sm:$0xf] %vm987, %v1391
      %1408 = vst.msk [vmem:[%s555 + $0x8] sm:$0xf] %vm987, %v1392
      %1409 = vst.msk [vmem:[%s555 + $0xc] sm:$0xf] %vm987, %v1393
      %1410 = vst.msk [vmem:[%s555 + $0x10] sm:$0xf] %vm987, %v1394
      %1411 = vst.msk [vmem:[%s555 + $0x14] sm:$0xf] %vm987, %v1395
      %1412 = vst.msk [vmem:[%s555 + $0x18] sm:$0xf] %vm987, %v1396
      %1413 = vst.msk [vmem:[%s555 + $0x1c] sm:$0xf] %vm987, %v1397
      %p1414 = scmp.lt.s32.totalorder %s29, 1
      %s1415 = scalar_select %p1414, %s29, 1
      %p1416 = scmp.lt.s32.totalorder %s30, 0
      %s1417 = scalar_select %p1416, %s30, 0
      %s1418 = smul.addr %s1415, 8
      %s1419 = sadd.s32 %s1417, %s1418
      %s1420 = smul.addr %s1419, 4
      %s1421 = scalar_lea.vmem %s11, %s1420
      %s1422 = smul.u32 8, %s30
      %p1423 = scmp.lt.s32.totalorder %s29, 1
      %s1424 = scalar_select %p1423, %s29, 1
      %p1425 = scmp.lt.s32.totalorder %s1422, 7
      %s1426 = scalar_select %p1425, %s1422, 7
      %s1427 = smul.addr %s1424, 8
      %s1428 = sadd.s32 %s1426, %s1427
      %s1429 = smul.addr %s1428, 4
      %s1430 = scalar_lea.vmem %s12, %s1429
      %p1431 = scmp.lt.s32.totalorder %s29, 1
      %s1432 = scalar_select %p1431, %s29, 1
      %p1433 = scmp.lt.s32.totalorder %s30, 0
      %s1434 = scalar_select %p1433, %s30, 0
      %s1435 = smul.addr %s1432, 8
      %s1436 = sadd.s32 %s1434, %s1435
      %s1437 = smul.addr %s1436, 4
      %s1438 = scalar_lea.vmem %s13, %s1437
      // Predicated region
      $region65: #{attn_block_pallas.4} parent=63 // pred_check
        %p1439 = pneg %p305
      $region66: #{attn_block_pallas.4} parent=63 // pred_check_branch
        %1441 = sbr.rel (%p1439) target = $region68
      $region67: #{attn_block_pallas.4} parent=63 // pred_region
        _
      $region68: #{attn_block_pallas.4} parent=63 // pred_fallthru
        _
      // Predicated region
      $region69: #{attn_block_pallas.4} parent=63 // pred_check
        %p1442 = pneg %p333
      $region70: #{attn_block_pallas.4} parent=63 // pred_check_branch
        %1444 = sbr.rel (%p1442) target = $region72
      $region71: #{attn_block_pallas.4} parent=63 // pred_region
        %s1445 = smul.u32 8, %s30
      $region72: #{attn_block_pallas.4} parent=63 // pred_fallthru
        _
      // Predicated region
      $region73: #{attn_block_pallas.4} parent=63 // pred_check
        %p1446 = pneg %p361
      $region74: #{attn_block_pallas.4} parent=63 // pred_check_branch
        %1448 = sbr.rel (%p1446) target = $region76
      $region75: #{attn_block_pallas.4} parent=63 // pred_region
        _
      $region76: #{attn_block_pallas.4} parent=63 // pred_fallthru
        _
    $region64: #{attn_block_pallas.4} parent=5 // pred_fallthru
      _
    %p1449 = scmp.le.s32.totalorder 2, %s20
    // Predicated region
    $region77: #{attn_block_pallas.4} parent=5 // pred_check
      %p1450 = pneg %p1449
    $region78: #{attn_block_pallas.4} parent=5 // pred_check_branch
      %1452 = sbr.rel (%p1450) target = $region80
    $region79: #{attn_block_pallas.4} parent=5 // pred_region
      %s1453 = ssub.s32 %s20, 2
      // Predicated region
      $region81: #{attn_block_pallas.4} parent=79 // pred_check
        %p1454 = pneg %p311
      $region82: #{attn_block_pallas.4} parent=79 // pred_check_branch
        %1456 = sbr.rel (%p1454) target = $region84
      $region83: #{attn_block_pallas.4} parent=79 // pred_region
        %p1457 = scmp.lt.s32.totalorder %s31, 1
        %s1458 = scalar_select %p1457, %s31, 1
        %p1459 = scmp.lt.s32.totalorder %s32, 0
        %s1460 = scalar_select %p1459, %s32, 0
        %s1461 = smul.addr %s1458, 8
        %s1462 = sadd.s32 %s1460, %s1461
        %s1463 = smul.addr %s1462, 4
        %s1464 = scalar_lea.vmem %s11, %s1463
      $region84: #{attn_block_pallas.4} parent=79 // pred_fallthru
        _
      // Predicated region
      $region85: #{attn_block_pallas.4} parent=79 // pred_check
        %p1465 = pneg %p339
      $region86: #{attn_block_pallas.4} parent=79 // pred_check_branch
        %1467 = sbr.rel (%p1465) target = $region88
      $region87: #{attn_block_pallas.4} parent=79 // pred_region
        %s1468 = smul.u32 8, %s32
        %p1469 = scmp.lt.s32.totalorder %s31, 1
        %s1470 = scalar_select %p1469, %s31, 1
        %p1471 = scmp.lt.s32.totalorder %s1468, 7
        %s1472 = scalar_select %p1471, %s1468, 7
        %s1473 = smul.addr %s1470, 8
        %s1474 = sadd.s32 %s1472, %s1473
        %s1475 = smul.addr %s1474, 4
        %s1476 = scalar_lea.vmem %s12, %s1475
      $region88: #{attn_block_pallas.4} parent=79 // pred_fallthru
        _
      // Predicated region
      $region89: #{attn_block_pallas.4} parent=79 // pred_check
        %p1477 = pneg %p367
      $region90: #{attn_block_pallas.4} parent=79 // pred_check_branch
        %1479 = sbr.rel (%p1477) target = $region92
      $region91: #{attn_block_pallas.4} parent=79 // pred_region
        %p1480 = scmp.lt.s32.totalorder %s31, 1
        %s1481 = scalar_select %p1480, %s31, 1
        %p1482 = scmp.lt.s32.totalorder %s32, 0
        %s1483 = scalar_select %p1482, %s32, 0
        %s1484 = smul.addr %s1481, 8
        %s1485 = sadd.s32 %s1483, %s1484
        %s1486 = smul.addr %s1485, 4
        %s1487 = scalar_lea.vmem %s13, %s1486
      $region92: #{attn_block_pallas.4} parent=79 // pred_fallthru
        _
    $region80: #{attn_block_pallas.4} parent=5 // pred_fallthru
      _
  $region6: #{attn_block_pallas.4} parent=0 // loop_footer
    %s24 = sadd.s32 1, %s20
  $region7: #{attn_block_pallas.4} parent=0 // loop_footer_branch
    %19 = sbr.rel target = $region3
  $region8: #{attn_block_pallas.4} parent=0 // loop_exit
    _

</llo_original>
